<compile_context>
chip_gen: v7x
topology: tpu7x:2x2x1
jax: 0.10.0
libtpu: 0.0.40
codegen_flags: <defaults>
</compile_context>

<pallas_src>
import jax
import jax.numpy as jnp
from jax.experimental import pallas as pl
from jax.experimental.pallas import tpu as pltpu


def _make_kernel(th, ht):
    """Builds the fused conv+BN+ReLU kernel for a fixed row-tile size."""

    def kernel(x_ref, w_ref, shift_ref, o_ref):
        # x_ref:     (1, Hp+2, Wp+2, Cin)  bf16 padded NHWC image of batch n
        # w_ref:     (9, Cin, Cp)          bf16 BN-folded weights, tap = 3*dy+dx
        # shift_ref: (1, Cp)               f32 folded BN shift
        # o_ref:     (1, th, Wp, Cp)       lane-dense output tile
        _, _, wp, cp = o_ref.shape
        cin = x_ref.shape[3]

        if ht == 1:
            row0 = 0                       # fully static slices
        else:
            row0 = pl.program_id(1) * th
            if th % 8 == 0:
                row0 = pl.multiple_of(row0, 8)

        acc = jnp.zeros((th * wp, cp), jnp.float32)
        for dy in range(3):
            for dx in range(3):
                tap = x_ref[0, pl.ds(row0 + dy, th), pl.ds(dx, wp), :]
                acc = acc + jnp.dot(tap.reshape(th * wp, cin),
                                    w_ref[3 * dy + dx],
                                    preferred_element_type=jnp.float32)

        y = jnp.maximum(acc + shift_ref[...], 0.0)
        o_ref[0] = y.reshape(th, wp, cp).astype(o_ref.dtype)

    return kernel


def single_conv(x_nchw, conv_w, conv_b, bn_gamma, bn_beta, bn_mean, bn_var,
                eps=1e-5):
    """Conv2d(3x3, s1, p1) -> BatchNorm2d (running stats) -> ReLU.
    x_nchw: (N, Cin, H, W). Returns (N, Cout, H, W) in x's dtype."""
    N, Cin, H, W = x_nchw.shape
    Cout = conv_w.shape[0]

    # ---- fold BN into the conv (inference-mode running stats) -------------
    scale = (bn_gamma / jnp.sqrt(bn_var + eps)).astype(jnp.float32)
    shift = (bn_beta + scale * (conv_b - bn_mean)).astype(jnp.float32)

    Cp = ((Cout + 127) // 128) * 128                   # lane-dense channel pad
    w = jnp.transpose(conv_w, (2, 3, 1, 0)).astype(jnp.float32)  # (3,3,Cin,Cout)
    w = (w * scale[None, None, None, :]).reshape(9, Cin, Cout)
    w = jnp.pad(w, ((0, 0), (0, 0), (0, Cp - Cout))).astype(jnp.bfloat16)
    shift2 = jnp.pad(shift.reshape(1, Cout), ((0, 0), (0, Cp - Cout)))

    # ---- activation layout: NHWC bf16 with 1-px zero halo -----------------
    # TODO(synk): the NCHW<->NHWC transposes are only kept to preserve the
    # PyTorch interface; drop them if the surrounding graph is already NHWC.
    x = jnp.transpose(x_nchw, (0, 2, 3, 1)).astype(jnp.bfloat16)

    # Row tiling: one tile per image unless the f32 output tile exceeds ~2 MiB.
    # W is padded to a sublane multiple so in-kernel reshapes stay free.
    Wp = ((W + 7) // 8) * 8
    th = H
    while th > 8 and th * Wp * Cp * 4 > (2 << 20):
        th = (th + 1) // 2
    HT = (H + th - 1) // th
    Hp = HT * th

    xpad = jnp.pad(x, ((0, 0), (1, 1 + Hp - H), (1, 1 + Wp - W), (0, 0)))
    # xpad: (N, Hp+2, Wp+2, Cin); extra right/bottom columns are zero so valid
    # output pixels are unaffected (they only ever see the original zero halo).

    out = pl.pallas_call(
        _make_kernel(th, HT),
        out_shape=jax.ShapeDtypeStruct((N, Hp, Wp, Cp), x_nchw.dtype),
        grid=(N, HT),
        in_specs=[
            pl.BlockSpec((1, Hp + 2, Wp + 2, Cin), lambda n, h: (n, 0, 0, 0)),
            pl.BlockSpec((9, Cin, Cp), lambda n, h: (0, 0, 0)),
            pl.BlockSpec((1, Cp), lambda n, h: (0, 0)),
        ],
        out_specs=pl.BlockSpec((1, th, Wp, Cp), lambda n, h: (n, h, 0, 0)),
        compiler_params=pltpu.CompilerParams(
            dimension_semantics=("parallel", "arbitrary")),
    )(xpad, w, shift2)

    # Drop spatial/channel padding, restore NCHW to match PyTorch convention.
    out = out[:, :H, :W, :Cout]
    return jnp.transpose(out, (0, 3, 1, 2))


if __name__ == "__main__":
    # SingleConv(in_ch=4, out_ch=8), input x: (2, 4, 16, 16) NCHW.
    N, Cin, H, W = 2, 4, 16, 16
    Cout = 8

    key = jax.random.PRNGKey(0)
    kx, kw, kb, kg, kbe, km, kv = jax.random.split(key, 7)

    x = jax.random.normal(kx, (N, Cin, H, W), jnp.float32)
    conv_w = jax.random.normal(kw, (Cout, Cin, 3, 3), jnp.float32) * 0.1
    conv_b = jax.random.normal(kb, (Cout,), jnp.float32) * 0.1
    bn_gamma = 1.0 + 0.1 * jax.random.normal(kg, (Cout,), jnp.float32)
    bn_beta = 0.1 * jax.random.normal(kbe, (Cout,), jnp.float32)
    bn_mean = 0.1 * jax.random.normal(km, (Cout,), jnp.float32)
    bn_var = 1.0 + 0.1 * jax.random.uniform(kv, (Cout,), jnp.float32)
    # TODO(synk): BatchNorm2d is applied in inference mode (running stats);
    # training-mode batch statistics are not computed in-kernel.

    out = single_conv(x, conv_w, conv_b, bn_gamma, bn_beta, bn_mean, bn_var)
    jax.block_until_ready(out)

    # Sanity check against a pure-JAX f32 reference. The kernel uses bf16
    # operands with f32 accumulation, so tolerances are loosened accordingly.
    xh = jnp.transpose(x, (0, 2, 3, 1))
    ref = jax.lax.conv_general_dilated(
        xh, jnp.transpose(conv_w, (2, 3, 1, 0)),
        window_strides=(1, 1), padding="SAME",
        dimension_numbers=("NHWC", "HWIO", "NHWC"))
    scale = bn_gamma / jnp.sqrt(bn_var + 1e-5)
    shift = bn_beta + scale * (conv_b - bn_mean)
    ref = jnp.maximum(ref * scale + shift, 0.0)
    ref = jnp.transpose(ref, (0, 3, 1, 2))
    assert out.shape == ref.shape
    assert jnp.allclose(out, ref, atol=5e-2, rtol=5e-2)

    print("KERNEL_OK")
</pallas_src>

<mosaic_0001>
module attributes {stable_mosaic.version = 11 : i64} {
  func.func @kernel(%arg0: i32, %arg1: i32, %arg2: memref<1x18x18x4xbf16, #tpu.memory_space<vmem>>, %arg3: memref<9x4x128xbf16, #tpu.memory_space<vmem>>, %arg4: memref<1x128xf32, #tpu.memory_space<vmem>>, %arg5: memref<1x16x16x128xf32, #tpu.memory_space<vmem>>) attributes {dimension_semantics = [#tpu.dimension_semantics<parallel>, #tpu.dimension_semantics<arbitrary>], iteration_bounds = array<i64: 2, 1>, scalar_prefetch = 0 : i64, scratch_operands = 0 : i64, tpu.core_type = #tpu.core_type<tc>, window_params = [{transform_indices = @transform_0, window_bounds = array<i64: 1, 18, 18, 4>}, {pipeline_mode = #tpu.pipeline_mode<synchronous>, transform_indices = @transform_1, window_bounds = array<i64: 9, 4, 128>}, {pipeline_mode = #tpu.pipeline_mode<synchronous>, transform_indices = @transform_2, window_bounds = array<i64: 1, 128>}, {transform_indices = @transform_3, window_bounds = array<i64: 1, 16, 16, 128>}]} {
    %cst = arith.constant 0.000000e+00 : f32
    %0 = vector.broadcast %cst : f32 to vector<256x128xf32>
    %c0 = arith.constant 0 : index
    %c0_0 = arith.constant 0 : index
    %c0_1 = arith.constant 0 : index
    %c0_2 = arith.constant 0 : index
    %1 = vector.load %arg2[%c0, %c0_0, %c0_1, %c0_2] : memref<1x18x18x4xbf16, #tpu.memory_space<vmem>>, vector<1x16x16x4xbf16>
    %2 = vector.shape_cast %1 : vector<1x16x16x4xbf16> to vector<16x16x4xbf16>
    %3 = vector.shape_cast %2 : vector<16x16x4xbf16> to vector<256x4xbf16>
    %c0_3 = arith.constant 0 : index
    %c0_4 = arith.constant 0 : index
    %c0_5 = arith.constant 0 : index
    %4 = vector.load %arg3[%c0_3, %c0_4, %c0_5] : memref<9x4x128xbf16, #tpu.memory_space<vmem>>, vector<1x4x128xbf16>
    %5 = vector.shape_cast %4 : vector<1x4x128xbf16> to vector<4x128xbf16>
    %cst_6 = arith.constant dense<0.000000e+00> : vector<256x128xf32>
    %6 = tpu.matmul %3, %5, %cst_6 {dimension_numbers = #tpu.dot_dimension_numbers<[1], [0], [0], [1], [0, 0, 1, 1], [], []>} : vector<256x4xbf16>, vector<4x128xbf16>, vector<256x128xf32> -> vector<256x128xf32>
    %7 = arith.addf %0, %6 : vector<256x128xf32>
    %c0_7 = arith.constant 0 : index
    %c0_8 = arith.constant 0 : index
    %c1 = arith.constant 1 : index
    %c0_9 = arith.constant 0 : index
    %8 = vector.load %arg2[%c0_7, %c0_8, %c1, %c0_9] : memref<1x18x18x4xbf16, #tpu.memory_space<vmem>>, vector<1x16x16x4xbf16>
    %9 = vector.shape_cast %8 : vector<1x16x16x4xbf16> to vector<16x16x4xbf16>
    %10 = vector.shape_cast %9 : vector<16x16x4xbf16> to vector<256x4xbf16>
    %c1_10 = arith.constant 1 : index
    %c0_11 = arith.constant 0 : index
    %c0_12 = arith.constant 0 : index
    %11 = vector.load %arg3[%c1_10, %c0_11, %c0_12] : memref<9x4x128xbf16, #tpu.memory_space<vmem>>, vector<1x4x128xbf16>
    %12 = vector.shape_cast %11 : vector<1x4x128xbf16> to vector<4x128xbf16>
    %cst_13 = arith.constant dense<0.000000e+00> : vector<256x128xf32>
    %13 = tpu.matmul %10, %12, %cst_13 {dimension_numbers = #tpu.dot_dimension_numbers<[1], [0], [0], [1], [0, 0, 1, 1], [], []>} : vector<256x4xbf16>, vector<4x128xbf16>, vector<256x128xf32> -> vector<256x128xf32>
    %14 = arith.addf %7, %13 : vector<256x128xf32>
    %c0_14 = arith.constant 0 : index
    %c0_15 = arith.constant 0 : index
    %c2 = arith.constant 2 : index
    %c0_16 = arith.constant 0 : index
    %15 = vector.load %arg2[%c0_14, %c0_15, %c2, %c0_16] : memref<1x18x18x4xbf16, #tpu.memory_space<vmem>>, vector<1x16x16x4xbf16>
    %16 = vector.shape_cast %15 : vector<1x16x16x4xbf16> to vector<16x16x4xbf16>
    %17 = vector.shape_cast %16 : vector<16x16x4xbf16> to vector<256x4xbf16>
    %c2_17 = arith.constant 2 : index
    %c0_18 = arith.constant 0 : index
    %c0_19 = arith.constant 0 : index
    %18 = vector.load %arg3[%c2_17, %c0_18, %c0_19] : memref<9x4x128xbf16, #tpu.memory_space<vmem>>, vector<1x4x128xbf16>
    %19 = vector.shape_cast %18 : vector<1x4x128xbf16> to vector<4x128xbf16>
    %cst_20 = arith.constant dense<0.000000e+00> : vector<256x128xf32>
    %20 = tpu.matmul %17, %19, %cst_20 {dimension_numbers = #tpu.dot_dimension_numbers<[1], [0], [0], [1], [0, 0, 1, 1], [], []>} : vector<256x4xbf16>, vector<4x128xbf16>, vector<256x128xf32> -> vector<256x128xf32>
    %21 = arith.addf %14, %20 : vector<256x128xf32>
    %c0_21 = arith.constant 0 : index
    %c1_22 = arith.constant 1 : index
    %c0_23 = arith.constant 0 : index
    %c0_24 = arith.constant 0 : index
    %22 = vector.load %arg2[%c0_21, %c1_22, %c0_23, %c0_24] : memref<1x18x18x4xbf16, #tpu.memory_space<vmem>>, vector<1x16x16x4xbf16>
    %23 = vector.shape_cast %22 : vector<1x16x16x4xbf16> to vector<16x16x4xbf16>
    %24 = vector.shape_cast %23 : vector<16x16x4xbf16> to vector<256x4xbf16>
    %c3 = arith.constant 3 : index
    %c0_25 = arith.constant 0 : index
    %c0_26 = arith.constant 0 : index
    %25 = vector.load %arg3[%c3, %c0_25, %c0_26] : memref<9x4x128xbf16, #tpu.memory_space<vmem>>, vector<1x4x128xbf16>
    %26 = vector.shape_cast %25 : vector<1x4x128xbf16> to vector<4x128xbf16>
    %cst_27 = arith.constant dense<0.000000e+00> : vector<256x128xf32>
    %27 = tpu.matmul %24, %26, %cst_27 {dimension_numbers = #tpu.dot_dimension_numbers<[1], [0], [0], [1], [0, 0, 1, 1], [], []>} : vector<256x4xbf16>, vector<4x128xbf16>, vector<256x128xf32> -> vector<256x128xf32>
    %28 = arith.addf %21, %27 : vector<256x128xf32>
    %c0_28 = arith.constant 0 : index
    %c1_29 = arith.constant 1 : index
    %c1_30 = arith.constant 1 : index
    %c0_31 = arith.constant 0 : index
    %29 = vector.load %arg2[%c0_28, %c1_29, %c1_30, %c0_31] : memref<1x18x18x4xbf16, #tpu.memory_space<vmem>>, vector<1x16x16x4xbf16>
    %30 = vector.shape_cast %29 : vector<1x16x16x4xbf16> to vector<16x16x4xbf16>
    %31 = vector.shape_cast %30 : vector<16x16x4xbf16> to vector<256x4xbf16>
    %c4 = arith.constant 4 : index
    %c0_32 = arith.constant 0 : index
    %c0_33 = arith.constant 0 : index
    %32 = vector.load %arg3[%c4, %c0_32, %c0_33] : memref<9x4x128xbf16, #tpu.memory_space<vmem>>, vector<1x4x128xbf16>
    %33 = vector.shape_cast %32 : vector<1x4x128xbf16> to vector<4x128xbf16>
    %cst_34 = arith.constant dense<0.000000e+00> : vector<256x128xf32>
    %34 = tpu.matmul %31, %33, %cst_34 {dimension_numbers = #tpu.dot_dimension_numbers<[1], [0], [0], [1], [0, 0, 1, 1], [], []>} : vector<256x4xbf16>, vector<4x128xbf16>, vector<256x128xf32> -> vector<256x128xf32>
    %35 = arith.addf %28, %34 : vector<256x128xf32>
    %c0_35 = arith.constant 0 : index
    %c1_36 = arith.constant 1 : index
    %c2_37 = arith.constant 2 : index
    %c0_38 = arith.constant 0 : index
    %36 = vector.load %arg2[%c0_35, %c1_36, %c2_37, %c0_38] : memref<1x18x18x4xbf16, #tpu.memory_space<vmem>>, vector<1x16x16x4xbf16>
    %37 = vector.shape_cast %36 : vector<1x16x16x4xbf16> to vector<16x16x4xbf16>
    %38 = vector.shape_cast %37 : vector<16x16x4xbf16> to vector<256x4xbf16>
    %c5 = arith.constant 5 : index
    %c0_39 = arith.constant 0 : index
    %c0_40 = arith.constant 0 : index
    %39 = vector.load %arg3[%c5, %c0_39, %c0_40] : memref<9x4x128xbf16, #tpu.memory_space<vmem>>, vector<1x4x128xbf16>
    %40 = vector.shape_cast %39 : vector<1x4x128xbf16> to vector<4x128xbf16>
    %cst_41 = arith.constant dense<0.000000e+00> : vector<256x128xf32>
    %41 = tpu.matmul %38, %40, %cst_41 {dimension_numbers = #tpu.dot_dimension_numbers<[1], [0], [0], [1], [0, 0, 1, 1], [], []>} : vector<256x4xbf16>, vector<4x128xbf16>, vector<256x128xf32> -> vector<256x128xf32>
    %42 = arith.addf %35, %41 : vector<256x128xf32>
    %c0_42 = arith.constant 0 : index
    %c2_43 = arith.constant 2 : index
    %c0_44 = arith.constant 0 : index
    %c0_45 = arith.constant 0 : index
    %43 = vector.load %arg2[%c0_42, %c2_43, %c0_44, %c0_45] : memref<1x18x18x4xbf16, #tpu.memory_space<vmem>>, vector<1x16x16x4xbf16>
    %44 = vector.shape_cast %43 : vector<1x16x16x4xbf16> to vector<16x16x4xbf16>
    %45 = vector.shape_cast %44 : vector<16x16x4xbf16> to vector<256x4xbf16>
    %c6 = arith.constant 6 : index
    %c0_46 = arith.constant 0 : index
    %c0_47 = arith.constant 0 : index
    %46 = vector.load %arg3[%c6, %c0_46, %c0_47] : memref<9x4x128xbf16, #tpu.memory_space<vmem>>, vector<1x4x128xbf16>
    %47 = vector.shape_cast %46 : vector<1x4x128xbf16> to vector<4x128xbf16>
    %cst_48 = arith.constant dense<0.000000e+00> : vector<256x128xf32>
    %48 = tpu.matmul %45, %47, %cst_48 {dimension_numbers = #tpu.dot_dimension_numbers<[1], [0], [0], [1], [0, 0, 1, 1], [], []>} : vector<256x4xbf16>, vector<4x128xbf16>, vector<256x128xf32> -> vector<256x128xf32>
    %49 = arith.addf %42, %48 : vector<256x128xf32>
    %c0_49 = arith.constant 0 : index
    %c2_50 = arith.constant 2 : index
    %c1_51 = arith.constant 1 : index
    %c0_52 = arith.constant 0 : index
    %50 = vector.load %arg2[%c0_49, %c2_50, %c1_51, %c0_52] : memref<1x18x18x4xbf16, #tpu.memory_space<vmem>>, vector<1x16x16x4xbf16>
    %51 = vector.shape_cast %50 : vector<1x16x16x4xbf16> to vector<16x16x4xbf16>
    %52 = vector.shape_cast %51 : vector<16x16x4xbf16> to vector<256x4xbf16>
    %c7 = arith.constant 7 : index
    %c0_53 = arith.constant 0 : index
    %c0_54 = arith.constant 0 : index
    %53 = vector.load %arg3[%c7, %c0_53, %c0_54] : memref<9x4x128xbf16, #tpu.memory_space<vmem>>, vector<1x4x128xbf16>
    %54 = vector.shape_cast %53 : vector<1x4x128xbf16> to vector<4x128xbf16>
    %cst_55 = arith.constant dense<0.000000e+00> : vector<256x128xf32>
    %55 = tpu.matmul %52, %54, %cst_55 {dimension_numbers = #tpu.dot_dimension_numbers<[1], [0], [0], [1], [0, 0, 1, 1], [], []>} : vector<256x4xbf16>, vector<4x128xbf16>, vector<256x128xf32> -> vector<256x128xf32>
    %56 = arith.addf %49, %55 : vector<256x128xf32>
    %c0_56 = arith.constant 0 : index
    %c2_57 = arith.constant 2 : index
    %c2_58 = arith.constant 2 : index
    %c0_59 = arith.constant 0 : index
    %57 = vector.load %arg2[%c0_56, %c2_57, %c2_58, %c0_59] : memref<1x18x18x4xbf16, #tpu.memory_space<vmem>>, vector<1x16x16x4xbf16>
    %58 = vector.shape_cast %57 : vector<1x16x16x4xbf16> to vector<16x16x4xbf16>
    %59 = vector.shape_cast %58 : vector<16x16x4xbf16> to vector<256x4xbf16>
    %c8 = arith.constant 8 : index
    %c0_60 = arith.constant 0 : index
    %c0_61 = arith.constant 0 : index
    %60 = vector.load %arg3[%c8, %c0_60, %c0_61] : memref<9x4x128xbf16, #tpu.memory_space<vmem>>, vector<1x4x128xbf16>
    %61 = vector.shape_cast %60 : vector<1x4x128xbf16> to vector<4x128xbf16>
    %cst_62 = arith.constant dense<0.000000e+00> : vector<256x128xf32>
    %62 = tpu.matmul %59, %61, %cst_62 {dimension_numbers = #tpu.dot_dimension_numbers<[1], [0], [0], [1], [0, 0, 1, 1], [], []>} : vector<256x4xbf16>, vector<4x128xbf16>, vector<256x128xf32> -> vector<256x128xf32>
    %63 = arith.addf %56, %62 : vector<256x128xf32>
    %c0_63 = arith.constant 0 : index
    %c0_64 = arith.constant 0 : index
    %64 = vector.load %arg4[%c0_63, %c0_64] : memref<1x128xf32, #tpu.memory_space<vmem>>, vector<1x128xf32>
    %65 = vector.broadcast %64 : vector<1x128xf32> to vector<256x128xf32>
    %66 = arith.addf %63, %65 : vector<256x128xf32>
    %cst_65 = arith.constant 0.000000e+00 : f32
    %67 = vector.broadcast %cst_65 : f32 to vector<256x128xf32>
    %68 = arith.maximumf %66, %67 : vector<256x128xf32>
    %69 = vector.shape_cast %68 : vector<256x128xf32> to vector<16x16x128xf32>
    %c0_66 = arith.constant 0 : index
    %c0_67 = arith.constant 0 : index
    %c0_68 = arith.constant 0 : index
    %c0_69 = arith.constant 0 : index
    %70 = vector.load %arg5[%c0_66, %c0_67, %c0_68, %c0_69] : memref<1x16x16x128xf32, #tpu.memory_space<vmem>>, vector<1x16x16x128xf32>
    %71 = vector.shape_cast %70 : vector<1x16x16x128xf32> to vector<16x16x128xf32>
    %72 = vector.shape_cast %69 : vector<16x16x128xf32> to vector<1x16x16x128xf32>
    tpu.vector_store %arg5[%c0_66, %c0_67, %c0_68, %c0_69], %72 {strides = array<i32>} : memref<1x16x16x128xf32, #tpu.memory_space<vmem>>, vector<1x16x16x128xf32>,
    return
  }
  func.func @transform_0(%arg0: i32, %arg1: i32) -> (i32, i32, i32, i32) {
    %c0_i32 = arith.constant 0 : i32
    %c0_i32_0 = arith.constant 0 : i32
    %c0_i32_1 = arith.constant 0 : i32
    %c0_i32_2 = arith.constant 0 : i32
    return %arg0, %c0_i32, %c0_i32_0, %c0_i32_1 : i32, i32, i32, i32
  }
  func.func @transform_1(%arg0: i32, %arg1: i32) -> (i32, i32, i32) {
    %c0_i32 = arith.constant 0 : i32
    %c0_i32_0 = arith.constant 0 : i32
    %c0_i32_1 = arith.constant 0 : i32
    %c0_i32_2 = arith.constant 0 : i32
    return %c0_i32, %c0_i32_0, %c0_i32_1 : i32, i32, i32
  }
  func.func @transform_2(%arg0: i32, %arg1: i32) -> (i32, i32) {
    %c0_i32 = arith.constant 0 : i32
    %c0_i32_0 = arith.constant 0 : i32
    %c0_i32_1 = arith.constant 0 : i32
    return %c0_i32, %c0_i32_0 : i32, i32
  }
  func.func @transform_3(%arg0: i32, %arg1: i32) -> (i32, i32, i32, i32) {
    %c0_i32 = arith.constant 0 : i32
    %c0_i32_0 = arith.constant 0 : i32
    %c0_i32_1 = arith.constant 0 : i32
    return %arg0, %arg1, %c0_i32, %c0_i32_0 : i32, i32, i32, i32
  }
}

</mosaic_0001>

<llo_original>
// kernel: tpu_custom_call.1
$region0: #{tpu_custom_call.1}
  #allocation0 [shape = 'u32[]', space=smem, size = 0x4, offset = 0x4, fixed_abs, tag = 'smem constant byte address 0x4 - core index']
  #allocation1 [shape = 'u32[144,128]{1,0:T(1,128)}', space=vmem, size = 0x12000, scoped, tag = 'internal scratch']
  %s0 = inlined_call_operand.vmem [shape: bf16[2,18,18,4], index: 0, kind: input, shape index: {}]
  %s1 = inlined_call_operand.vmem [shape: bf16[9,4,128], index: 1, kind: input, shape index: {}]
  %s2 = inlined_call_operand.vmem [shape: f32[1,128], index: 2, kind: input, shape index: {}]
  %s3 = inlined_call_operand.hbm [shape: f32[2,16,16,128], index: 3, kind: output, shape index: {}]
  %s4 = sld [smem:[#allocation0]]
  $region45: #{tpu_custom_call.1} parent=0
    _
  %s6 = ssub.s32 1, %s4
  %s7 = scalar_select 0, %s6, %s4
  $region1: #{tpu_custom_call.1} parent=0
    #allocation2 [shape = 'u8[262144]{0}', space=vmem, size = 0x40000, scoped, tag = 'output window, operand 0']
    #allocation3 [shape = 's32[2]{0}', space=sflag, size = 0x8, scoped, tag = 'scoped memory for tpu_custom_call.1']
    %8 = vsyncpa [#allocation3], 0
    %s9 = scalar_lea.sflag [#allocation3], 1
    %10 = vsyncpa %s9, 0
    loop: start=0, step=1, limit=4
    $region2: #{tpu_custom_call.1} parent=1 // loop_pre_header
      _
    $region3: #{tpu_custom_call.1} parent=1 // loop_header
      %s12 = sphi 0, %s16
      %p13 = scmp.ge.s32.totalorder %s12, 4
      %s19 = sphi 0, %s31
      %s20 = sphi 0, %s27
      %s21 = sphi 0, %s19
      %s22 = sphi 0, %s20
      %s23 = sphi 0, %s21
      %s24 = sphi 0, %s22
      %s34 = sphi 0, %s36
      %s37 = sphi 0, %s34
      %s38 = sphi 0, %s37
      %s54 = sphi 0, %s38
      %s58 = sphi 0, %s58
      %s60 = sphi 0, %s58
      %s61 = sphi 0, %s60
      %s75 = sphi 0, %s61
      %s79 = sphi 0, %s79
      %s81 = sphi 0, %s79
      %s82 = sphi 0, %s81
      %s96 = sphi 0, %s82
      %s104 = sphi 0, %s106
      %s107 = sphi 0, %s104
      %s108 = sphi 0, %s107
      %s124 = sphi 0, %s108
    $region4: #{tpu_custom_call.1} parent=1 // loop_header_branch
      %15 = sbr.rel (%p13) target = $region8
    $region5: #{tpu_custom_call.1} parent=1 // loop_body
      %s17 = ssub.s32 %s12, 1
      %s18 = ssub.s32 %s12, 2
      %s25 = sadd.s32 1, %s20
      %p26 = scmp.ge.s32.totalorder %s25, 1
      %s27 = scalar_select %p26, 0, %s25
      %s28 = sadd.s32 1, %s19
      %s29 = scalar_select %p26, %s28, %s19
      %p30 = scmp.ge.s32.totalorder %s29, 2
      %s31 = scalar_select %p30, 0, %s29
      %s32 = ssub.s32 %s19, %s31
      %p33 = scmp.eq.s32.totalorder %s32, 0
      %s35 = sadd.s32 %s34, 1
      %s36 = scalar_select %p33, %s34, %s35
      %p39 = pneg %p33
      %p40 = scmp.eq.s32.totalorder %s12, 1
      %p41 = por %p39, %p40
      %p42 = scmp.ne.s32.totalorder %s34, %s37
      %p43 = scmp.eq.s32.totalorder %s12, 0
      %p44 = por %p42, %p43
      %p45 = scmp.ne.s32.totalorder %s34, %s37
      %p46 = scmp.eq.s32.totalorder %s17, 1
      %p47 = por %p45, %p46
      %p48 = scmp.ne.s32.totalorder %s37, %s38
      %p49 = scmp.eq.s32.totalorder %s17, 0
      %p50 = por %p48, %p49
      %p51 = scmp.ne.s32.totalorder %s37, %s38
      %p52 = scmp.eq.s32.totalorder %s18, 1
      %p53 = por %p51, %p52
      %p55 = scmp.ne.s32.totalorder %s38, %s54
      %p56 = scmp.eq.s32.totalorder %s18, 0
      %p57 = por %p55, %p56
      %s59 = sadd.s32 %s58, 1
      %p62 = scmp.eq.s32.totalorder %s12, 1
      %p63 = scmp.ne.s32.totalorder %s58, %s60
      %p64 = scmp.eq.s32.totalorder %s12, 0
      %p65 = por %p63, %p64
      %p66 = scmp.ne.s32.totalorder %s58, %s60
      %p67 = scmp.eq.s32.totalorder %s17, 1
      %p68 = por %p66, %p67
      %p69 = scmp.ne.s32.totalorder %s60, %s61
      %p70 = scmp.eq.s32.totalorder %s17, 0
      %p71 = por %p69, %p70
      %p72 = scmp.ne.s32.totalorder %s60, %s61
      %p73 = scmp.eq.s32.totalorder %s18, 1
      %p74 = por %p72, %p73
      %p76 = scmp.ne.s32.totalorder %s61, %s75
      %p77 = scmp.eq.s32.totalorder %s18, 0
      %p78 = por %p76, %p77
      %s80 = sadd.s32 %s79, 1
      %p83 = scmp.eq.s32.totalorder %s12, 1
      %p84 = scmp.ne.s32.totalorder %s79, %s81
      %p85 = scmp.eq.s32.totalorder %s12, 0
      %p86 = por %p84, %p85
      %p87 = scmp.ne.s32.totalorder %s79, %s81
      %p88 = scmp.eq.s32.totalorder %s17, 1
      %p89 = por %p87, %p88
      %p90 = scmp.ne.s32.totalorder %s81, %s82
      %p91 = scmp.eq.s32.totalorder %s17, 0
      %p92 = por %p90, %p91
      %p93 = scmp.ne.s32.totalorder %s81, %s82
      %p94 = scmp.eq.s32.totalorder %s18, 1
      %p95 = por %p93, %p94
      %p97 = scmp.ne.s32.totalorder %s82, %s96
      %p98 = scmp.eq.s32.totalorder %s18, 0
      %p99 = por %p97, %p98
      %s100 = ssub.s32 %s19, %s31
      %s101 = ssub.s32 %s20, %s27
      %s102 = sor.u32 %s100, %s101
      %p103 = scmp.eq.s32.totalorder %s102, 0
      %s105 = sadd.s32 %s104, 1
      %s106 = scalar_select %p103, %s104, %s105
      %p109 = pneg %p103
      %p110 = scmp.eq.s32.totalorder %s12, 1
      %p111 = por %p109, %p110
      %p112 = scmp.ne.s32.totalorder %s104, %s107
      %p113 = scmp.eq.s32.totalorder %s12, 0
      %p114 = por %p112, %p113
      %p115 = scmp.ne.s32.totalorder %s104, %s107
      %p116 = scmp.eq.s32.totalorder %s17, 1
      %p117 = por %p115, %p116
      %p118 = scmp.ne.s32.totalorder %s107, %s108
      %p119 = scmp.eq.s32.totalorder %s17, 0
      %p120 = por %p118, %p119
      %p121 = scmp.ne.s32.totalorder %s107, %s108
      %p122 = scmp.eq.s32.totalorder %s18, 1
      %p123 = por %p121, %p122
      %p125 = scmp.ne.s32.totalorder %s108, %s124
      %p126 = scmp.eq.s32.totalorder %s18, 0
      %p127 = por %p125, %p126
      %p128 = scmp.le.s32.totalorder 1, %s12
      %p129 = scmp.lt.s32.totalorder %s12, 3
      %p130 = pnand %p128, %p129
      %p131 = pneg %p130
      // Predicated region
      $region9: #{tpu_custom_call.1} parent=5 // pred_check
        _
      $region10: #{tpu_custom_call.1} parent=5 // pred_check_branch
        %133 = sbr.rel (%p130) target = $region12
      $region11: #{tpu_custom_call.1} parent=5 // pred_region
        %s134 = ssub.s32 %s12, 1
        // Predicated region
        $region13: #{tpu_custom_call.1} parent=11 // pred_check
          %p135 = pneg %p71
        $region14: #{tpu_custom_call.1} parent=11 // pred_check_branch
          %137 = sbr.rel (%p135) target = $region16
        $region15: #{tpu_custom_call.1} parent=11 // pred_region
          _
        $region16: #{tpu_custom_call.1} parent=11 // pred_fallthru
          _
        // Predicated region
        $region17: #{tpu_custom_call.1} parent=11 // pred_check
          %p138 = pneg %p92
        $region18: #{tpu_custom_call.1} parent=11 // pred_check_branch
          %140 = sbr.rel (%p138) target = $region20
        $region19: #{tpu_custom_call.1} parent=11 // pred_region
          _
        $region20: #{tpu_custom_call.1} parent=11 // pred_fallthru
          _
      $region12: #{tpu_custom_call.1} parent=5 // pred_fallthru
        _
      %p141 = scmp.lt.s32.totalorder %s12, 2
      // Predicated region
      $region21: #{tpu_custom_call.1} parent=5 // pred_check
        %p142 = pneg %p141
      $region22: #{tpu_custom_call.1} parent=5 // pred_check_branch
        %144 = sbr.rel (%p142) target = $region24
      $region23: #{tpu_custom_call.1} parent=5 // pred_region
        // Predicated region
        $region25: #{tpu_custom_call.1} parent=23 // pred_check
          %p145 = pneg %p44
        $region26: #{tpu_custom_call.1} parent=23 // pred_check_branch
          %147 = sbr.rel (%p145) target = $region28
        $region27: #{tpu_custom_call.1} parent=23 // pred_region
          %p148 = scmp.lt.s32.totalorder %s19, 1
          %s149 = scalar_select %p148, %s19, 1
          %s150 = smul.addr %s149, 54
          %s151 = smul.addr %s150, 4
          %s152 = scalar_lea.vmem %s0, %s151
        $region28: #{tpu_custom_call.1} parent=23 // pred_fallthru
          _
      $region24: #{tpu_custom_call.1} parent=5 // pred_fallthru
        _
      %p153 = scmp.le.s32.totalorder 1, %s12
      %p154 = scmp.lt.s32.totalorder %s12, 3
      %p155 = pnand %p153, %p154
      %p156 = pneg %p155
      // Predicated region
      $region29: #{tpu_custom_call.1} parent=5 // pred_check
        _
      $region30: #{tpu_custom_call.1} parent=5 // pred_check_branch
        %158 = sbr.rel (%p155) target = $region32
      $region31: #{tpu_custom_call.1} parent=5 // pred_region
        %s159 = ssub.s32 %s12, 1
        %p160 = scmp.lt.s32.totalorder %s21, 1
        %s161 = scalar_select %p160, %s21, 1
        %s162 = smul.addr %s161, 54
        %s163 = smul.addr %s162, 4
        %s164 = scalar_lea.vmem %s0, %s163
        %p165 = pneg %p50
        %p166 = pneg %p47
        %p167 = pneg %p71
        %p168 = pneg %p68
        %p169 = pneg %p92
        %p170 = pneg %p89
        %p171 = pneg %p120
        %p172 = pneg %p117
        %s173 = sand.u32 %s107, 1
        %s174 = scalar_lea.sflag [#allocation3], %s173
        %s175 = sand.u32 %s107, 1
        %s176 = smul.addr %s175, 256
        %s177 = scalar_lea.vmem [#allocation2], %s176
        %p178 = scmp.lt.s32.totalorder %s21, 1
        %s179 = scalar_select %p178, %s21, 1
        %s180 = smul.addr %s179, 54
        %s181 = smul.addr %s180, 4
        %s182 = scalar_lea.vmem %s0, %s181
        %s183 = smul.u32 16, %s22
        %v185 = vld [vmem:[%s182] sm:$0xf]
        %v186 = vld [vmem:[%s182 + $0x4] sm:$0xf]
        %v187 = vld [vmem:[%s182 + $0xc] sm:$0xf]
        %v188 = vld [vmem:[%s182 + $0x10] sm:$0xf]
        %v189 = vld [vmem:[%s182 + $0x18] sm:$0xf]
        %v190 = vld [vmem:[%s182 + $0x1c] sm:$0xf]
        %v191 = vld [vmem:[%s182 + $0x24] sm:$0xf]
        %v192 = vld [vmem:[%s182 + $0x28] sm:$0xf]
        %v193 = vld [vmem:[%s182 + $0x30] sm:$0xf]
        %v194 = vld [vmem:[%s182 + $0x34] sm:$0xf]
        %v195 = vld [vmem:[%s182 + $0x3c] sm:$0xf]
        %v196 = vld [vmem:[%s182 + $0x40] sm:$0xf]
        %v197 = vld [vmem:[%s182 + $0x48] sm:$0xf]
        %v198 = vld [vmem:[%s182 + $0x4c] sm:$0xf]
        %v199 = vld [vmem:[%s182 + $0x54] sm:$0xf]
        %v200 = vld [vmem:[%s182 + $0x58] sm:$0xf]
        %v201 = vld [vmem:[%s182 + $0x60] sm:$0xf]
        %v202 = vld [vmem:[%s182 + $0x64] sm:$0xf]
        %v203 = vld [vmem:[%s182 + $0x6c] sm:$0xf]
        %v204 = vld [vmem:[%s182 + $0x70] sm:$0xf]
        %v205 = vld [vmem:[%s182 + $0x78] sm:$0xf]
        %v206 = vld [vmem:[%s182 + $0x7c] sm:$0xf]
        %v207 = vld [vmem:[%s182 + $0x84] sm:$0xf]
        %v208 = vld [vmem:[%s182 + $0x88] sm:$0xf]
        %v209 = vld [vmem:[%s182 + $0x90] sm:$0xf]
        %v210 = vld [vmem:[%s182 + $0x94] sm:$0xf]
        %v211 = vld [vmem:[%s182 + $0x9c] sm:$0xf]
        %v212 = vld [vmem:[%s182 + $0xa0] sm:$0xf]
        %v213 = vld [vmem:[%s182 + $0xa8] sm:$0xf]
        %v214 = vld [vmem:[%s182 + $0xac] sm:$0xf]
        %v215 = vld [vmem:[%s182 + $0xb4] sm:$0xf]
        %v216 = vld [vmem:[%s182 + $0xb8] sm:$0xf]
        %v217 = vld [vmem:[%s1] sm:$0x3]
        %v218 = vld [vmem:[%s182 + $0x8] sm:$0x1]
        %v219 = vld [vmem:[%s182 + $0x14] sm:$0x1]
        %v220 = vld [vmem:[%s182 + $0x20] sm:$0x1]
        %v221 = vld [vmem:[%s182 + $0x2c] sm:$0x1]
        %v222 = vld [vmem:[%s182 + $0x38] sm:$0x1]
        %v223 = vld [vmem:[%s182 + $0x44] sm:$0x1]
        %v224 = vld [vmem:[%s182 + $0x50] sm:$0x1]
        %v225 = vld [vmem:[%s182 + $0x5c] sm:$0x1]
        %v226 = vld [vmem:[%s182 + $0x68] sm:$0x1]
        %v227 = vld [vmem:[%s182 + $0x74] sm:$0x1]
        %v228 = vld [vmem:[%s182 + $0x80] sm:$0x1]
        %v229 = vld [vmem:[%s182 + $0x8c] sm:$0x1]
        %v230 = vld [vmem:[%s182 + $0x98] sm:$0x1]
        %v231 = vld [vmem:[%s182 + $0xa4] sm:$0x1]
        %v232 = vld [vmem:[%s182 + $0xb0] sm:$0x1]
        %v233 = vld [vmem:[%s182 + $0xbc] sm:$0x1]
        %vm234 = vsmask.f32 3328
        %vm235 = vsmask.f32 7440
        %vm236 = vmor %vm234, %vm235
        %v238 = vshrl.u32 %v185, 16
        %v240 = vrot.slane %v238, 4
        %v241 = vshll.u32 %v185, 16
        %v243 = vrot.slane %v241, 5
        %v244 = vor.u32 %v240, %v243
        %v245 = vrot.slane %v244, 4
        %v247 = vshll.u32 %v186, 16
        %v249 = vrot.slane %v247, 5
        %v250 = vsel %vm236, %v245, %v249
        %v251 = vshrl.u32 %v186, 16
        %v253 = vrot.slane %v251, 4
        %v254 = vor.u32 %v253, %v249
        %v255 = vrot.slane %v254, 4
        %v257 = vshll.u32 %v218, 16
        %v259 = vrot.slane %v257, 5
        %v260 = vsel %vm236, %v255, %v259
        %v262 = vshrl.u32 %v187, 16
        %v264 = vrot.slane %v262, 4
        %v265 = vshll.u32 %v187, 16
        %v267 = vrot.slane %v265, 5
        %v268 = vor.u32 %v264, %v267
        %v269 = vrot.slane %v268, 4
        %v271 = vshll.u32 %v188, 16
        %v273 = vrot.slane %v271, 5
        %v274 = vsel %vm236, %v269, %v273
        %v275 = vshrl.u32 %v188, 16
        %v277 = vrot.slane %v275, 4
        %v278 = vor.u32 %v277, %v273
        %v279 = vrot.slane %v278, 4
        %v281 = vshll.u32 %v219, 16
        %v283 = vrot.slane %v281, 5
        %v284 = vsel %vm236, %v279, %v283
        %v286 = vshrl.u32 %v189, 16
        %v288 = vrot.slane %v286, 4
        %v289 = vshll.u32 %v189, 16
        %v291 = vrot.slane %v289, 5
        %v292 = vor.u32 %v288, %v291
        %v293 = vrot.slane %v292, 4
        %v295 = vshll.u32 %v190, 16
        %v297 = vrot.slane %v295, 5
        %v298 = vsel %vm236, %v293, %v297
        %v299 = vshrl.u32 %v190, 16
        %v301 = vrot.slane %v299, 4
        %v302 = vor.u32 %v301, %v297
        %v303 = vrot.slane %v302, 4
        %v305 = vshll.u32 %v220, 16
        %v307 = vrot.slane %v305, 5
        %v308 = vsel %vm236, %v303, %v307
        %v310 = vshrl.u32 %v191, 16
        %v312 = vrot.slane %v310, 4
        %v313 = vshll.u32 %v191, 16
        %v315 = vrot.slane %v313, 5
        %v316 = vor.u32 %v312, %v315
        %v317 = vrot.slane %v316, 4
        %v319 = vshll.u32 %v192, 16
        %v321 = vrot.slane %v319, 5
        %v322 = vsel %vm236, %v317, %v321
        %v323 = vshrl.u32 %v192, 16
        %v325 = vrot.slane %v323, 4
        %v326 = vor.u32 %v325, %v321
        %v327 = vrot.slane %v326, 4
        %v329 = vshll.u32 %v221, 16
        %v331 = vrot.slane %v329, 5
        %v332 = vsel %vm236, %v327, %v331
        %v334 = vshrl.u32 %v193, 16
        %v336 = vrot.slane %v334, 4
        %v337 = vshll.u32 %v193, 16
        %v339 = vrot.slane %v337, 5
        %v340 = vor.u32 %v336, %v339
        %v341 = vrot.slane %v340, 4
        %v343 = vshll.u32 %v194, 16
        %v345 = vrot.slane %v343, 5
        %v346 = vsel %vm236, %v341, %v345
        %v347 = vshrl.u32 %v194, 16
        %v349 = vrot.slane %v347, 4
        %v350 = vor.u32 %v349, %v345
        %v351 = vrot.slane %v350, 4
        %v353 = vshll.u32 %v222, 16
        %v355 = vrot.slane %v353, 5
        %v356 = vsel %vm236, %v351, %v355
        %v358 = vshrl.u32 %v195, 16
        %v360 = vrot.slane %v358, 4
        %v361 = vshll.u32 %v195, 16
        %v363 = vrot.slane %v361, 5
        %v364 = vor.u32 %v360, %v363
        %v365 = vrot.slane %v364, 4
        %v367 = vshll.u32 %v196, 16
        %v369 = vrot.slane %v367, 5
        %v370 = vsel %vm236, %v365, %v369
        %v371 = vshrl.u32 %v196, 16
        %v373 = vrot.slane %v371, 4
        %v374 = vor.u32 %v373, %v369
        %v375 = vrot.slane %v374, 4
        %v377 = vshll.u32 %v223, 16
        %v379 = vrot.slane %v377, 5
        %v380 = vsel %vm236, %v375, %v379
        %v382 = vshrl.u32 %v197, 16
        %v384 = vrot.slane %v382, 4
        %v385 = vshll.u32 %v197, 16
        %v387 = vrot.slane %v385, 5
        %v388 = vor.u32 %v384, %v387
        %v389 = vrot.slane %v388, 4
        %v391 = vshll.u32 %v198, 16
        %v393 = vrot.slane %v391, 5
        %v394 = vsel %vm236, %v389, %v393
        %v395 = vshrl.u32 %v198, 16
        %v397 = vrot.slane %v395, 4
        %v398 = vor.u32 %v397, %v393
        %v399 = vrot.slane %v398, 4
        %v401 = vshll.u32 %v224, 16
        %v403 = vrot.slane %v401, 5
        %v404 = vsel %vm236, %v399, %v403
        %v406 = vshrl.u32 %v199, 16
        %v408 = vrot.slane %v406, 4
        %v409 = vshll.u32 %v199, 16
        %v411 = vrot.slane %v409, 5
        %v412 = vor.u32 %v408, %v411
        %v413 = vrot.slane %v412, 4
        %v415 = vshll.u32 %v200, 16
        %v417 = vrot.slane %v415, 5
        %v418 = vsel %vm236, %v413, %v417
        %v419 = vshrl.u32 %v200, 16
        %v421 = vrot.slane %v419, 4
        %v422 = vor.u32 %v421, %v417
        %v423 = vrot.slane %v422, 4
        %v425 = vshll.u32 %v225, 16
        %v427 = vrot.slane %v425, 5
        %v428 = vsel %vm236, %v423, %v427
        %v430 = vshrl.u32 %v201, 16
        %v432 = vrot.slane %v430, 4
        %v433 = vshll.u32 %v201, 16
        %v435 = vrot.slane %v433, 5
        %v436 = vor.u32 %v432, %v435
        %v437 = vrot.slane %v436, 4
        %v439 = vshll.u32 %v202, 16
        %v441 = vrot.slane %v439, 5
        %v442 = vsel %vm236, %v437, %v441
        %v443 = vshrl.u32 %v202, 16
        %v445 = vrot.slane %v443, 4
        %v446 = vor.u32 %v445, %v441
        %v447 = vrot.slane %v446, 4
        %v449 = vshll.u32 %v226, 16
        %v451 = vrot.slane %v449, 5
        %v452 = vsel %vm236, %v447, %v451
        %v454 = vshrl.u32 %v203, 16
        %v456 = vrot.slane %v454, 4
        %v457 = vshll.u32 %v203, 16
        %v459 = vrot.slane %v457, 5
        %v460 = vor.u32 %v456, %v459
        %v461 = vrot.slane %v460, 4
        %v463 = vshll.u32 %v204, 16
        %v465 = vrot.slane %v463, 5
        %v466 = vsel %vm236, %v461, %v465
        %v467 = vshrl.u32 %v204, 16
        %v469 = vrot.slane %v467, 4
        %v470 = vor.u32 %v469, %v465
        %v471 = vrot.slane %v470, 4
        %v473 = vshll.u32 %v227, 16
        %v475 = vrot.slane %v473, 5
        %v476 = vsel %vm236, %v471, %v475
        %v478 = vshrl.u32 %v205, 16
        %v480 = vrot.slane %v478, 4
        %v481 = vshll.u32 %v205, 16
        %v483 = vrot.slane %v481, 5
        %v484 = vor.u32 %v480, %v483
        %v485 = vrot.slane %v484, 4
        %v487 = vshll.u32 %v206, 16
        %v489 = vrot.slane %v487, 5
        %v490 = vsel %vm236, %v485, %v489
        %v491 = vshrl.u32 %v206, 16
        %v493 = vrot.slane %v491, 4
        %v494 = vor.u32 %v493, %v489
        %v495 = vrot.slane %v494, 4
        %v497 = vshll.u32 %v228, 16
        %v499 = vrot.slane %v497, 5
        %v500 = vsel %vm236, %v495, %v499
        %v502 = vshrl.u32 %v207, 16
        %v504 = vrot.slane %v502, 4
        %v505 = vshll.u32 %v207, 16
        %v507 = vrot.slane %v505, 5
        %v508 = vor.u32 %v504, %v507
        %v509 = vrot.slane %v508, 4
        %v511 = vshll.u32 %v208, 16
        %v513 = vrot.slane %v511, 5
        %v514 = vsel %vm236, %v509, %v513
        %v515 = vshrl.u32 %v208, 16
        %v517 = vrot.slane %v515, 4
        %v518 = vor.u32 %v517, %v513
        %v519 = vrot.slane %v518, 4
        %v521 = vshll.u32 %v229, 16
        %v523 = vrot.slane %v521, 5
        %v524 = vsel %vm236, %v519, %v523
        %v526 = vshrl.u32 %v209, 16
        %v528 = vrot.slane %v526, 4
        %v529 = vshll.u32 %v209, 16
        %v531 = vrot.slane %v529, 5
        %v532 = vor.u32 %v528, %v531
        %v533 = vrot.slane %v532, 4
        %v535 = vshll.u32 %v210, 16
        %v537 = vrot.slane %v535, 5
        %v538 = vsel %vm236, %v533, %v537
        %v539 = vshrl.u32 %v210, 16
        %v541 = vrot.slane %v539, 4
        %v542 = vor.u32 %v541, %v537
        %v543 = vrot.slane %v542, 4
        %v545 = vshll.u32 %v230, 16
        %v547 = vrot.slane %v545, 5
        %v548 = vsel %vm236, %v543, %v547
        %v550 = vshrl.u32 %v211, 16
        %v552 = vrot.slane %v550, 4
        %v553 = vshll.u32 %v211, 16
        %v555 = vrot.slane %v553, 5
        %v556 = vor.u32 %v552, %v555
        %v557 = vrot.slane %v556, 4
        %v559 = vshll.u32 %v212, 16
        %v561 = vrot.slane %v559, 5
        %v562 = vsel %vm236, %v557, %v561
        %v563 = vshrl.u32 %v212, 16
        %v565 = vrot.slane %v563, 4
        %v566 = vor.u32 %v565, %v561
        %v567 = vrot.slane %v566, 4
        %v569 = vshll.u32 %v231, 16
        %v571 = vrot.slane %v569, 5
        %v572 = vsel %vm236, %v567, %v571
        %v574 = vshrl.u32 %v213, 16
        %v576 = vrot.slane %v574, 4
        %v577 = vshll.u32 %v213, 16
        %v579 = vrot.slane %v577, 5
        %v580 = vor.u32 %v576, %v579
        %v581 = vrot.slane %v580, 4
        %v583 = vshll.u32 %v214, 16
        %v585 = vrot.slane %v583, 5
        %v586 = vsel %vm236, %v581, %v585
        %v587 = vshrl.u32 %v214, 16
        %v589 = vrot.slane %v587, 4
        %v590 = vor.u32 %v589, %v585
        %v591 = vrot.slane %v590, 4
        %v593 = vshll.u32 %v232, 16
        %v595 = vrot.slane %v593, 5
        %v596 = vsel %vm236, %v591, %v595
        %v598 = vshrl.u32 %v215, 16
        %v600 = vrot.slane %v598, 4
        %v601 = vshll.u32 %v215, 16
        %v603 = vrot.slane %v601, 5
        %v604 = vor.u32 %v600, %v603
        %v605 = vrot.slane %v604, 4
        %v607 = vshll.u32 %v216, 16
        %v609 = vrot.slane %v607, 5
        %v610 = vsel %vm236, %v605, %v609
        %v611 = vshrl.u32 %v216, 16
        %v613 = vrot.slane %v611, 4
        %v614 = vor.u32 %v613, %v609
        %v615 = vrot.slane %v614, 4
        %v617 = vshll.u32 %v233, 16
        %v619 = vrot.slane %v617, 5
        %v620 = vsel %vm236, %v615, %v619
        %s621 = scalar_lea.vmem %s1, 2
        %v622 = vld [vmem:[%s621] sm:$0x3]
        %v623 = vunpack.c.l.b16 %v250
        %v624 = vunpack.c.l.b16 %v260
        %v625 = vunpack.c.l.b16 %v274
        %v626 = vunpack.c.l.b16 %v284
        %v627 = vunpack.c.l.b16 %v298
        %v628 = vunpack.c.l.b16 %v308
        %v629 = vunpack.c.l.b16 %v322
        %v630 = vunpack.c.l.b16 %v332
        %v631 = vunpack.c.l.b16 %v346
        %v632 = vunpack.c.l.b16 %v356
        %v633 = vunpack.c.l.b16 %v370
        %v634 = vunpack.c.l.b16 %v380
        %v635 = vunpack.c.l.b16 %v394
        %v636 = vunpack.c.l.b16 %v404
        %v637 = vunpack.c.l.b16 %v418
        %v638 = vunpack.c.l.b16 %v428
        %v639 = vunpack.c.l.b16 %v442
        %v640 = vunpack.c.l.b16 %v452
        %v641 = vunpack.c.l.b16 %v466
        %v642 = vunpack.c.l.b16 %v476
        %v643 = vunpack.c.l.b16 %v490
        %v644 = vunpack.c.l.b16 %v500
        %v645 = vunpack.c.l.b16 %v514
        %v646 = vunpack.c.l.b16 %v524
        %v647 = vunpack.c.l.b16 %v538
        %v648 = vunpack.c.l.b16 %v548
        %v649 = vunpack.c.l.b16 %v562
        %v650 = vunpack.c.l.b16 %v572
        %v651 = vunpack.c.l.b16 %v586
        %v652 = vunpack.c.l.b16 %v596
        %v653 = vunpack.c.l.b16 %v610
        %v654 = vunpack.c.l.b16 %v620
        %v655 = vpack.c.b16 %v624, %v623
        %v656 = vpack.c.b16 %v626, %v625
        %v657 = vpack.c.b16 %v628, %v627
        %v658 = vpack.c.b16 %v630, %v629
        %v659 = vpack.c.b16 %v632, %v631
        %v660 = vpack.c.b16 %v634, %v633
        %v661 = vpack.c.b16 %v636, %v635
        %v662 = vpack.c.b16 %v638, %v637
        %v663 = vpack.c.b16 %v640, %v639
        %v664 = vpack.c.b16 %v642, %v641
        %v665 = vpack.c.b16 %v644, %v643
        %v666 = vpack.c.b16 %v646, %v645
        %v667 = vpack.c.b16 %v648, %v647
        %v668 = vpack.c.b16 %v650, %v649
        %v669 = vpack.c.b16 %v652, %v651
        %v670 = vpack.c.b16 %v654, %v653
        %vm671 = vcmask 31744
        %v673 = vsel %vm671, %v655, 0
        %v676 = vsel %vm671, %v656, 0
        %v679 = vsel %vm671, %v657, 0
        %v682 = vsel %vm671, %v658, 0
        %v685 = vsel %vm671, %v659, 0
        %v688 = vsel %vm671, %v660, 0
        %v691 = vsel %vm671, %v661, 0
        %v694 = vsel %vm671, %v662, 0
        %v697 = vsel %vm671, %v663, 0
        %v700 = vsel %vm671, %v664, 0
        %v703 = vsel %vm671, %v665, 0
        %v706 = vsel %vm671, %v666, 0
        %v709 = vsel %vm671, %v667, 0
        %v712 = vsel %vm671, %v668, 0
        %v715 = vsel %vm671, %v669, 0
        %v718 = vsel %vm671, %v670, 0
        %vm720 = vcmask 1041408
        %v722 = vsel %vm720, %v622, 0
        %724 = vmatprep.subr.bf16.mxu0 0
        %725 = vmatpush1.bf16.msra.mxu0 %v722
        %726 = vmatprep.subr.bf16.mxu0 0
        %727 = vmatpush1.bf16.msra.mxu0 0
        %728 = vmatprep.subr.bf16.mxu0 0
        %729 = vmatpush1.bf16.msra.mxu0 0
        %730 = vmatprep.subr.bf16.mxu0 0
        %731 = vmatpush1.bf16.msra.mxu0 0
        %732 = vmatprep.subr.bf16.mxu0 0
        %733 = vmatpush1.bf16.msra.mxu0 0
        %734 = vmatprep.subr.bf16.mxu0 0
        %735 = vmatpush1.bf16.msra.mxu0 0
        %736 = vmatprep.subr.bf16.mxu0 0
        %737 = vmatpush1.bf16.msra.mxu0 0
        %738 = vmatprep.subr.bf16.mxu0 0
        %739 = vmatpush1.bf16.msra.mxu0 0
        %740 = vmatprep.subr.bf16.mxu0 0
        %741 = vmatpush1.bf16.msra.mxu0 0
        %742 = vmatprep.subr.bf16.mxu0 0
        %743 = vmatpush1.bf16.msra.mxu0 0
        %744 = vmatprep.subr.bf16.mxu0 0
        %745 = vmatpush1.bf16.msra.mxu0 0
        %746 = vmatprep.subr.bf16.mxu0 0
        %747 = vmatpush1.bf16.msra.mxu0 0
        %748 = vmatprep.subr.bf16.mxu0 0
        %749 = vmatpush1.bf16.msra.mxu0 0
        %750 = vmatprep.subr.bf16.mxu0 0
        %751 = vmatpush1.bf16.msra.mxu0 0
        %752 = vmatprep.subr.bf16.mxu0 0
        %753 = vmatpush1.bf16.msra.mxu0 0
        %754 = vmatprep.subr.bf16.mxu0 0
        %755 = vmatpush1.bf16.msra.mxu0 0
        %756 = vmatprep.mubr.bf16.mxu0 0
        %757 = vmatmul.mubr.bf16.gmra.mrb[0].mxu0 %v673
        %v758 = vpop.f32.mrb[0].mxu0
        %v759 = vadd.f32 0.0, %v758
        %v760 = vpop.f32.mrb[0].mxu0
        %v761 = vpop.f32.mrb[0].mxu0
        %v762 = vadd.f32 0.0, %v761
        %v763 = vpop.f32.mrb[0].mxu0
        %764 = vmatprep.mubr.bf16.mxu0 0
        %765 = vmatmul.mubr.bf16.gmra.mrb[0].mxu0 %v676
        %v766 = vpop.f32.mrb[0].mxu0
        %v767 = vadd.f32 0.0, %v766
        %v768 = vpop.f32.mrb[0].mxu0
        %v769 = vpop.f32.mrb[0].mxu0
        %v770 = vadd.f32 0.0, %v769
        %v771 = vpop.f32.mrb[0].mxu0
        %772 = vmatprep.mubr.bf16.mxu0 0
        %773 = vmatmul.mubr.bf16.gmra.mrb[0].mxu0 %v679
        %v774 = vpop.f32.mrb[0].mxu0
        %v775 = vadd.f32 0.0, %v774
        %v776 = vpop.f32.mrb[0].mxu0
        %v777 = vpop.f32.mrb[0].mxu0
        %v778 = vadd.f32 0.0, %v777
        %v779 = vpop.f32.mrb[0].mxu0
        %780 = vmatprep.mubr.bf16.mxu0 0
        %781 = vmatmul.mubr.bf16.gmra.mrb[0].mxu0 %v682
        %v782 = vpop.f32.mrb[0].mxu0
        %v783 = vadd.f32 0.0, %v782
        %v784 = vpop.f32.mrb[0].mxu0
        %v785 = vpop.f32.mrb[0].mxu0
        %v786 = vadd.f32 0.0, %v785
        %v787 = vpop.f32.mrb[0].mxu0
        %788 = vmatprep.mubr.bf16.mxu0 0
        %789 = vmatmul.mubr.bf16.gmra.mrb[0].mxu0 %v685
        %v790 = vpop.f32.mrb[0].mxu0
        %v791 = vadd.f32 0.0, %v790
        %v792 = vpop.f32.mrb[0].mxu0
        %v793 = vpop.f32.mrb[0].mxu0
        %v794 = vadd.f32 0.0, %v793
        %v795 = vpop.f32.mrb[0].mxu0
        %796 = vmatprep.mubr.bf16.mxu0 0
        %797 = vmatmul.mubr.bf16.gmra.mrb[0].mxu0 %v688
        %v798 = vpop.f32.mrb[0].mxu0
        %v799 = vadd.f32 0.0, %v798
        %v800 = vpop.f32.mrb[0].mxu0
        %v801 = vpop.f32.mrb[0].mxu0
        %v802 = vadd.f32 0.0, %v801
        %v803 = vpop.f32.mrb[0].mxu0
        %804 = vmatprep.mubr.bf16.mxu0 0
        %805 = vmatmul.mubr.bf16.gmra.mrb[0].mxu0 %v691
        %v806 = vpop.f32.mrb[0].mxu0
        %v807 = vadd.f32 0.0, %v806
        %v808 = vpop.f32.mrb[0].mxu0
        %v809 = vpop.f32.mrb[0].mxu0
        %v810 = vadd.f32 0.0, %v809
        %v811 = vpop.f32.mrb[0].mxu0
        %812 = vmatprep.mubr.bf16.mxu0 0
        %813 = vmatmul.mubr.bf16.gmra.mrb[0].mxu0 %v694
        %v814 = vpop.f32.mrb[0].mxu0
        %v815 = vadd.f32 0.0, %v814
        %v816 = vpop.f32.mrb[0].mxu0
        %v817 = vpop.f32.mrb[0].mxu0
        %v818 = vadd.f32 0.0, %v817
        %v819 = vpop.f32.mrb[0].mxu0
        %820 = vmatprep.mubr.bf16.mxu0 0
        %821 = vmatmul.mubr.bf16.gmra.mrb[0].mxu0 %v697
        %v822 = vpop.f32.mrb[0].mxu0
        %v823 = vadd.f32 0.0, %v822
        %v824 = vpop.f32.mrb[0].mxu0
        %v825 = vpop.f32.mrb[0].mxu0
        %v826 = vadd.f32 0.0, %v825
        %v827 = vpop.f32.mrb[0].mxu0
        %828 = vmatprep.mubr.bf16.mxu0 0
        %829 = vmatmul.mubr.bf16.gmra.mrb[0].mxu0 %v700
        %v830 = vpop.f32.mrb[0].mxu0
        %v831 = vadd.f32 0.0, %v830
        %v832 = vpop.f32.mrb[0].mxu0
        %v833 = vpop.f32.mrb[0].mxu0
        %v834 = vadd.f32 0.0, %v833
        %v835 = vpop.f32.mrb[0].mxu0
        %836 = vmatprep.mubr.bf16.mxu0 0
        %837 = vmatmul.mubr.bf16.gmra.mrb[0].mxu0 %v703
        %v838 = vpop.f32.mrb[0].mxu0
        %v839 = vadd.f32 0.0, %v838
        %v840 = vpop.f32.mrb[0].mxu0
        %v841 = vpop.f32.mrb[0].mxu0
        %v842 = vadd.f32 0.0, %v841
        %v843 = vpop.f32.mrb[0].mxu0
        %844 = vmatprep.mubr.bf16.mxu0 0
        %845 = vmatmul.mubr.bf16.gmra.mrb[0].mxu0 %v706
        %v846 = vpop.f32.mrb[0].mxu0
        %v847 = vadd.f32 0.0, %v846
        %v848 = vpop.f32.mrb[0].mxu0
        %v849 = vpop.f32.mrb[0].mxu0
        %v850 = vadd.f32 0.0, %v849
        %v851 = vpop.f32.mrb[0].mxu0
        %852 = vmatprep.mubr.bf16.mxu0 0
        %853 = vmatmul.mubr.bf16.gmra.mrb[0].mxu0 %v709
        %v854 = vpop.f32.mrb[0].mxu0
        %v855 = vadd.f32 0.0, %v854
        %v856 = vpop.f32.mrb[0].mxu0
        %v857 = vpop.f32.mrb[0].mxu0
        %v858 = vadd.f32 0.0, %v857
        %v859 = vpop.f32.mrb[0].mxu0
        %860 = vmatprep.mubr.bf16.mxu0 0
        %861 = vmatmul.mubr.bf16.gmra.mrb[0].mxu0 %v712
        %v862 = vpop.f32.mrb[0].mxu0
        %v863 = vadd.f32 0.0, %v862
        %v864 = vpop.f32.mrb[0].mxu0
        %v865 = vpop.f32.mrb[0].mxu0
        %v866 = vadd.f32 0.0, %v865
        %v867 = vpop.f32.mrb[0].mxu0
        %868 = vmatprep.mubr.bf16.mxu0 0
        %869 = vmatmul.mubr.bf16.gmra.mrb[0].mxu0 %v715
        %v870 = vpop.f32.mrb[0].mxu0
        %v871 = vadd.f32 0.0, %v870
        %v872 = vpop.f32.mrb[0].mxu0
        %v873 = vpop.f32.mrb[0].mxu0
        %v874 = vadd.f32 0.0, %v873
        %v875 = vpop.f32.mrb[0].mxu0
        %876 = vmatprep.mubr.bf16.mxu0 0
        %877 = vmatmul.mubr.bf16.gmra.mrb[0].mxu0 %v718
        %v878 = vpop.f32.mrb[0].mxu0
        %v879 = vadd.f32 0.0, %v878
        %v880 = vpop.f32.mrb[0].mxu0
        %v881 = vpop.f32.mrb[0].mxu0
        %v882 = vadd.f32 0.0, %v881
        %v883 = vpop.f32.mrb[0].mxu0
        %884 = vdwg.mxu0
        %v917 = vunpack.c.l.b16 %v185
        %v918 = vunpack.c.l.b16 %v186
        %v919 = vunpack.c.l.b16 %v187
        %v920 = vunpack.c.l.b16 %v188
        %v921 = vunpack.c.l.b16 %v189
        %v922 = vunpack.c.l.b16 %v190
        %v923 = vunpack.c.l.b16 %v191
        %v924 = vunpack.c.l.b16 %v192
        %v925 = vunpack.c.l.b16 %v193
        %v926 = vunpack.c.l.b16 %v194
        %v927 = vunpack.c.l.b16 %v195
        %v928 = vunpack.c.l.b16 %v196
        %v929 = vunpack.c.l.b16 %v197
        %v930 = vunpack.c.l.b16 %v198
        %v931 = vunpack.c.l.b16 %v199
        %v932 = vunpack.c.l.b16 %v200
        %v933 = vunpack.c.l.b16 %v201
        %v934 = vunpack.c.l.b16 %v202
        %v935 = vunpack.c.l.b16 %v203
        %v936 = vunpack.c.l.b16 %v204
        %v937 = vunpack.c.l.b16 %v205
        %v938 = vunpack.c.l.b16 %v206
        %v939 = vunpack.c.l.b16 %v207
        %v940 = vunpack.c.l.b16 %v208
        %v941 = vunpack.c.l.b16 %v209
        %v942 = vunpack.c.l.b16 %v210
        %v943 = vunpack.c.l.b16 %v211
        %v944 = vunpack.c.l.b16 %v212
        %v945 = vunpack.c.l.b16 %v213
        %v946 = vunpack.c.l.b16 %v214
        %v947 = vunpack.c.l.b16 %v215
        %v948 = vunpack.c.l.b16 %v216
        %v949 = vpack.c.b16 %v918, %v917
        %v950 = vpack.c.b16 %v920, %v919
        %v951 = vpack.c.b16 %v922, %v921
        %v952 = vpack.c.b16 %v924, %v923
        %v953 = vpack.c.b16 %v926, %v925
        %v954 = vpack.c.b16 %v928, %v927
        %v955 = vpack.c.b16 %v930, %v929
        %v956 = vpack.c.b16 %v932, %v931
        %v957 = vpack.c.b16 %v934, %v933
        %v958 = vpack.c.b16 %v936, %v935
        %v959 = vpack.c.b16 %v938, %v937
        %v960 = vpack.c.b16 %v940, %v939
        %v961 = vpack.c.b16 %v942, %v941
        %v962 = vpack.c.b16 %v944, %v943
        %v963 = vpack.c.b16 %v946, %v945
        %v964 = vpack.c.b16 %v948, %v947
        %v966 = vsel %vm671, %v949, 0
        %v969 = vsel %vm671, %v950, 0
        %v972 = vsel %vm671, %v951, 0
        %v975 = vsel %vm671, %v952, 0
        %v978 = vsel %vm671, %v953, 0
        %v981 = vsel %vm671, %v954, 0
        %v984 = vsel %vm671, %v955, 0
        %v987 = vsel %vm671, %v956, 0
        %v990 = vsel %vm671, %v957, 0
        %v993 = vsel %vm671, %v958, 0
        %v996 = vsel %vm671, %v959, 0
        %v999 = vsel %vm671, %v960, 0
        %v1002 = vsel %vm671, %v961, 0
        %v1005 = vsel %vm671, %v962, 0
        %v1008 = vsel %vm671, %v963, 0
        %v1011 = vsel %vm671, %v964, 0
        %v1014 = vsel %vm720, %v217, 0
        %1016 = vmatprep.subr.bf16.mxu0 0
        %1017 = vmatpush1.bf16.msra.mxu0 %v1014
        %1018 = vmatprep.subr.bf16.mxu0 0
        %1019 = vmatpush1.bf16.msra.mxu0 0
        %1020 = vmatprep.subr.bf16.mxu0 0
        %1021 = vmatpush1.bf16.msra.mxu0 0
        %1022 = vmatprep.subr.bf16.mxu0 0
        %1023 = vmatpush1.bf16.msra.mxu0 0
        %1024 = vmatprep.subr.bf16.mxu0 0
        %1025 = vmatpush1.bf16.msra.mxu0 0
        %1026 = vmatprep.subr.bf16.mxu0 0
        %1027 = vmatpush1.bf16.msra.mxu0 0
        %1028 = vmatprep.subr.bf16.mxu0 0
        %1029 = vmatpush1.bf16.msra.mxu0 0
        %1030 = vmatprep.subr.bf16.mxu0 0
        %1031 = vmatpush1.bf16.msra.mxu0 0
        %1032 = vmatprep.subr.bf16.mxu0 0
        %1033 = vmatpush1.bf16.msra.mxu0 0
        %1034 = vmatprep.subr.bf16.mxu0 0
        %1035 = vmatpush1.bf16.msra.mxu0 0
        %1036 = vmatprep.subr.bf16.mxu0 0
        %1037 = vmatpush1.bf16.msra.mxu0 0
        %1038 = vmatprep.subr.bf16.mxu0 0
        %1039 = vmatpush1.bf16.msra.mxu0 0
        %1040 = vmatprep.subr.bf16.mxu0 0
        %1041 = vmatpush1.bf16.msra.mxu0 0
        %1042 = vmatprep.subr.bf16.mxu0 0
        %1043 = vmatpush1.bf16.msra.mxu0 0
        %1044 = vmatprep.subr.bf16.mxu0 0
        %1045 = vmatpush1.bf16.msra.mxu0 0
        %1046 = vmatprep.subr.bf16.mxu0 0
        %1047 = vmatpush1.bf16.msra.mxu0 0
        %1048 = vmatprep.mubr.bf16.mxu0 0
        %1049 = vmatmul.mubr.bf16.gmra.mrb[0].mxu0 %v966
        %v1050 = vpop.f32.mrb[0].mxu0
        %v1051 = vadd.f32 %v759, %v1050
        %v1052 = vpop.f32.mrb[0].mxu0
        %v1053 = vpop.f32.mrb[0].mxu0
        %v1054 = vadd.f32 %v762, %v1053
        %v1055 = vpop.f32.mrb[0].mxu0
        %1056 = vmatprep.mubr.bf16.mxu0 0
        %1057 = vmatmul.mubr.bf16.gmra.mrb[0].mxu0 %v969
        %v1058 = vpop.f32.mrb[0].mxu0
        %v1059 = vadd.f32 %v767, %v1058
        %v1060 = vpop.f32.mrb[0].mxu0
        %v1061 = vpop.f32.mrb[0].mxu0
        %v1062 = vadd.f32 %v770, %v1061
        %v1063 = vpop.f32.mrb[0].mxu0
        %1064 = vmatprep.mubr.bf16.mxu0 0
        %1065 = vmatmul.mubr.bf16.gmra.mrb[0].mxu0 %v972
        %v1066 = vpop.f32.mrb[0].mxu0
        %v1067 = vadd.f32 %v775, %v1066
        %v1068 = vpop.f32.mrb[0].mxu0
        %v1069 = vpop.f32.mrb[0].mxu0
        %v1070 = vadd.f32 %v778, %v1069
        %v1071 = vpop.f32.mrb[0].mxu0
        %1072 = vmatprep.mubr.bf16.mxu0 0
        %1073 = vmatmul.mubr.bf16.gmra.mrb[0].mxu0 %v975
        %v1074 = vpop.f32.mrb[0].mxu0
        %v1075 = vadd.f32 %v783, %v1074
        %v1076 = vpop.f32.mrb[0].mxu0
        %v1077 = vpop.f32.mrb[0].mxu0
        %v1078 = vadd.f32 %v786, %v1077
        %v1079 = vpop.f32.mrb[0].mxu0
        %1080 = vmatprep.mubr.bf16.mxu0 0
        %1081 = vmatmul.mubr.bf16.gmra.mrb[0].mxu0 %v978
        %v1082 = vpop.f32.mrb[0].mxu0
        %v1083 = vadd.f32 %v791, %v1082
        %v1084 = vpop.f32.mrb[0].mxu0
        %v1085 = vpop.f32.mrb[0].mxu0
        %v1086 = vadd.f32 %v794, %v1085
        %v1087 = vpop.f32.mrb[0].mxu0
        %1088 = vmatprep.mubr.bf16.mxu0 0
        %1089 = vmatmul.mubr.bf16.gmra.mrb[0].mxu0 %v981
        %v1090 = vpop.f32.mrb[0].mxu0
        %v1091 = vadd.f32 %v799, %v1090
        %v1092 = vpop.f32.mrb[0].mxu0
        %v1093 = vpop.f32.mrb[0].mxu0
        %v1094 = vadd.f32 %v802, %v1093
        %v1095 = vpop.f32.mrb[0].mxu0
        %1096 = vmatprep.mubr.bf16.mxu0 0
        %1097 = vmatmul.mubr.bf16.gmra.mrb[0].mxu0 %v984
        %v1098 = vpop.f32.mrb[0].mxu0
        %v1099 = vadd.f32 %v807, %v1098
        %v1100 = vpop.f32.mrb[0].mxu0
        %v1101 = vpop.f32.mrb[0].mxu0
        %v1102 = vadd.f32 %v810, %v1101
        %v1103 = vpop.f32.mrb[0].mxu0
        %1104 = vmatprep.mubr.bf16.mxu0 0
        %1105 = vmatmul.mubr.bf16.gmra.mrb[0].mxu0 %v987
        %v1106 = vpop.f32.mrb[0].mxu0
        %v1107 = vadd.f32 %v815, %v1106
        %v1108 = vpop.f32.mrb[0].mxu0
        %v1109 = vpop.f32.mrb[0].mxu0
        %v1110 = vadd.f32 %v818, %v1109
        %v1111 = vpop.f32.mrb[0].mxu0
        %1112 = vmatprep.mubr.bf16.mxu0 0
        %1113 = vmatmul.mubr.bf16.gmra.mrb[0].mxu0 %v990
        %v1114 = vpop.f32.mrb[0].mxu0
        %v1115 = vadd.f32 %v823, %v1114
        %v1116 = vpop.f32.mrb[0].mxu0
        %v1117 = vpop.f32.mrb[0].mxu0
        %v1118 = vadd.f32 %v826, %v1117
        %v1119 = vpop.f32.mrb[0].mxu0
        %1120 = vmatprep.mubr.bf16.mxu0 0
        %1121 = vmatmul.mubr.bf16.gmra.mrb[0].mxu0 %v993
        %v1122 = vpop.f32.mrb[0].mxu0
        %v1123 = vadd.f32 %v831, %v1122
        %v1124 = vpop.f32.mrb[0].mxu0
        %v1125 = vpop.f32.mrb[0].mxu0
        %v1126 = vadd.f32 %v834, %v1125
        %v1127 = vpop.f32.mrb[0].mxu0
        %1128 = vmatprep.mubr.bf16.mxu0 0
        %1129 = vmatmul.mubr.bf16.gmra.mrb[0].mxu0 %v996
        %v1130 = vpop.f32.mrb[0].mxu0
        %v1131 = vadd.f32 %v839, %v1130
        %v1132 = vpop.f32.mrb[0].mxu0
        %v1133 = vpop.f32.mrb[0].mxu0
        %v1134 = vadd.f32 %v842, %v1133
        %v1135 = vpop.f32.mrb[0].mxu0
        %1136 = vmatprep.mubr.bf16.mxu0 0
        %1137 = vmatmul.mubr.bf16.gmra.mrb[0].mxu0 %v999
        %v1138 = vpop.f32.mrb[0].mxu0
        %v1139 = vadd.f32 %v847, %v1138
        %v1140 = vpop.f32.mrb[0].mxu0
        %v1141 = vpop.f32.mrb[0].mxu0
        %v1142 = vadd.f32 %v850, %v1141
        %v1143 = vpop.f32.mrb[0].mxu0
        %1144 = vmatprep.mubr.bf16.mxu0 0
        %1145 = vmatmul.mubr.bf16.gmra.mrb[0].mxu0 %v1002
        %v1146 = vpop.f32.mrb[0].mxu0
        %v1147 = vadd.f32 %v855, %v1146
        %v1148 = vpop.f32.mrb[0].mxu0
        %v1149 = vpop.f32.mrb[0].mxu0
        %v1150 = vadd.f32 %v858, %v1149
        %v1151 = vpop.f32.mrb[0].mxu0
        %1152 = vmatprep.mubr.bf16.mxu0 0
        %1153 = vmatmul.mubr.bf16.gmra.mrb[0].mxu0 %v1005
        %v1154 = vpop.f32.mrb[0].mxu0
        %v1155 = vadd.f32 %v863, %v1154
        %v1156 = vpop.f32.mrb[0].mxu0
        %v1157 = vpop.f32.mrb[0].mxu0
        %v1158 = vadd.f32 %v866, %v1157
        %v1159 = vpop.f32.mrb[0].mxu0
        %1160 = vmatprep.mubr.bf16.mxu0 0
        %1161 = vmatmul.mubr.bf16.gmra.mrb[0].mxu0 %v1008
        %v1162 = vpop.f32.mrb[0].mxu0
        %v1163 = vadd.f32 %v871, %v1162
        %v1164 = vpop.f32.mrb[0].mxu0
        %v1165 = vpop.f32.mrb[0].mxu0
        %v1166 = vadd.f32 %v874, %v1165
        %v1167 = vpop.f32.mrb[0].mxu0
        %1168 = vmatprep.mubr.bf16.mxu0 0
        %1169 = vmatmul.mubr.bf16.gmra.mrb[0].mxu0 %v1011
        %v1170 = vpop.f32.mrb[0].mxu0
        %v1171 = vadd.f32 %v879, %v1170
        %v1172 = vpop.f32.mrb[0].mxu0
        %v1173 = vpop.f32.mrb[0].mxu0
        %v1174 = vadd.f32 %v882, %v1173
        %v1175 = vpop.f32.mrb[0].mxu0
        %1176 = vdwg.mxu0
        %v1177 = vld [vmem:[%s182] sm:$0xe]
        %v1178 = vld [vmem:[%s182 + $0xc] sm:$0xe]
        %v1179 = vld [vmem:[%s182 + $0x18] sm:$0xe]
        %v1180 = vld [vmem:[%s182 + $0x24] sm:$0xe]
        %v1181 = vld [vmem:[%s182 + $0x30] sm:$0xe]
        %v1182 = vld [vmem:[%s182 + $0x3c] sm:$0xe]
        %v1183 = vld [vmem:[%s182 + $0x48] sm:$0xe]
        %v1184 = vld [vmem:[%s182 + $0x54] sm:$0xe]
        %v1185 = vld [vmem:[%s182 + $0x60] sm:$0xe]
        %v1186 = vld [vmem:[%s182 + $0x6c] sm:$0xe]
        %v1187 = vld [vmem:[%s182 + $0x78] sm:$0xe]
        %v1188 = vld [vmem:[%s182 + $0x84] sm:$0xe]
        %v1189 = vld [vmem:[%s182 + $0x90] sm:$0xe]
        %v1190 = vld [vmem:[%s182 + $0x9c] sm:$0xe]
        %v1191 = vld [vmem:[%s182 + $0xa8] sm:$0xe]
        %v1192 = vld [vmem:[%s182 + $0xb4] sm:$0xe]
        %vm1225 = vcmask 1042432
        %vm1226 = vcmask 1046532
        %vm1227 = vmor %vm1225, %vm1226
        %v1228 = vrot.slane %v1177, 5
        %v1229 = vrot.slane %v1228, 4
        %v1230 = vrot.slane %v186, 5
        %v1231 = vsel %vm1227, %v1229, %v1230
        %v1232 = vrot.slane %v1230, 4
        %v1233 = vrot.slane %v218, 5
        %v1234 = vsel %vm1227, %v1232, %v1233
        %v1235 = vrot.slane %v1178, 5
        %v1236 = vrot.slane %v1235, 4
        %v1237 = vrot.slane %v188, 5
        %v1238 = vsel %vm1227, %v1236, %v1237
        %v1239 = vrot.slane %v1237, 4
        %v1240 = vrot.slane %v219, 5
        %v1241 = vsel %vm1227, %v1239, %v1240
        %v1242 = vrot.slane %v1179, 5
        %v1243 = vrot.slane %v1242, 4
        %v1244 = vrot.slane %v190, 5
        %v1245 = vsel %vm1227, %v1243, %v1244
        %v1246 = vrot.slane %v1244, 4
        %v1247 = vrot.slane %v220, 5
        %v1248 = vsel %vm1227, %v1246, %v1247
        %v1249 = vrot.slane %v1180, 5
        %v1250 = vrot.slane %v1249, 4
        %v1251 = vrot.slane %v192, 5
        %v1252 = vsel %vm1227, %v1250, %v1251
        %v1253 = vrot.slane %v1251, 4
        %v1254 = vrot.slane %v221, 5
        %v1255 = vsel %vm1227, %v1253, %v1254
        %v1256 = vrot.slane %v1181, 5
        %v1257 = vrot.slane %v1256, 4
        %v1258 = vrot.slane %v194, 5
        %v1259 = vsel %vm1227, %v1257, %v1258
        %v1260 = vrot.slane %v1258, 4
        %v1261 = vrot.slane %v222, 5
        %v1262 = vsel %vm1227, %v1260, %v1261
        %v1263 = vrot.slane %v1182, 5
        %v1264 = vrot.slane %v1263, 4
        %v1265 = vrot.slane %v196, 5
        %v1266 = vsel %vm1227, %v1264, %v1265
        %v1267 = vrot.slane %v1265, 4
        %v1268 = vrot.slane %v223, 5
        %v1269 = vsel %vm1227, %v1267, %v1268
        %v1270 = vrot.slane %v1183, 5
        %v1271 = vrot.slane %v1270, 4
        %v1272 = vrot.slane %v198, 5
        %v1273 = vsel %vm1227, %v1271, %v1272
        %v1274 = vrot.slane %v1272, 4
        %v1275 = vrot.slane %v224, 5
        %v1276 = vsel %vm1227, %v1274, %v1275
        %v1277 = vrot.slane %v1184, 5
        %v1278 = vrot.slane %v1277, 4
        %v1279 = vrot.slane %v200, 5
        %v1280 = vsel %vm1227, %v1278, %v1279
        %v1281 = vrot.slane %v1279, 4
        %v1282 = vrot.slane %v225, 5
        %v1283 = vsel %vm1227, %v1281, %v1282
        %v1284 = vrot.slane %v1185, 5
        %v1285 = vrot.slane %v1284, 4
        %v1286 = vrot.slane %v202, 5
        %v1287 = vsel %vm1227, %v1285, %v1286
        %v1288 = vrot.slane %v1286, 4
        %v1289 = vrot.slane %v226, 5
        %v1290 = vsel %vm1227, %v1288, %v1289
        %v1291 = vrot.slane %v1186, 5
        %v1292 = vrot.slane %v1291, 4
        %v1293 = vrot.slane %v204, 5
        %v1294 = vsel %vm1227, %v1292, %v1293
        %v1295 = vrot.slane %v1293, 4
        %v1296 = vrot.slane %v227, 5
        %v1297 = vsel %vm1227, %v1295, %v1296
        %v1298 = vrot.slane %v1187, 5
        %v1299 = vrot.slane %v1298, 4
        %v1300 = vrot.slane %v206, 5
        %v1301 = vsel %vm1227, %v1299, %v1300
        %v1302 = vrot.slane %v1300, 4
        %v1303 = vrot.slane %v228, 5
        %v1304 = vsel %vm1227, %v1302, %v1303
        %v1305 = vrot.slane %v1188, 5
        %v1306 = vrot.slane %v1305, 4
        %v1307 = vrot.slane %v208, 5
        %v1308 = vsel %vm1227, %v1306, %v1307
        %v1309 = vrot.slane %v1307, 4
        %v1310 = vrot.slane %v229, 5
        %v1311 = vsel %vm1227, %v1309, %v1310
        %v1312 = vrot.slane %v1189, 5
        %v1313 = vrot.slane %v1312, 4
        %v1314 = vrot.slane %v210, 5
        %v1315 = vsel %vm1227, %v1313, %v1314
        %v1316 = vrot.slane %v1314, 4
        %v1317 = vrot.slane %v230, 5
        %v1318 = vsel %vm1227, %v1316, %v1317
        %v1319 = vrot.slane %v1190, 5
        %v1320 = vrot.slane %v1319, 4
        %v1321 = vrot.slane %v212, 5
        %v1322 = vsel %vm1227, %v1320, %v1321
        %v1323 = vrot.slane %v1321, 4
        %v1324 = vrot.slane %v231, 5
        %v1325 = vsel %vm1227, %v1323, %v1324
        %v1326 = vrot.slane %v1191, 5
        %v1327 = vrot.slane %v1326, 4
        %v1328 = vrot.slane %v214, 5
        %v1329 = vsel %vm1227, %v1327, %v1328
        %v1330 = vrot.slane %v1328, 4
        %v1331 = vrot.slane %v232, 5
        %v1332 = vsel %vm1227, %v1330, %v1331
        %v1333 = vrot.slane %v1192, 5
        %v1334 = vrot.slane %v1333, 4
        %v1335 = vrot.slane %v216, 5
        %v1336 = vsel %vm1227, %v1334, %v1335
        %v1337 = vrot.slane %v1335, 4
        %v1338 = vrot.slane %v233, 5
        %v1339 = vsel %vm1227, %v1337, %v1338
        %s1340 = scalar_lea.vmem %s1, 4
        %v1341 = vld [vmem:[%s1340] sm:$0x3]
        %v1342 = vunpack.c.l.b16 %v1231
        %v1343 = vunpack.c.l.b16 %v1234
        %v1344 = vunpack.c.l.b16 %v1238
        %v1345 = vunpack.c.l.b16 %v1241
        %v1346 = vunpack.c.l.b16 %v1245
        %v1347 = vunpack.c.l.b16 %v1248
        %v1348 = vunpack.c.l.b16 %v1252
        %v1349 = vunpack.c.l.b16 %v1255
        %v1350 = vunpack.c.l.b16 %v1259
        %v1351 = vunpack.c.l.b16 %v1262
        %v1352 = vunpack.c.l.b16 %v1266
        %v1353 = vunpack.c.l.b16 %v1269
        %v1354 = vunpack.c.l.b16 %v1273
        %v1355 = vunpack.c.l.b16 %v1276
        %v1356 = vunpack.c.l.b16 %v1280
        %v1357 = vunpack.c.l.b16 %v1283
        %v1358 = vunpack.c.l.b16 %v1287
        %v1359 = vunpack.c.l.b16 %v1290
        %v1360 = vunpack.c.l.b16 %v1294
        %v1361 = vunpack.c.l.b16 %v1297
        %v1362 = vunpack.c.l.b16 %v1301
        %v1363 = vunpack.c.l.b16 %v1304
        %v1364 = vunpack.c.l.b16 %v1308
        %v1365 = vunpack.c.l.b16 %v1311
        %v1366 = vunpack.c.l.b16 %v1315
        %v1367 = vunpack.c.l.b16 %v1318
        %v1368 = vunpack.c.l.b16 %v1322
        %v1369 = vunpack.c.l.b16 %v1325
        %v1370 = vunpack.c.l.b16 %v1329
        %v1371 = vunpack.c.l.b16 %v1332
        %v1372 = vunpack.c.l.b16 %v1336
        %v1373 = vunpack.c.l.b16 %v1339
        %v1374 = vpack.c.b16 %v1343, %v1342
        %v1375 = vpack.c.b16 %v1345, %v1344
        %v1376 = vpack.c.b16 %v1347, %v1346
        %v1377 = vpack.c.b16 %v1349, %v1348
        %v1378 = vpack.c.b16 %v1351, %v1350
        %v1379 = vpack.c.b16 %v1353, %v1352
        %v1380 = vpack.c.b16 %v1355, %v1354
        %v1381 = vpack.c.b16 %v1357, %v1356
        %v1382 = vpack.c.b16 %v1359, %v1358
        %v1383 = vpack.c.b16 %v1361, %v1360
        %v1384 = vpack.c.b16 %v1363, %v1362
        %v1385 = vpack.c.b16 %v1365, %v1364
        %v1386 = vpack.c.b16 %v1367, %v1366
        %v1387 = vpack.c.b16 %v1369, %v1368
        %v1388 = vpack.c.b16 %v1371, %v1370
        %v1389 = vpack.c.b16 %v1373, %v1372
        %v1391 = vsel %vm671, %v1374, 0
        %v1394 = vsel %vm671, %v1375, 0
        %v1397 = vsel %vm671, %v1376, 0
        %v1400 = vsel %vm671, %v1377, 0
        %v1403 = vsel %vm671, %v1378, 0
        %v1406 = vsel %vm671, %v1379, 0
        %v1409 = vsel %vm671, %v1380, 0
        %v1412 = vsel %vm671, %v1381, 0
        %v1415 = vsel %vm671, %v1382, 0
        %v1418 = vsel %vm671, %v1383, 0
        %v1421 = vsel %vm671, %v1384, 0
        %v1424 = vsel %vm671, %v1385, 0
        %v1427 = vsel %vm671, %v1386, 0
        %v1430 = vsel %vm671, %v1387, 0
        %v1433 = vsel %vm671, %v1388, 0
        %v1436 = vsel %vm671, %v1389, 0
        %v1439 = vsel %vm720, %v1341, 0
        %1441 = vmatprep.subr.bf16.mxu0 0
        %1442 = vmatpush1.bf16.msra.mxu0 %v1439
        %1443 = vmatprep.subr.bf16.mxu0 0
        %1444 = vmatpush1.bf16.msra.mxu0 0
        %1445 = vmatprep.subr.bf16.mxu0 0
        %1446 = vmatpush1.bf16.msra.mxu0 0
        %1447 = vmatprep.subr.bf16.mxu0 0
        %1448 = vmatpush1.bf16.msra.mxu0 0
        %1449 = vmatprep.subr.bf16.mxu0 0
        %1450 = vmatpush1.bf16.msra.mxu0 0
        %1451 = vmatprep.subr.bf16.mxu0 0
        %1452 = vmatpush1.bf16.msra.mxu0 0
        %1453 = vmatprep.subr.bf16.mxu0 0
        %1454 = vmatpush1.bf16.msra.mxu0 0
        %1455 = vmatprep.subr.bf16.mxu0 0
        %1456 = vmatpush1.bf16.msra.mxu0 0
        %1457 = vmatprep.subr.bf16.mxu0 0
        %1458 = vmatpush1.bf16.msra.mxu0 0
        %1459 = vmatprep.subr.bf16.mxu0 0
        %1460 = vmatpush1.bf16.msra.mxu0 0
        %1461 = vmatprep.subr.bf16.mxu0 0
        %1462 = vmatpush1.bf16.msra.mxu0 0
        %1463 = vmatprep.subr.bf16.mxu0 0
        %1464 = vmatpush1.bf16.msra.mxu0 0
        %1465 = vmatprep.subr.bf16.mxu0 0
        %1466 = vmatpush1.bf16.msra.mxu0 0
        %1467 = vmatprep.subr.bf16.mxu0 0
        %1468 = vmatpush1.bf16.msra.mxu0 0
        %1469 = vmatprep.subr.bf16.mxu0 0
        %1470 = vmatpush1.bf16.msra.mxu0 0
        %1471 = vmatprep.subr.bf16.mxu0 0
        %1472 = vmatpush1.bf16.msra.mxu0 0
        %1473 = vmatprep.mubr.bf16.mxu0 0
        %1474 = vmatmul.mubr.bf16.gmra.mrb[0].mxu0 %v1391
        %v1475 = vpop.f32.mrb[0].mxu0
        %v1476 = vadd.f32 0.0, %v1475
        %v1477 = vpop.f32.mrb[0].mxu0
        %v1478 = vpop.f32.mrb[0].mxu0
        %v1479 = vadd.f32 0.0, %v1478
        %v1480 = vpop.f32.mrb[0].mxu0
        %1481 = vmatprep.mubr.bf16.mxu0 0
        %1482 = vmatmul.mubr.bf16.gmra.mrb[0].mxu0 %v1394
        %v1483 = vpop.f32.mrb[0].mxu0
        %v1484 = vadd.f32 0.0, %v1483
        %v1485 = vpop.f32.mrb[0].mxu0
        %v1486 = vpop.f32.mrb[0].mxu0
        %v1487 = vadd.f32 0.0, %v1486
        %v1488 = vpop.f32.mrb[0].mxu0
        %1489 = vmatprep.mubr.bf16.mxu0 0
        %1490 = vmatmul.mubr.bf16.gmra.mrb[0].mxu0 %v1397
        %v1491 = vpop.f32.mrb[0].mxu0
        %v1492 = vadd.f32 0.0, %v1491
        %v1493 = vpop.f32.mrb[0].mxu0
        %v1494 = vpop.f32.mrb[0].mxu0
        %v1495 = vadd.f32 0.0, %v1494
        %v1496 = vpop.f32.mrb[0].mxu0
        %1497 = vmatprep.mubr.bf16.mxu0 0
        %1498 = vmatmul.mubr.bf16.gmra.mrb[0].mxu0 %v1400
        %v1499 = vpop.f32.mrb[0].mxu0
        %v1500 = vadd.f32 0.0, %v1499
        %v1501 = vpop.f32.mrb[0].mxu0
        %v1502 = vpop.f32.mrb[0].mxu0
        %v1503 = vadd.f32 0.0, %v1502
        %v1504 = vpop.f32.mrb[0].mxu0
        %1505 = vmatprep.mubr.bf16.mxu0 0
        %1506 = vmatmul.mubr.bf16.gmra.mrb[0].mxu0 %v1403
        %v1507 = vpop.f32.mrb[0].mxu0
        %v1508 = vadd.f32 0.0, %v1507
        %v1509 = vpop.f32.mrb[0].mxu0
        %v1510 = vpop.f32.mrb[0].mxu0
        %v1511 = vadd.f32 0.0, %v1510
        %v1512 = vpop.f32.mrb[0].mxu0
        %1513 = vmatprep.mubr.bf16.mxu0 0
        %1514 = vmatmul.mubr.bf16.gmra.mrb[0].mxu0 %v1406
        %v1515 = vpop.f32.mrb[0].mxu0
        %v1516 = vadd.f32 0.0, %v1515
        %v1517 = vpop.f32.mrb[0].mxu0
        %v1518 = vpop.f32.mrb[0].mxu0
        %v1519 = vadd.f32 0.0, %v1518
        %v1520 = vpop.f32.mrb[0].mxu0
        %1521 = vmatprep.mubr.bf16.mxu0 0
        %1522 = vmatmul.mubr.bf16.gmra.mrb[0].mxu0 %v1409
        %v1523 = vpop.f32.mrb[0].mxu0
        %v1524 = vadd.f32 0.0, %v1523
        %v1525 = vpop.f32.mrb[0].mxu0
        %v1526 = vpop.f32.mrb[0].mxu0
        %v1527 = vadd.f32 0.0, %v1526
        %v1528 = vpop.f32.mrb[0].mxu0
        %1529 = vmatprep.mubr.bf16.mxu0 0
        %1530 = vmatmul.mubr.bf16.gmra.mrb[0].mxu0 %v1412
        %v1531 = vpop.f32.mrb[0].mxu0
        %v1532 = vadd.f32 0.0, %v1531
        %v1533 = vpop.f32.mrb[0].mxu0
        %v1534 = vpop.f32.mrb[0].mxu0
        %v1535 = vadd.f32 0.0, %v1534
        %v1536 = vpop.f32.mrb[0].mxu0
        %1537 = vmatprep.mubr.bf16.mxu0 0
        %1538 = vmatmul.mubr.bf16.gmra.mrb[0].mxu0 %v1415
        %v1539 = vpop.f32.mrb[0].mxu0
        %v1540 = vadd.f32 0.0, %v1539
        %v1541 = vpop.f32.mrb[0].mxu0
        %v1542 = vpop.f32.mrb[0].mxu0
        %v1543 = vadd.f32 0.0, %v1542
        %v1544 = vpop.f32.mrb[0].mxu0
        %1545 = vmatprep.mubr.bf16.mxu0 0
        %1546 = vmatmul.mubr.bf16.gmra.mrb[0].mxu0 %v1418
        %v1547 = vpop.f32.mrb[0].mxu0
        %v1548 = vadd.f32 0.0, %v1547
        %v1549 = vpop.f32.mrb[0].mxu0
        %v1550 = vpop.f32.mrb[0].mxu0
        %v1551 = vadd.f32 0.0, %v1550
        %v1552 = vpop.f32.mrb[0].mxu0
        %1553 = vmatprep.mubr.bf16.mxu0 0
        %1554 = vmatmul.mubr.bf16.gmra.mrb[0].mxu0 %v1421
        %v1555 = vpop.f32.mrb[0].mxu0
        %v1556 = vadd.f32 0.0, %v1555
        %v1557 = vpop.f32.mrb[0].mxu0
        %v1558 = vpop.f32.mrb[0].mxu0
        %v1559 = vadd.f32 0.0, %v1558
        %v1560 = vpop.f32.mrb[0].mxu0
        %1561 = vmatprep.mubr.bf16.mxu0 0
        %1562 = vmatmul.mubr.bf16.gmra.mrb[0].mxu0 %v1424
        %v1563 = vpop.f32.mrb[0].mxu0
        %v1564 = vadd.f32 0.0, %v1563
        %v1565 = vpop.f32.mrb[0].mxu0
        %v1566 = vpop.f32.mrb[0].mxu0
        %v1567 = vadd.f32 0.0, %v1566
        %v1568 = vpop.f32.mrb[0].mxu0
        %1569 = vmatprep.mubr.bf16.mxu0 0
        %1570 = vmatmul.mubr.bf16.gmra.mrb[0].mxu0 %v1427
        %v1571 = vpop.f32.mrb[0].mxu0
        %v1572 = vadd.f32 0.0, %v1571
        %v1573 = vpop.f32.mrb[0].mxu0
        %v1574 = vpop.f32.mrb[0].mxu0
        %v1575 = vadd.f32 0.0, %v1574
        %v1576 = vpop.f32.mrb[0].mxu0
        %1577 = vmatprep.mubr.bf16.mxu0 0
        %1578 = vmatmul.mubr.bf16.gmra.mrb[0].mxu0 %v1430
        %v1579 = vpop.f32.mrb[0].mxu0
        %v1580 = vadd.f32 0.0, %v1579
        %v1581 = vpop.f32.mrb[0].mxu0
        %v1582 = vpop.f32.mrb[0].mxu0
        %v1583 = vadd.f32 0.0, %v1582
        %v1584 = vpop.f32.mrb[0].mxu0
        %1585 = vmatprep.mubr.bf16.mxu0 0
        %1586 = vmatmul.mubr.bf16.gmra.mrb[0].mxu0 %v1433
        %v1587 = vpop.f32.mrb[0].mxu0
        %v1588 = vadd.f32 0.0, %v1587
        %v1589 = vpop.f32.mrb[0].mxu0
        %v1590 = vpop.f32.mrb[0].mxu0
        %v1591 = vadd.f32 0.0, %v1590
        %v1592 = vpop.f32.mrb[0].mxu0
        %1593 = vmatprep.mubr.bf16.mxu0 0
        %1594 = vmatmul.mubr.bf16.gmra.mrb[0].mxu0 %v1436
        %v1595 = vpop.f32.mrb[0].mxu0
        %v1596 = vadd.f32 0.0, %v1595
        %v1597 = vpop.f32.mrb[0].mxu0
        %v1598 = vpop.f32.mrb[0].mxu0
        %v1599 = vadd.f32 0.0, %v1598
        %v1600 = vpop.f32.mrb[0].mxu0
        %1601 = vdwg.mxu0
        %v1602 = vadd.f32 %v1051, %v1476
        %v1603 = vadd.f32 %v1054, %v1479
        %v1604 = vadd.f32 %v1059, %v1484
        %v1605 = vadd.f32 %v1062, %v1487
        %v1606 = vadd.f32 %v1067, %v1492
        %v1607 = vadd.f32 %v1070, %v1495
        %v1608 = vadd.f32 %v1075, %v1500
        %v1609 = vadd.f32 %v1078, %v1503
        %v1610 = vadd.f32 %v1083, %v1508
        %v1611 = vadd.f32 %v1086, %v1511
        %v1612 = vadd.f32 %v1091, %v1516
        %v1613 = vadd.f32 %v1094, %v1519
        %v1614 = vadd.f32 %v1099, %v1524
        %v1615 = vadd.f32 %v1102, %v1527
        %v1616 = vadd.f32 %v1107, %v1532
        %v1617 = vadd.f32 %v1110, %v1535
        %v1618 = vadd.f32 %v1115, %v1540
        %v1619 = vadd.f32 %v1118, %v1543
        %v1620 = vadd.f32 %v1123, %v1548
        %v1621 = vadd.f32 %v1126, %v1551
        %v1622 = vadd.f32 %v1131, %v1556
        %v1623 = vadd.f32 %v1134, %v1559
        %v1624 = vadd.f32 %v1139, %v1564
        %v1625 = vadd.f32 %v1142, %v1567
        %v1626 = vadd.f32 %v1147, %v1572
        %v1627 = vadd.f32 %v1150, %v1575
        %v1628 = vadd.f32 %v1155, %v1580
        %v1629 = vadd.f32 %v1158, %v1583
        %v1630 = vadd.f32 %v1163, %v1588
        %v1631 = vadd.f32 %v1166, %v1591
        %v1632 = vadd.f32 %v1171, %v1596
        %v1633 = vadd.f32 %v1174, %v1599
        %s1634 = scalar_lea.vmem %s182, 12
        %v1635 = vld [vmem:[%s1634] sm:$0xf]
        %v1636 = vld [vmem:[%s1634 + $0x4] sm:$0xf]
        %v1637 = vld [vmem:[%s1634 + $0xc] sm:$0xf]
        %v1638 = vld [vmem:[%s1634 + $0x10] sm:$0xf]
        %v1639 = vld [vmem:[%s1634 + $0x18] sm:$0xf]
        %v1640 = vld [vmem:[%s1634 + $0x1c] sm:$0xf]
        %v1641 = vld [vmem:[%s1634 + $0x24] sm:$0xf]
        %v1642 = vld [vmem:[%s1634 + $0x28] sm:$0xf]
        %v1643 = vld [vmem:[%s1634 + $0x30] sm:$0xf]
        %v1644 = vld [vmem:[%s1634 + $0x34] sm:$0xf]
        %v1645 = vld [vmem:[%s1634 + $0x3c] sm:$0xf]
        %v1646 = vld [vmem:[%s1634 + $0x40] sm:$0xf]
        %v1647 = vld [vmem:[%s1634 + $0x48] sm:$0xf]
        %v1648 = vld [vmem:[%s1634 + $0x4c] sm:$0xf]
        %v1649 = vld [vmem:[%s1634 + $0x54] sm:$0xf]
        %v1650 = vld [vmem:[%s1634 + $0x58] sm:$0xf]
        %v1651 = vld [vmem:[%s1634 + $0x60] sm:$0xf]
        %v1652 = vld [vmem:[%s1634 + $0x64] sm:$0xf]
        %v1653 = vld [vmem:[%s1634 + $0x6c] sm:$0xf]
        %v1654 = vld [vmem:[%s1634 + $0x70] sm:$0xf]
        %v1655 = vld [vmem:[%s1634 + $0x78] sm:$0xf]
        %v1656 = vld [vmem:[%s1634 + $0x7c] sm:$0xf]
        %v1657 = vld [vmem:[%s1634 + $0x84] sm:$0xf]
        %v1658 = vld [vmem:[%s1634 + $0x88] sm:$0xf]
        %v1659 = vld [vmem:[%s1634 + $0x90] sm:$0xf]
        %v1660 = vld [vmem:[%s1634 + $0x94] sm:$0xf]
        %v1661 = vld [vmem:[%s1634 + $0x9c] sm:$0xf]
        %v1662 = vld [vmem:[%s1634 + $0xa0] sm:$0xf]
        %v1663 = vld [vmem:[%s1634 + $0xa8] sm:$0xf]
        %v1664 = vld [vmem:[%s1634 + $0xac] sm:$0xf]
        %v1665 = vld [vmem:[%s1634 + $0xb4] sm:$0xf]
        %v1666 = vld [vmem:[%s1634 + $0xb8] sm:$0xf]
        %s1667 = scalar_lea.vmem %s1, 6
        %v1668 = vld [vmem:[%s1667] sm:$0x3]
        %v1701 = vunpack.c.l.b16 %v1635
        %v1702 = vunpack.c.l.b16 %v1636
        %v1703 = vunpack.c.l.b16 %v1637
        %v1704 = vunpack.c.l.b16 %v1638
        %v1705 = vunpack.c.l.b16 %v1639
        %v1706 = vunpack.c.l.b16 %v1640
        %v1707 = vunpack.c.l.b16 %v1641
        %v1708 = vunpack.c.l.b16 %v1642
        %v1709 = vunpack.c.l.b16 %v1643
        %v1710 = vunpack.c.l.b16 %v1644
        %v1711 = vunpack.c.l.b16 %v1645
        %v1712 = vunpack.c.l.b16 %v1646
        %v1713 = vunpack.c.l.b16 %v1647
        %v1714 = vunpack.c.l.b16 %v1648
        %v1715 = vunpack.c.l.b16 %v1649
        %v1716 = vunpack.c.l.b16 %v1650
        %v1717 = vunpack.c.l.b16 %v1651
        %v1718 = vunpack.c.l.b16 %v1652
        %v1719 = vunpack.c.l.b16 %v1653
        %v1720 = vunpack.c.l.b16 %v1654
        %v1721 = vunpack.c.l.b16 %v1655
        %v1722 = vunpack.c.l.b16 %v1656
        %v1723 = vunpack.c.l.b16 %v1657
        %v1724 = vunpack.c.l.b16 %v1658
        %v1725 = vunpack.c.l.b16 %v1659
        %v1726 = vunpack.c.l.b16 %v1660
        %v1727 = vunpack.c.l.b16 %v1661
        %v1728 = vunpack.c.l.b16 %v1662
        %v1729 = vunpack.c.l.b16 %v1663
        %v1730 = vunpack.c.l.b16 %v1664
        %v1731 = vunpack.c.l.b16 %v1665
        %v1732 = vunpack.c.l.b16 %v1666
        %v1733 = vpack.c.b16 %v1702, %v1701
        %v1734 = vpack.c.b16 %v1704, %v1703
        %v1735 = vpack.c.b16 %v1706, %v1705
        %v1736 = vpack.c.b16 %v1708, %v1707
        %v1737 = vpack.c.b16 %v1710, %v1709
        %v1738 = vpack.c.b16 %v1712, %v1711
        %v1739 = vpack.c.b16 %v1714, %v1713
        %v1740 = vpack.c.b16 %v1716, %v1715
        %v1741 = vpack.c.b16 %v1718, %v1717
        %v1742 = vpack.c.b16 %v1720, %v1719
        %v1743 = vpack.c.b16 %v1722, %v1721
        %v1744 = vpack.c.b16 %v1724, %v1723
        %v1745 = vpack.c.b16 %v1726, %v1725
        %v1746 = vpack.c.b16 %v1728, %v1727
        %v1747 = vpack.c.b16 %v1730, %v1729
        %v1748 = vpack.c.b16 %v1732, %v1731
        %v1750 = vsel %vm671, %v1733, 0
        %v1753 = vsel %vm671, %v1734, 0
        %v1756 = vsel %vm671, %v1735, 0
        %v1759 = vsel %vm671, %v1736, 0
        %v1762 = vsel %vm671, %v1737, 0
        %v1765 = vsel %vm671, %v1738, 0
        %v1768 = vsel %vm671, %v1739, 0
        %v1771 = vsel %vm671, %v1740, 0
        %v1774 = vsel %vm671, %v1741, 0
        %v1777 = vsel %vm671, %v1742, 0
        %v1780 = vsel %vm671, %v1743, 0
        %v1783 = vsel %vm671, %v1744, 0
        %v1786 = vsel %vm671, %v1745, 0
        %v1789 = vsel %vm671, %v1746, 0
        %v1792 = vsel %vm671, %v1747, 0
        %v1795 = vsel %vm671, %v1748, 0
        %v1798 = vsel %vm720, %v1668, 0
        %1800 = vmatprep.subr.bf16.mxu0 0
        %1801 = vmatpush1.bf16.msra.mxu0 %v1798
        %1802 = vmatprep.subr.bf16.mxu0 0
        %1803 = vmatpush1.bf16.msra.mxu0 0
        %1804 = vmatprep.subr.bf16.mxu0 0
        %1805 = vmatpush1.bf16.msra.mxu0 0
        %1806 = vmatprep.subr.bf16.mxu0 0
        %1807 = vmatpush1.bf16.msra.mxu0 0
        %1808 = vmatprep.subr.bf16.mxu0 0
        %1809 = vmatpush1.bf16.msra.mxu0 0
        %1810 = vmatprep.subr.bf16.mxu0 0
        %1811 = vmatpush1.bf16.msra.mxu0 0
        %1812 = vmatprep.subr.bf16.mxu0 0
        %1813 = vmatpush1.bf16.msra.mxu0 0
        %1814 = vmatprep.subr.bf16.mxu0 0
        %1815 = vmatpush1.bf16.msra.mxu0 0
        %1816 = vmatprep.subr.bf16.mxu0 0
        %1817 = vmatpush1.bf16.msra.mxu0 0
        %1818 = vmatprep.subr.bf16.mxu0 0
        %1819 = vmatpush1.bf16.msra.mxu0 0
        %1820 = vmatprep.subr.bf16.mxu0 0
        %1821 = vmatpush1.bf16.msra.mxu0 0
        %1822 = vmatprep.subr.bf16.mxu0 0
        %1823 = vmatpush1.bf16.msra.mxu0 0
        %1824 = vmatprep.subr.bf16.mxu0 0
        %1825 = vmatpush1.bf16.msra.mxu0 0
        %1826 = vmatprep.subr.bf16.mxu0 0
        %1827 = vmatpush1.bf16.msra.mxu0 0
        %1828 = vmatprep.subr.bf16.mxu0 0
        %1829 = vmatpush1.bf16.msra.mxu0 0
        %1830 = vmatprep.subr.bf16.mxu0 0
        %1831 = vmatpush1.bf16.msra.mxu0 0
        %1832 = vmatprep.mubr.bf16.mxu0 0
        %1833 = vmatmul.mubr.bf16.gmra.mrb[0].mxu0 %v1750
        %v1834 = vpop.f32.mrb[0].mxu0
        %v1835 = vadd.f32 0.0, %v1834
        %v1836 = vpop.f32.mrb[0].mxu0
        %v1837 = vpop.f32.mrb[0].mxu0
        %v1838 = vadd.f32 0.0, %v1837
        %v1839 = vpop.f32.mrb[0].mxu0
        %1840 = vmatprep.mubr.bf16.mxu0 0
        %1841 = vmatmul.mubr.bf16.gmra.mrb[0].mxu0 %v1753
        %v1842 = vpop.f32.mrb[0].mxu0
        %v1843 = vadd.f32 0.0, %v1842
        %v1844 = vpop.f32.mrb[0].mxu0
        %v1845 = vpop.f32.mrb[0].mxu0
        %v1846 = vadd.f32 0.0, %v1845
        %v1847 = vpop.f32.mrb[0].mxu0
        %1848 = vmatprep.mubr.bf16.mxu0 0
        %1849 = vmatmul.mubr.bf16.gmra.mrb[0].mxu0 %v1756
        %v1850 = vpop.f32.mrb[0].mxu0
        %v1851 = vadd.f32 0.0, %v1850
        %v1852 = vpop.f32.mrb[0].mxu0
        %v1853 = vpop.f32.mrb[0].mxu0
        %v1854 = vadd.f32 0.0, %v1853
        %v1855 = vpop.f32.mrb[0].mxu0
        %1856 = vmatprep.mubr.bf16.mxu0 0
        %1857 = vmatmul.mubr.bf16.gmra.mrb[0].mxu0 %v1759
        %v1858 = vpop.f32.mrb[0].mxu0
        %v1859 = vadd.f32 0.0, %v1858
        %v1860 = vpop.f32.mrb[0].mxu0
        %v1861 = vpop.f32.mrb[0].mxu0
        %v1862 = vadd.f32 0.0, %v1861
        %v1863 = vpop.f32.mrb[0].mxu0
        %1864 = vmatprep.mubr.bf16.mxu0 0
        %1865 = vmatmul.mubr.bf16.gmra.mrb[0].mxu0 %v1762
        %v1866 = vpop.f32.mrb[0].mxu0
        %v1867 = vadd.f32 0.0, %v1866
        %v1868 = vpop.f32.mrb[0].mxu0
        %v1869 = vpop.f32.mrb[0].mxu0
        %v1870 = vadd.f32 0.0, %v1869
        %v1871 = vpop.f32.mrb[0].mxu0
        %1872 = vmatprep.mubr.bf16.mxu0 0
        %1873 = vmatmul.mubr.bf16.gmra.mrb[0].mxu0 %v1765
        %v1874 = vpop.f32.mrb[0].mxu0
        %v1875 = vadd.f32 0.0, %v1874
        %v1876 = vpop.f32.mrb[0].mxu0
        %v1877 = vpop.f32.mrb[0].mxu0
        %v1878 = vadd.f32 0.0, %v1877
        %v1879 = vpop.f32.mrb[0].mxu0
        %1880 = vmatprep.mubr.bf16.mxu0 0
        %1881 = vmatmul.mubr.bf16.gmra.mrb[0].mxu0 %v1768
        %v1882 = vpop.f32.mrb[0].mxu0
        %v1883 = vadd.f32 0.0, %v1882
        %v1884 = vpop.f32.mrb[0].mxu0
        %v1885 = vpop.f32.mrb[0].mxu0
        %v1886 = vadd.f32 0.0, %v1885
        %v1887 = vpop.f32.mrb[0].mxu0
        %1888 = vmatprep.mubr.bf16.mxu0 0
        %1889 = vmatmul.mubr.bf16.gmra.mrb[0].mxu0 %v1771
        %v1890 = vpop.f32.mrb[0].mxu0
        %v1891 = vadd.f32 0.0, %v1890
        %v1892 = vpop.f32.mrb[0].mxu0
        %v1893 = vpop.f32.mrb[0].mxu0
        %v1894 = vadd.f32 0.0, %v1893
        %v1895 = vpop.f32.mrb[0].mxu0
        %1896 = vmatprep.mubr.bf16.mxu0 0
        %1897 = vmatmul.mubr.bf16.gmra.mrb[0].mxu0 %v1774
        %v1898 = vpop.f32.mrb[0].mxu0
        %v1899 = vadd.f32 0.0, %v1898
        %v1900 = vpop.f32.mrb[0].mxu0
        %v1901 = vpop.f32.mrb[0].mxu0
        %v1902 = vadd.f32 0.0, %v1901
        %v1903 = vpop.f32.mrb[0].mxu0
        %1904 = vmatprep.mubr.bf16.mxu0 0
        %1905 = vmatmul.mubr.bf16.gmra.mrb[0].mxu0 %v1777
        %v1906 = vpop.f32.mrb[0].mxu0
        %v1907 = vadd.f32 0.0, %v1906
        %v1908 = vpop.f32.mrb[0].mxu0
        %v1909 = vpop.f32.mrb[0].mxu0
        %v1910 = vadd.f32 0.0, %v1909
        %v1911 = vpop.f32.mrb[0].mxu0
        %1912 = vmatprep.mubr.bf16.mxu0 0
        %1913 = vmatmul.mubr.bf16.gmra.mrb[0].mxu0 %v1780
        %v1914 = vpop.f32.mrb[0].mxu0
        %v1915 = vadd.f32 0.0, %v1914
        %v1916 = vpop.f32.mrb[0].mxu0
        %v1917 = vpop.f32.mrb[0].mxu0
        %v1918 = vadd.f32 0.0, %v1917
        %v1919 = vpop.f32.mrb[0].mxu0
        %1920 = vmatprep.mubr.bf16.mxu0 0
        %1921 = vmatmul.mubr.bf16.gmra.mrb[0].mxu0 %v1783
        %v1922 = vpop.f32.mrb[0].mxu0
        %v1923 = vadd.f32 0.0, %v1922
        %v1924 = vpop.f32.mrb[0].mxu0
        %v1925 = vpop.f32.mrb[0].mxu0
        %v1926 = vadd.f32 0.0, %v1925
        %v1927 = vpop.f32.mrb[0].mxu0
        %1928 = vmatprep.mubr.bf16.mxu0 0
        %1929 = vmatmul.mubr.bf16.gmra.mrb[0].mxu0 %v1786
        %v1930 = vpop.f32.mrb[0].mxu0
        %v1931 = vadd.f32 0.0, %v1930
        %v1932 = vpop.f32.mrb[0].mxu0
        %v1933 = vpop.f32.mrb[0].mxu0
        %v1934 = vadd.f32 0.0, %v1933
        %v1935 = vpop.f32.mrb[0].mxu0
        %1936 = vmatprep.mubr.bf16.mxu0 0
        %1937 = vmatmul.mubr.bf16.gmra.mrb[0].mxu0 %v1789
        %v1938 = vpop.f32.mrb[0].mxu0
        %v1939 = vadd.f32 0.0, %v1938
        %v1940 = vpop.f32.mrb[0].mxu0
        %v1941 = vpop.f32.mrb[0].mxu0
        %v1942 = vadd.f32 0.0, %v1941
        %v1943 = vpop.f32.mrb[0].mxu0
        %1944 = vmatprep.mubr.bf16.mxu0 0
        %1945 = vmatmul.mubr.bf16.gmra.mrb[0].mxu0 %v1792
        %v1946 = vpop.f32.mrb[0].mxu0
        %v1947 = vadd.f32 0.0, %v1946
        %v1948 = vpop.f32.mrb[0].mxu0
        %v1949 = vpop.f32.mrb[0].mxu0
        %v1950 = vadd.f32 0.0, %v1949
        %v1951 = vpop.f32.mrb[0].mxu0
        %1952 = vmatprep.mubr.bf16.mxu0 0
        %1953 = vmatmul.mubr.bf16.gmra.mrb[0].mxu0 %v1795
        %v1954 = vpop.f32.mrb[0].mxu0
        %v1955 = vadd.f32 0.0, %v1954
        %v1956 = vpop.f32.mrb[0].mxu0
        %v1957 = vpop.f32.mrb[0].mxu0
        %v1958 = vadd.f32 0.0, %v1957
        %v1959 = vpop.f32.mrb[0].mxu0
        %1960 = vdwg.mxu0
        %v1961 = vadd.f32 %v1602, %v1835
        %v1962 = vadd.f32 %v1603, %v1838
        %v1963 = vadd.f32 %v1604, %v1843
        %v1964 = vadd.f32 %v1605, %v1846
        %v1965 = vadd.f32 %v1606, %v1851
        %v1966 = vadd.f32 %v1607, %v1854
        %v1967 = vadd.f32 %v1608, %v1859
        %v1968 = vadd.f32 %v1609, %v1862
        %v1969 = vadd.f32 %v1610, %v1867
        %v1970 = vadd.f32 %v1611, %v1870
        %v1971 = vadd.f32 %v1612, %v1875
        %v1972 = vadd.f32 %v1613, %v1878
        %v1973 = vadd.f32 %v1614, %v1883
        %v1974 = vadd.f32 %v1615, %v1886
        %v1975 = vadd.f32 %v1616, %v1891
        %v1976 = vadd.f32 %v1617, %v1894
        %v1977 = vadd.f32 %v1618, %v1899
        %v1978 = vadd.f32 %v1619, %v1902
        %v1979 = vadd.f32 %v1620, %v1907
        %v1980 = vadd.f32 %v1621, %v1910
        %v1981 = vadd.f32 %v1622, %v1915
        %v1982 = vadd.f32 %v1623, %v1918
        %v1983 = vadd.f32 %v1624, %v1923
        %v1984 = vadd.f32 %v1625, %v1926
        %v1985 = vadd.f32 %v1626, %v1931
        %v1986 = vadd.f32 %v1627, %v1934
        %v1987 = vadd.f32 %v1628, %v1939
        %v1988 = vadd.f32 %v1629, %v1942
        %v1989 = vadd.f32 %v1630, %v1947
        %v1990 = vadd.f32 %v1631, %v1950
        %v1991 = vadd.f32 %v1632, %v1955
        %v1992 = vadd.f32 %v1633, %v1958
        %v1993 = vld [vmem:[%s1634] sm:$0xf]
        %v1994 = vld [vmem:[%s1634 + $0x4] sm:$0xf]
        %v1995 = vld [vmem:[%s1634 + $0x8] sm:$0x1]
        %v1996 = vld [vmem:[%s1634 + $0xc] sm:$0xf]
        %v1997 = vld [vmem:[%s1634 + $0x10] sm:$0xf]
        %v1998 = vld [vmem:[%s1634 + $0x14] sm:$0x1]
        %v1999 = vld [vmem:[%s1634 + $0x18] sm:$0xf]
        %v2000 = vld [vmem:[%s1634 + $0x1c] sm:$0xf]
        %v2001 = vld [vmem:[%s1634 + $0x20] sm:$0x1]
        %v2002 = vld [vmem:[%s1634 + $0x24] sm:$0xf]
        %v2003 = vld [vmem:[%s1634 + $0x28] sm:$0xf]
        %v2004 = vld [vmem:[%s1634 + $0x2c] sm:$0x1]
        %v2005 = vld [vmem:[%s1634 + $0x30] sm:$0xf]
        %v2006 = vld [vmem:[%s1634 + $0x34] sm:$0xf]
        %v2007 = vld [vmem:[%s1634 + $0x38] sm:$0x1]
        %v2008 = vld [vmem:[%s1634 + $0x3c] sm:$0xf]
        %v2009 = vld [vmem:[%s1634 + $0x40] sm:$0xf]
        %v2010 = vld [vmem:[%s1634 + $0x44] sm:$0x1]
        %v2011 = vld [vmem:[%s1634 + $0x48] sm:$0xf]
        %v2012 = vld [vmem:[%s1634 + $0x4c] sm:$0xf]
        %v2013 = vld [vmem:[%s1634 + $0x50] sm:$0x1]
        %v2014 = vld [vmem:[%s1634 + $0x54] sm:$0xf]
        %v2015 = vld [vmem:[%s1634 + $0x58] sm:$0xf]
        %v2016 = vld [vmem:[%s1634 + $0x5c] sm:$0x1]
        %v2017 = vld [vmem:[%s1634 + $0x60] sm:$0xf]
        %v2018 = vld [vmem:[%s1634 + $0x64] sm:$0xf]
        %v2019 = vld [vmem:[%s1634 + $0x68] sm:$0x1]
        %v2020 = vld [vmem:[%s1634 + $0x6c] sm:$0xf]
        %v2021 = vld [vmem:[%s1634 + $0x70] sm:$0xf]
        %v2022 = vld [vmem:[%s1634 + $0x74] sm:$0x1]
        %v2023 = vld [vmem:[%s1634 + $0x78] sm:$0xf]
        %v2024 = vld [vmem:[%s1634 + $0x7c] sm:$0xf]
        %v2025 = vld [vmem:[%s1634 + $0x80] sm:$0x1]
        %v2026 = vld [vmem:[%s1634 + $0x84] sm:$0xf]
        %v2027 = vld [vmem:[%s1634 + $0x88] sm:$0xf]
        %v2028 = vld [vmem:[%s1634 + $0x8c] sm:$0x1]
        %v2029 = vld [vmem:[%s1634 + $0x90] sm:$0xf]
        %v2030 = vld [vmem:[%s1634 + $0x94] sm:$0xf]
        %v2031 = vld [vmem:[%s1634 + $0x98] sm:$0x1]
        %v2032 = vld [vmem:[%s1634 + $0x9c] sm:$0xf]
        %v2033 = vld [vmem:[%s1634 + $0xa0] sm:$0xf]
        %v2034 = vld [vmem:[%s1634 + $0xa4] sm:$0x1]
        %v2035 = vld [vmem:[%s1634 + $0xa8] sm:$0xf]
        %v2036 = vld [vmem:[%s1634 + $0xac] sm:$0xf]
        %v2037 = vld [vmem:[%s1634 + $0xb0] sm:$0x1]
        %v2038 = vld [vmem:[%s1634 + $0xb4] sm:$0xf]
        %v2039 = vld [vmem:[%s1634 + $0xb8] sm:$0xf]
        %v2040 = vld [vmem:[%s1634 + $0xbc] sm:$0x1]
        %v2042 = vshrl.u32 %v1993, 16
        %v2044 = vrot.slane %v2042, 4
        %v2045 = vshll.u32 %v1993, 16
        %v2047 = vrot.slane %v2045, 5
        %v2048 = vor.u32 %v2044, %v2047
        %v2049 = vrot.slane %v2048, 4
        %v2051 = vshll.u32 %v1994, 16
        %v2053 = vrot.slane %v2051, 5
        %v2054 = vsel %vm236, %v2049, %v2053
        %v2055 = vshrl.u32 %v1994, 16
        %v2057 = vrot.slane %v2055, 4
        %v2058 = vor.u32 %v2057, %v2053
        %v2059 = vrot.slane %v2058, 4
        %v2061 = vshll.u32 %v1995, 16
        %v2063 = vrot.slane %v2061, 5
        %v2064 = vsel %vm236, %v2059, %v2063
        %v2066 = vshrl.u32 %v1996, 16
        %v2068 = vrot.slane %v2066, 4
        %v2069 = vshll.u32 %v1996, 16
        %v2071 = vrot.slane %v2069, 5
        %v2072 = vor.u32 %v2068, %v2071
        %v2073 = vrot.slane %v2072, 4
        %v2075 = vshll.u32 %v1997, 16
        %v2077 = vrot.slane %v2075, 5
        %v2078 = vsel %vm236, %v2073, %v2077
        %v2079 = vshrl.u32 %v1997, 16
        %v2081 = vrot.slane %v2079, 4
        %v2082 = vor.u32 %v2081, %v2077
        %v2083 = vrot.slane %v2082, 4
        %v2085 = vshll.u32 %v1998, 16
        %v2087 = vrot.slane %v2085, 5
        %v2088 = vsel %vm236, %v2083, %v2087
        %v2090 = vshrl.u32 %v1999, 16
        %v2092 = vrot.slane %v2090, 4
        %v2093 = vshll.u32 %v1999, 16
        %v2095 = vrot.slane %v2093, 5
        %v2096 = vor.u32 %v2092, %v2095
        %v2097 = vrot.slane %v2096, 4
        %v2099 = vshll.u32 %v2000, 16
        %v2101 = vrot.slane %v2099, 5
        %v2102 = vsel %vm236, %v2097, %v2101
        %v2103 = vshrl.u32 %v2000, 16
        %v2105 = vrot.slane %v2103, 4
        %v2106 = vor.u32 %v2105, %v2101
        %v2107 = vrot.slane %v2106, 4
        %v2109 = vshll.u32 %v2001, 16
        %v2111 = vrot.slane %v2109, 5
        %v2112 = vsel %vm236, %v2107, %v2111
        %v2114 = vshrl.u32 %v2002, 16
        %v2116 = vrot.slane %v2114, 4
        %v2117 = vshll.u32 %v2002, 16
        %v2119 = vrot.slane %v2117, 5
        %v2120 = vor.u32 %v2116, %v2119
        %v2121 = vrot.slane %v2120, 4
        %v2123 = vshll.u32 %v2003, 16
        %v2125 = vrot.slane %v2123, 5
        %v2126 = vsel %vm236, %v2121, %v2125
        %v2127 = vshrl.u32 %v2003, 16
        %v2129 = vrot.slane %v2127, 4
        %v2130 = vor.u32 %v2129, %v2125
        %v2131 = vrot.slane %v2130, 4
        %v2133 = vshll.u32 %v2004, 16
        %v2135 = vrot.slane %v2133, 5
        %v2136 = vsel %vm236, %v2131, %v2135
        %v2138 = vshrl.u32 %v2005, 16
        %v2140 = vrot.slane %v2138, 4
        %v2141 = vshll.u32 %v2005, 16
        %v2143 = vrot.slane %v2141, 5
        %v2144 = vor.u32 %v2140, %v2143
        %v2145 = vrot.slane %v2144, 4
        %v2147 = vshll.u32 %v2006, 16
        %v2149 = vrot.slane %v2147, 5
        %v2150 = vsel %vm236, %v2145, %v2149
        %v2151 = vshrl.u32 %v2006, 16
        %v2153 = vrot.slane %v2151, 4
        %v2154 = vor.u32 %v2153, %v2149
        %v2155 = vrot.slane %v2154, 4
        %v2157 = vshll.u32 %v2007, 16
        %v2159 = vrot.slane %v2157, 5
        %v2160 = vsel %vm236, %v2155, %v2159
        %v2162 = vshrl.u32 %v2008, 16
        %v2164 = vrot.slane %v2162, 4
        %v2165 = vshll.u32 %v2008, 16
        %v2167 = vrot.slane %v2165, 5
        %v2168 = vor.u32 %v2164, %v2167
        %v2169 = vrot.slane %v2168, 4
        %v2171 = vshll.u32 %v2009, 16
        %v2173 = vrot.slane %v2171, 5
        %v2174 = vsel %vm236, %v2169, %v2173
        %v2175 = vshrl.u32 %v2009, 16
        %v2177 = vrot.slane %v2175, 4
        %v2178 = vor.u32 %v2177, %v2173
        %v2179 = vrot.slane %v2178, 4
        %v2181 = vshll.u32 %v2010, 16
        %v2183 = vrot.slane %v2181, 5
        %v2184 = vsel %vm236, %v2179, %v2183
        %v2186 = vshrl.u32 %v2011, 16
        %v2188 = vrot.slane %v2186, 4
        %v2189 = vshll.u32 %v2011, 16
        %v2191 = vrot.slane %v2189, 5
        %v2192 = vor.u32 %v2188, %v2191
        %v2193 = vrot.slane %v2192, 4
        %v2195 = vshll.u32 %v2012, 16
        %v2197 = vrot.slane %v2195, 5
        %v2198 = vsel %vm236, %v2193, %v2197
        %v2199 = vshrl.u32 %v2012, 16
        %v2201 = vrot.slane %v2199, 4
        %v2202 = vor.u32 %v2201, %v2197
        %v2203 = vrot.slane %v2202, 4
        %v2205 = vshll.u32 %v2013, 16
        %v2207 = vrot.slane %v2205, 5
        %v2208 = vsel %vm236, %v2203, %v2207
        %v2210 = vshrl.u32 %v2014, 16
        %v2212 = vrot.slane %v2210, 4
        %v2213 = vshll.u32 %v2014, 16
        %v2215 = vrot.slane %v2213, 5
        %v2216 = vor.u32 %v2212, %v2215
        %v2217 = vrot.slane %v2216, 4
        %v2219 = vshll.u32 %v2015, 16
        %v2221 = vrot.slane %v2219, 5
        %v2222 = vsel %vm236, %v2217, %v2221
        %v2223 = vshrl.u32 %v2015, 16
        %v2225 = vrot.slane %v2223, 4
        %v2226 = vor.u32 %v2225, %v2221
        %v2227 = vrot.slane %v2226, 4
        %v2229 = vshll.u32 %v2016, 16
        %v2231 = vrot.slane %v2229, 5
        %v2232 = vsel %vm236, %v2227, %v2231
        %v2234 = vshrl.u32 %v2017, 16
        %v2236 = vrot.slane %v2234, 4
        %v2237 = vshll.u32 %v2017, 16
        %v2239 = vrot.slane %v2237, 5
        %v2240 = vor.u32 %v2236, %v2239
        %v2241 = vrot.slane %v2240, 4
        %v2243 = vshll.u32 %v2018, 16
        %v2245 = vrot.slane %v2243, 5
        %v2246 = vsel %vm236, %v2241, %v2245
        %v2247 = vshrl.u32 %v2018, 16
        %v2249 = vrot.slane %v2247, 4
        %v2250 = vor.u32 %v2249, %v2245
        %v2251 = vrot.slane %v2250, 4
        %v2253 = vshll.u32 %v2019, 16
        %v2255 = vrot.slane %v2253, 5
        %v2256 = vsel %vm236, %v2251, %v2255
        %v2258 = vshrl.u32 %v2020, 16
        %v2260 = vrot.slane %v2258, 4
        %v2261 = vshll.u32 %v2020, 16
        %v2263 = vrot.slane %v2261, 5
        %v2264 = vor.u32 %v2260, %v2263
        %v2265 = vrot.slane %v2264, 4
        %v2267 = vshll.u32 %v2021, 16
        %v2269 = vrot.slane %v2267, 5
        %v2270 = vsel %vm236, %v2265, %v2269
        %v2271 = vshrl.u32 %v2021, 16
        %v2273 = vrot.slane %v2271, 4
        %v2274 = vor.u32 %v2273, %v2269
        %v2275 = vrot.slane %v2274, 4
        %v2277 = vshll.u32 %v2022, 16
        %v2279 = vrot.slane %v2277, 5
        %v2280 = vsel %vm236, %v2275, %v2279
        %v2282 = vshrl.u32 %v2023, 16
        %v2284 = vrot.slane %v2282, 4
        %v2285 = vshll.u32 %v2023, 16
        %v2287 = vrot.slane %v2285, 5
        %v2288 = vor.u32 %v2284, %v2287
        %v2289 = vrot.slane %v2288, 4
        %v2291 = vshll.u32 %v2024, 16
        %v2293 = vrot.slane %v2291, 5
        %v2294 = vsel %vm236, %v2289, %v2293
        %v2295 = vshrl.u32 %v2024, 16
        %v2297 = vrot.slane %v2295, 4
        %v2298 = vor.u32 %v2297, %v2293
        %v2299 = vrot.slane %v2298, 4
        %v2301 = vshll.u32 %v2025, 16
        %v2303 = vrot.slane %v2301, 5
        %v2304 = vsel %vm236, %v2299, %v2303
        %v2306 = vshrl.u32 %v2026, 16
        %v2308 = vrot.slane %v2306, 4
        %v2309 = vshll.u32 %v2026, 16
        %v2311 = vrot.slane %v2309, 5
        %v2312 = vor.u32 %v2308, %v2311
        %v2313 = vrot.slane %v2312, 4
        %v2315 = vshll.u32 %v2027, 16
        %v2317 = vrot.slane %v2315, 5
        %v2318 = vsel %vm236, %v2313, %v2317
        %v2319 = vshrl.u32 %v2027, 16
        %v2321 = vrot.slane %v2319, 4
        %v2322 = vor.u32 %v2321, %v2317
        %v2323 = vrot.slane %v2322, 4
        %v2325 = vshll.u32 %v2028, 16
        %v2327 = vrot.slane %v2325, 5
        %v2328 = vsel %vm236, %v2323, %v2327
        %v2330 = vshrl.u32 %v2029, 16
        %v2332 = vrot.slane %v2330, 4
        %v2333 = vshll.u32 %v2029, 16
        %v2335 = vrot.slane %v2333, 5
        %v2336 = vor.u32 %v2332, %v2335
        %v2337 = vrot.slane %v2336, 4
        %v2339 = vshll.u32 %v2030, 16
        %v2341 = vrot.slane %v2339, 5
        %v2342 = vsel %vm236, %v2337, %v2341
        %v2343 = vshrl.u32 %v2030, 16
        %v2345 = vrot.slane %v2343, 4
        %v2346 = vor.u32 %v2345, %v2341
        %v2347 = vrot.slane %v2346, 4
        %v2349 = vshll.u32 %v2031, 16
        %v2351 = vrot.slane %v2349, 5
        %v2352 = vsel %vm236, %v2347, %v2351
        %v2354 = vshrl.u32 %v2032, 16
        %v2356 = vrot.slane %v2354, 4
        %v2357 = vshll.u32 %v2032, 16
        %v2359 = vrot.slane %v2357, 5
        %v2360 = vor.u32 %v2356, %v2359
        %v2361 = vrot.slane %v2360, 4
        %v2363 = vshll.u32 %v2033, 16
        %v2365 = vrot.slane %v2363, 5
        %v2366 = vsel %vm236, %v2361, %v2365
        %v2367 = vshrl.u32 %v2033, 16
        %v2369 = vrot.slane %v2367, 4
        %v2370 = vor.u32 %v2369, %v2365
        %v2371 = vrot.slane %v2370, 4
        %v2373 = vshll.u32 %v2034, 16
        %v2375 = vrot.slane %v2373, 5
        %v2376 = vsel %vm236, %v2371, %v2375
        %v2378 = vshrl.u32 %v2035, 16
        %v2380 = vrot.slane %v2378, 4
        %v2381 = vshll.u32 %v2035, 16
        %v2383 = vrot.slane %v2381, 5
        %v2384 = vor.u32 %v2380, %v2383
        %v2385 = vrot.slane %v2384, 4
        %v2387 = vshll.u32 %v2036, 16
        %v2389 = vrot.slane %v2387, 5
        %v2390 = vsel %vm236, %v2385, %v2389
        %v2391 = vshrl.u32 %v2036, 16
        %v2393 = vrot.slane %v2391, 4
        %v2394 = vor.u32 %v2393, %v2389
        %v2395 = vrot.slane %v2394, 4
        %v2397 = vshll.u32 %v2037, 16
        %v2399 = vrot.slane %v2397, 5
        %v2400 = vsel %vm236, %v2395, %v2399
        %v2402 = vshrl.u32 %v2038, 16
        %v2404 = vrot.slane %v2402, 4
        %v2405 = vshll.u32 %v2038, 16
        %v2407 = vrot.slane %v2405, 5
        %v2408 = vor.u32 %v2404, %v2407
        %v2409 = vrot.slane %v2408, 4
        %v2411 = vshll.u32 %v2039, 16
        %v2413 = vrot.slane %v2411, 5
        %v2414 = vsel %vm236, %v2409, %v2413
        %v2415 = vshrl.u32 %v2039, 16
        %v2417 = vrot.slane %v2415, 4
        %v2418 = vor.u32 %v2417, %v2413
        %v2419 = vrot.slane %v2418, 4
        %v2421 = vshll.u32 %v2040, 16
        %v2423 = vrot.slane %v2421, 5
        %v2424 = vsel %vm236, %v2419, %v2423
        %s2425 = scalar_lea.vmem %s1, 8
        %v2426 = vld [vmem:[%s2425] sm:$0x3]
        %v2427 = vunpack.c.l.b16 %v2054
        %v2428 = vunpack.c.l.b16 %v2064
        %v2429 = vunpack.c.l.b16 %v2078
        %v2430 = vunpack.c.l.b16 %v2088
        %v2431 = vunpack.c.l.b16 %v2102
        %v2432 = vunpack.c.l.b16 %v2112
        %v2433 = vunpack.c.l.b16 %v2126
        %v2434 = vunpack.c.l.b16 %v2136
        %v2435 = vunpack.c.l.b16 %v2150
        %v2436 = vunpack.c.l.b16 %v2160
        %v2437 = vunpack.c.l.b16 %v2174
        %v2438 = vunpack.c.l.b16 %v2184
        %v2439 = vunpack.c.l.b16 %v2198
        %v2440 = vunpack.c.l.b16 %v2208
        %v2441 = vunpack.c.l.b16 %v2222
        %v2442 = vunpack.c.l.b16 %v2232
        %v2443 = vunpack.c.l.b16 %v2246
        %v2444 = vunpack.c.l.b16 %v2256
        %v2445 = vunpack.c.l.b16 %v2270
        %v2446 = vunpack.c.l.b16 %v2280
        %v2447 = vunpack.c.l.b16 %v2294
        %v2448 = vunpack.c.l.b16 %v2304
        %v2449 = vunpack.c.l.b16 %v2318
        %v2450 = vunpack.c.l.b16 %v2328
        %v2451 = vunpack.c.l.b16 %v2342
        %v2452 = vunpack.c.l.b16 %v2352
        %v2453 = vunpack.c.l.b16 %v2366
        %v2454 = vunpack.c.l.b16 %v2376
        %v2455 = vunpack.c.l.b16 %v2390
        %v2456 = vunpack.c.l.b16 %v2400
        %v2457 = vunpack.c.l.b16 %v2414
        %v2458 = vunpack.c.l.b16 %v2424
        %v2459 = vpack.c.b16 %v2428, %v2427
        %v2460 = vpack.c.b16 %v2430, %v2429
        %v2461 = vpack.c.b16 %v2432, %v2431
        %v2462 = vpack.c.b16 %v2434, %v2433
        %v2463 = vpack.c.b16 %v2436, %v2435
        %v2464 = vpack.c.b16 %v2438, %v2437
        %v2465 = vpack.c.b16 %v2440, %v2439
        %v2466 = vpack.c.b16 %v2442, %v2441
        %v2467 = vpack.c.b16 %v2444, %v2443
        %v2468 = vpack.c.b16 %v2446, %v2445
        %v2469 = vpack.c.b16 %v2448, %v2447
        %v2470 = vpack.c.b16 %v2450, %v2449
        %v2471 = vpack.c.b16 %v2452, %v2451
        %v2472 = vpack.c.b16 %v2454, %v2453
        %v2473 = vpack.c.b16 %v2456, %v2455
        %v2474 = vpack.c.b16 %v2458, %v2457
        %v2476 = vsel %vm671, %v2459, 0
        %v2479 = vsel %vm671, %v2460, 0
        %v2482 = vsel %vm671, %v2461, 0
        %v2485 = vsel %vm671, %v2462, 0
        %v2488 = vsel %vm671, %v2463, 0
        %v2491 = vsel %vm671, %v2464, 0
        %v2494 = vsel %vm671, %v2465, 0
        %v2497 = vsel %vm671, %v2466, 0
        %v2500 = vsel %vm671, %v2467, 0
        %v2503 = vsel %vm671, %v2468, 0
        %v2506 = vsel %vm671, %v2469, 0
        %v2509 = vsel %vm671, %v2470, 0
        %v2512 = vsel %vm671, %v2471, 0
        %v2515 = vsel %vm671, %v2472, 0
        %v2518 = vsel %vm671, %v2473, 0
        %v2521 = vsel %vm671, %v2474, 0
        %v2524 = vsel %vm720, %v2426, 0
        %2526 = vmatprep.subr.bf16.mxu0 0
        %2527 = vmatpush1.bf16.msra.mxu0 %v2524
        %2528 = vmatprep.subr.bf16.mxu0 0
        %2529 = vmatpush1.bf16.msra.mxu0 0
        %2530 = vmatprep.subr.bf16.mxu0 0
        %2531 = vmatpush1.bf16.msra.mxu0 0
        %2532 = vmatprep.subr.bf16.mxu0 0
        %2533 = vmatpush1.bf16.msra.mxu0 0
        %2534 = vmatprep.subr.bf16.mxu0 0
        %2535 = vmatpush1.bf16.msra.mxu0 0
        %2536 = vmatprep.subr.bf16.mxu0 0
        %2537 = vmatpush1.bf16.msra.mxu0 0
        %2538 = vmatprep.subr.bf16.mxu0 0
        %2539 = vmatpush1.bf16.msra.mxu0 0
        %2540 = vmatprep.subr.bf16.mxu0 0
        %2541 = vmatpush1.bf16.msra.mxu0 0
        %2542 = vmatprep.subr.bf16.mxu0 0
        %2543 = vmatpush1.bf16.msra.mxu0 0
        %2544 = vmatprep.subr.bf16.mxu0 0
        %2545 = vmatpush1.bf16.msra.mxu0 0
        %2546 = vmatprep.subr.bf16.mxu0 0
        %2547 = vmatpush1.bf16.msra.mxu0 0
        %2548 = vmatprep.subr.bf16.mxu0 0
        %2549 = vmatpush1.bf16.msra.mxu0 0
        %2550 = vmatprep.subr.bf16.mxu0 0
        %2551 = vmatpush1.bf16.msra.mxu0 0
        %2552 = vmatprep.subr.bf16.mxu0 0
        %2553 = vmatpush1.bf16.msra.mxu0 0
        %2554 = vmatprep.subr.bf16.mxu0 0
        %2555 = vmatpush1.bf16.msra.mxu0 0
        %2556 = vmatprep.subr.bf16.mxu0 0
        %2557 = vmatpush1.bf16.msra.mxu0 0
        %2558 = vmatprep.mubr.bf16.mxu0 0
        %2559 = vmatmul.mubr.bf16.gmra.mrb[0].mxu0 %v2476
        %v2560 = vpop.f32.mrb[0].mxu0
        %v2561 = vadd.f32 0.0, %v2560
        %v2562 = vpop.f32.mrb[0].mxu0
        %v2563 = vpop.f32.mrb[0].mxu0
        %v2564 = vadd.f32 0.0, %v2563
        %v2565 = vpop.f32.mrb[0].mxu0
        %2566 = vmatprep.mubr.bf16.mxu0 0
        %2567 = vmatmul.mubr.bf16.gmra.mrb[0].mxu0 %v2479
        %v2568 = vpop.f32.mrb[0].mxu0
        %v2569 = vadd.f32 0.0, %v2568
        %v2570 = vpop.f32.mrb[0].mxu0
        %v2571 = vpop.f32.mrb[0].mxu0
        %v2572 = vadd.f32 0.0, %v2571
        %v2573 = vpop.f32.mrb[0].mxu0
        %2574 = vmatprep.mubr.bf16.mxu0 0
        %2575 = vmatmul.mubr.bf16.gmra.mrb[0].mxu0 %v2482
        %v2576 = vpop.f32.mrb[0].mxu0
        %v2577 = vadd.f32 0.0, %v2576
        %v2578 = vpop.f32.mrb[0].mxu0
        %v2579 = vpop.f32.mrb[0].mxu0
        %v2580 = vadd.f32 0.0, %v2579
        %v2581 = vpop.f32.mrb[0].mxu0
        %2582 = vmatprep.mubr.bf16.mxu0 0
        %2583 = vmatmul.mubr.bf16.gmra.mrb[0].mxu0 %v2485
        %v2584 = vpop.f32.mrb[0].mxu0
        %v2585 = vadd.f32 0.0, %v2584
        %v2586 = vpop.f32.mrb[0].mxu0
        %v2587 = vpop.f32.mrb[0].mxu0
        %v2588 = vadd.f32 0.0, %v2587
        %v2589 = vpop.f32.mrb[0].mxu0
        %2590 = vmatprep.mubr.bf16.mxu0 0
        %2591 = vmatmul.mubr.bf16.gmra.mrb[0].mxu0 %v2488
        %v2592 = vpop.f32.mrb[0].mxu0
        %v2593 = vadd.f32 0.0, %v2592
        %v2594 = vpop.f32.mrb[0].mxu0
        %v2595 = vpop.f32.mrb[0].mxu0
        %v2596 = vadd.f32 0.0, %v2595
        %v2597 = vpop.f32.mrb[0].mxu0
        %2598 = vmatprep.mubr.bf16.mxu0 0
        %2599 = vmatmul.mubr.bf16.gmra.mrb[0].mxu0 %v2491
        %v2600 = vpop.f32.mrb[0].mxu0
        %v2601 = vadd.f32 0.0, %v2600
        %v2602 = vpop.f32.mrb[0].mxu0
        %v2603 = vpop.f32.mrb[0].mxu0
        %v2604 = vadd.f32 0.0, %v2603
        %v2605 = vpop.f32.mrb[0].mxu0
        %2606 = vmatprep.mubr.bf16.mxu0 0
        %2607 = vmatmul.mubr.bf16.gmra.mrb[0].mxu0 %v2494
        %v2608 = vpop.f32.mrb[0].mxu0
        %v2609 = vadd.f32 0.0, %v2608
        %v2610 = vpop.f32.mrb[0].mxu0
        %v2611 = vpop.f32.mrb[0].mxu0
        %v2612 = vadd.f32 0.0, %v2611
        %v2613 = vpop.f32.mrb[0].mxu0
        %2614 = vmatprep.mubr.bf16.mxu0 0
        %2615 = vmatmul.mubr.bf16.gmra.mrb[0].mxu0 %v2497
        %v2616 = vpop.f32.mrb[0].mxu0
        %v2617 = vadd.f32 0.0, %v2616
        %v2618 = vpop.f32.mrb[0].mxu0
        %v2619 = vpop.f32.mrb[0].mxu0
        %v2620 = vadd.f32 0.0, %v2619
        %v2621 = vpop.f32.mrb[0].mxu0
        %2622 = vmatprep.mubr.bf16.mxu0 0
        %2623 = vmatmul.mubr.bf16.gmra.mrb[0].mxu0 %v2500
        %v2624 = vpop.f32.mrb[0].mxu0
        %v2625 = vadd.f32 0.0, %v2624
        %v2626 = vpop.f32.mrb[0].mxu0
        %v2627 = vpop.f32.mrb[0].mxu0
        %v2628 = vadd.f32 0.0, %v2627
        %v2629 = vpop.f32.mrb[0].mxu0
        %2630 = vmatprep.mubr.bf16.mxu0 0
        %2631 = vmatmul.mubr.bf16.gmra.mrb[0].mxu0 %v2503
        %v2632 = vpop.f32.mrb[0].mxu0
        %v2633 = vadd.f32 0.0, %v2632
        %v2634 = vpop.f32.mrb[0].mxu0
        %v2635 = vpop.f32.mrb[0].mxu0
        %v2636 = vadd.f32 0.0, %v2635
        %v2637 = vpop.f32.mrb[0].mxu0
        %2638 = vmatprep.mubr.bf16.mxu0 0
        %2639 = vmatmul.mubr.bf16.gmra.mrb[0].mxu0 %v2506
        %v2640 = vpop.f32.mrb[0].mxu0
        %v2641 = vadd.f32 0.0, %v2640
        %v2642 = vpop.f32.mrb[0].mxu0
        %v2643 = vpop.f32.mrb[0].mxu0
        %v2644 = vadd.f32 0.0, %v2643
        %v2645 = vpop.f32.mrb[0].mxu0
        %2646 = vmatprep.mubr.bf16.mxu0 0
        %2647 = vmatmul.mubr.bf16.gmra.mrb[0].mxu0 %v2509
        %v2648 = vpop.f32.mrb[0].mxu0
        %v2649 = vadd.f32 0.0, %v2648
        %v2650 = vpop.f32.mrb[0].mxu0
        %v2651 = vpop.f32.mrb[0].mxu0
        %v2652 = vadd.f32 0.0, %v2651
        %v2653 = vpop.f32.mrb[0].mxu0
        %2654 = vmatprep.mubr.bf16.mxu0 0
        %2655 = vmatmul.mubr.bf16.gmra.mrb[0].mxu0 %v2512
        %v2656 = vpop.f32.mrb[0].mxu0
        %v2657 = vadd.f32 0.0, %v2656
        %v2658 = vpop.f32.mrb[0].mxu0
        %v2659 = vpop.f32.mrb[0].mxu0
        %v2660 = vadd.f32 0.0, %v2659
        %v2661 = vpop.f32.mrb[0].mxu0
        %2662 = vmatprep.mubr.bf16.mxu0 0
        %2663 = vmatmul.mubr.bf16.gmra.mrb[0].mxu0 %v2515
        %v2664 = vpop.f32.mrb[0].mxu0
        %v2665 = vadd.f32 0.0, %v2664
        %v2666 = vpop.f32.mrb[0].mxu0
        %v2667 = vpop.f32.mrb[0].mxu0
        %v2668 = vadd.f32 0.0, %v2667
        %v2669 = vpop.f32.mrb[0].mxu0
        %2670 = vmatprep.mubr.bf16.mxu0 0
        %2671 = vmatmul.mubr.bf16.gmra.mrb[0].mxu0 %v2518
        %v2672 = vpop.f32.mrb[0].mxu0
        %v2673 = vadd.f32 0.0, %v2672
        %v2674 = vpop.f32.mrb[0].mxu0
        %v2675 = vpop.f32.mrb[0].mxu0
        %v2676 = vadd.f32 0.0, %v2675
        %v2677 = vpop.f32.mrb[0].mxu0
        %2678 = vmatprep.mubr.bf16.mxu0 0
        %2679 = vmatmul.mubr.bf16.gmra.mrb[0].mxu0 %v2521
        %v2680 = vpop.f32.mrb[0].mxu0
        %v2681 = vadd.f32 0.0, %v2680
        %v2682 = vpop.f32.mrb[0].mxu0
        %v2683 = vpop.f32.mrb[0].mxu0
        %v2684 = vadd.f32 0.0, %v2683
        %v2685 = vpop.f32.mrb[0].mxu0
        %2686 = vdwg.mxu0
        %v2687 = vadd.f32 %v1961, %v2561
        %v2688 = vadd.f32 %v1962, %v2564
        %v2689 = vadd.f32 %v1963, %v2569
        %v2690 = vadd.f32 %v1964, %v2572
        %v2691 = vadd.f32 %v1965, %v2577
        %v2692 = vadd.f32 %v1966, %v2580
        %v2693 = vadd.f32 %v1967, %v2585
        %v2694 = vadd.f32 %v1968, %v2588
        %v2695 = vadd.f32 %v1969, %v2593
        %v2696 = vadd.f32 %v1970, %v2596
        %v2697 = vadd.f32 %v1971, %v2601
        %v2698 = vadd.f32 %v1972, %v2604
        %v2699 = vadd.f32 %v1973, %v2609
        %v2700 = vadd.f32 %v1974, %v2612
        %v2701 = vadd.f32 %v1975, %v2617
        %v2702 = vadd.f32 %v1976, %v2620
        %v2703 = vadd.f32 %v1977, %v2625
        %v2704 = vadd.f32 %v1978, %v2628
        %v2705 = vadd.f32 %v1979, %v2633
        %v2706 = vadd.f32 %v1980, %v2636
        %v2707 = vadd.f32 %v1981, %v2641
        %v2708 = vadd.f32 %v1982, %v2644
        %v2709 = vadd.f32 %v1983, %v2649
        %v2710 = vadd.f32 %v1984, %v2652
        %v2711 = vadd.f32 %v1985, %v2657
        %v2712 = vadd.f32 %v1986, %v2660
        %v2713 = vadd.f32 %v1987, %v2665
        %v2714 = vadd.f32 %v1988, %v2668
        %v2715 = vadd.f32 %v1989, %v2673
        %v2716 = vadd.f32 %v1990, %v2676
        %v2717 = vadd.f32 %v1991, %v2681
        %v2718 = vadd.f32 %v1992, %v2684
        %v2719 = vld [vmem:[%s1634] sm:$0xe]
        %v2720 = vld [vmem:[%s1634 + $0xc] sm:$0xe]
        %v2721 = vld [vmem:[%s1634 + $0x18] sm:$0xe]
        %v2722 = vld [vmem:[%s1634 + $0x24] sm:$0xe]
        %v2723 = vld [vmem:[%s1634 + $0x30] sm:$0xe]
        %v2724 = vld [vmem:[%s1634 + $0x3c] sm:$0xe]
        %v2725 = vld [vmem:[%s1634 + $0x48] sm:$0xe]
        %v2726 = vld [vmem:[%s1634 + $0x54] sm:$0xe]
        %v2727 = vld [vmem:[%s1634 + $0x60] sm:$0xe]
        %v2728 = vld [vmem:[%s1634 + $0x6c] sm:$0xe]
        %v2729 = vld [vmem:[%s1634 + $0x78] sm:$0xe]
        %v2730 = vld [vmem:[%s1634 + $0x84] sm:$0xe]
        %v2731 = vld [vmem:[%s1634 + $0x90] sm:$0xe]
        %v2732 = vld [vmem:[%s1634 + $0x9c] sm:$0xe]
        %v2733 = vld [vmem:[%s1634 + $0xa8] sm:$0xe]
        %v2734 = vld [vmem:[%s1634 + $0xb4] sm:$0xe]
        %v2783 = vrot.slane %v2719, 5
        %v2784 = vrot.slane %v2783, 4
        %v2785 = vrot.slane %v1994, 5
        %v2786 = vsel %vm1227, %v2784, %v2785
        %v2787 = vrot.slane %v2785, 4
        %v2788 = vrot.slane %v1995, 5
        %v2789 = vsel %vm1227, %v2787, %v2788
        %v2790 = vrot.slane %v2720, 5
        %v2791 = vrot.slane %v2790, 4
        %v2792 = vrot.slane %v1997, 5
        %v2793 = vsel %vm1227, %v2791, %v2792
        %v2794 = vrot.slane %v2792, 4
        %v2795 = vrot.slane %v1998, 5
        %v2796 = vsel %vm1227, %v2794, %v2795
        %v2797 = vrot.slane %v2721, 5
        %v2798 = vrot.slane %v2797, 4
        %v2799 = vrot.slane %v2000, 5
        %v2800 = vsel %vm1227, %v2798, %v2799
        %v2801 = vrot.slane %v2799, 4
        %v2802 = vrot.slane %v2001, 5
        %v2803 = vsel %vm1227, %v2801, %v2802
        %v2804 = vrot.slane %v2722, 5
        %v2805 = vrot.slane %v2804, 4
        %v2806 = vrot.slane %v2003, 5
        %v2807 = vsel %vm1227, %v2805, %v2806
        %v2808 = vrot.slane %v2806, 4
        %v2809 = vrot.slane %v2004, 5
        %v2810 = vsel %vm1227, %v2808, %v2809
        %v2811 = vrot.slane %v2723, 5
        %v2812 = vrot.slane %v2811, 4
        %v2813 = vrot.slane %v2006, 5
        %v2814 = vsel %vm1227, %v2812, %v2813
        %v2815 = vrot.slane %v2813, 4
        %v2816 = vrot.slane %v2007, 5
        %v2817 = vsel %vm1227, %v2815, %v2816
        %v2818 = vrot.slane %v2724, 5
        %v2819 = vrot.slane %v2818, 4
        %v2820 = vrot.slane %v2009, 5
        %v2821 = vsel %vm1227, %v2819, %v2820
        %v2822 = vrot.slane %v2820, 4
        %v2823 = vrot.slane %v2010, 5
        %v2824 = vsel %vm1227, %v2822, %v2823
        %v2825 = vrot.slane %v2725, 5
        %v2826 = vrot.slane %v2825, 4
        %v2827 = vrot.slane %v2012, 5
        %v2828 = vsel %vm1227, %v2826, %v2827
        %v2829 = vrot.slane %v2827, 4
        %v2830 = vrot.slane %v2013, 5
        %v2831 = vsel %vm1227, %v2829, %v2830
        %v2832 = vrot.slane %v2726, 5
        %v2833 = vrot.slane %v2832, 4
        %v2834 = vrot.slane %v2015, 5
        %v2835 = vsel %vm1227, %v2833, %v2834
        %v2836 = vrot.slane %v2834, 4
        %v2837 = vrot.slane %v2016, 5
        %v2838 = vsel %vm1227, %v2836, %v2837
        %v2839 = vrot.slane %v2727, 5
        %v2840 = vrot.slane %v2839, 4
        %v2841 = vrot.slane %v2018, 5
        %v2842 = vsel %vm1227, %v2840, %v2841
        %v2843 = vrot.slane %v2841, 4
        %v2844 = vrot.slane %v2019, 5
        %v2845 = vsel %vm1227, %v2843, %v2844
        %v2846 = vrot.slane %v2728, 5
        %v2847 = vrot.slane %v2846, 4
        %v2848 = vrot.slane %v2021, 5
        %v2849 = vsel %vm1227, %v2847, %v2848
        %v2850 = vrot.slane %v2848, 4
        %v2851 = vrot.slane %v2022, 5
        %v2852 = vsel %vm1227, %v2850, %v2851
        %v2853 = vrot.slane %v2729, 5
        %v2854 = vrot.slane %v2853, 4
        %v2855 = vrot.slane %v2024, 5
        %v2856 = vsel %vm1227, %v2854, %v2855
        %v2857 = vrot.slane %v2855, 4
        %v2858 = vrot.slane %v2025, 5
        %v2859 = vsel %vm1227, %v2857, %v2858
        %v2860 = vrot.slane %v2730, 5
        %v2861 = vrot.slane %v2860, 4
        %v2862 = vrot.slane %v2027, 5
        %v2863 = vsel %vm1227, %v2861, %v2862
        %v2864 = vrot.slane %v2862, 4
        %v2865 = vrot.slane %v2028, 5
        %v2866 = vsel %vm1227, %v2864, %v2865
        %v2867 = vrot.slane %v2731, 5
        %v2868 = vrot.slane %v2867, 4
        %v2869 = vrot.slane %v2030, 5
        %v2870 = vsel %vm1227, %v2868, %v2869
        %v2871 = vrot.slane %v2869, 4
        %v2872 = vrot.slane %v2031, 5
        %v2873 = vsel %vm1227, %v2871, %v2872
        %v2874 = vrot.slane %v2732, 5
        %v2875 = vrot.slane %v2874, 4
        %v2876 = vrot.slane %v2033, 5
        %v2877 = vsel %vm1227, %v2875, %v2876
        %v2878 = vrot.slane %v2876, 4
        %v2879 = vrot.slane %v2034, 5
        %v2880 = vsel %vm1227, %v2878, %v2879
        %v2881 = vrot.slane %v2733, 5
        %v2882 = vrot.slane %v2881, 4
        %v2883 = vrot.slane %v2036, 5
        %v2884 = vsel %vm1227, %v2882, %v2883
        %v2885 = vrot.slane %v2883, 4
        %v2886 = vrot.slane %v2037, 5
        %v2887 = vsel %vm1227, %v2885, %v2886
        %v2888 = vrot.slane %v2734, 5
        %v2889 = vrot.slane %v2888, 4
        %v2890 = vrot.slane %v2039, 5
        %v2891 = vsel %vm1227, %v2889, %v2890
        %v2892 = vrot.slane %v2890, 4
        %v2893 = vrot.slane %v2040, 5
        %v2894 = vsel %vm1227, %v2892, %v2893
        %s2895 = scalar_lea.vmem %s1, 10
        %v2896 = vld [vmem:[%s2895] sm:$0x3]
        %v2897 = vunpack.c.l.b16 %v2786
        %v2898 = vunpack.c.l.b16 %v2789
        %v2899 = vunpack.c.l.b16 %v2793
        %v2900 = vunpack.c.l.b16 %v2796
        %v2901 = vunpack.c.l.b16 %v2800
        %v2902 = vunpack.c.l.b16 %v2803
        %v2903 = vunpack.c.l.b16 %v2807
        %v2904 = vunpack.c.l.b16 %v2810
        %v2905 = vunpack.c.l.b16 %v2814
        %v2906 = vunpack.c.l.b16 %v2817
        %v2907 = vunpack.c.l.b16 %v2821
        %v2908 = vunpack.c.l.b16 %v2824
        %v2909 = vunpack.c.l.b16 %v2828
        %v2910 = vunpack.c.l.b16 %v2831
        %v2911 = vunpack.c.l.b16 %v2835
        %v2912 = vunpack.c.l.b16 %v2838
        %v2913 = vunpack.c.l.b16 %v2842
        %v2914 = vunpack.c.l.b16 %v2845
        %v2915 = vunpack.c.l.b16 %v2849
        %v2916 = vunpack.c.l.b16 %v2852
        %v2917 = vunpack.c.l.b16 %v2856
        %v2918 = vunpack.c.l.b16 %v2859
        %v2919 = vunpack.c.l.b16 %v2863
        %v2920 = vunpack.c.l.b16 %v2866
        %v2921 = vunpack.c.l.b16 %v2870
        %v2922 = vunpack.c.l.b16 %v2873
        %v2923 = vunpack.c.l.b16 %v2877
        %v2924 = vunpack.c.l.b16 %v2880
        %v2925 = vunpack.c.l.b16 %v2884
        %v2926 = vunpack.c.l.b16 %v2887
        %v2927 = vunpack.c.l.b16 %v2891
        %v2928 = vunpack.c.l.b16 %v2894
        %v2929 = vpack.c.b16 %v2898, %v2897
        %v2930 = vpack.c.b16 %v2900, %v2899
        %v2931 = vpack.c.b16 %v2902, %v2901
        %v2932 = vpack.c.b16 %v2904, %v2903
        %v2933 = vpack.c.b16 %v2906, %v2905
        %v2934 = vpack.c.b16 %v2908, %v2907
        %v2935 = vpack.c.b16 %v2910, %v2909
        %v2936 = vpack.c.b16 %v2912, %v2911
        %v2937 = vpack.c.b16 %v2914, %v2913
        %v2938 = vpack.c.b16 %v2916, %v2915
        %v2939 = vpack.c.b16 %v2918, %v2917
        %v2940 = vpack.c.b16 %v2920, %v2919
        %v2941 = vpack.c.b16 %v2922, %v2921
        %v2942 = vpack.c.b16 %v2924, %v2923
        %v2943 = vpack.c.b16 %v2926, %v2925
        %v2944 = vpack.c.b16 %v2928, %v2927
        %v2946 = vsel %vm671, %v2929, 0
        %v2949 = vsel %vm671, %v2930, 0
        %v2952 = vsel %vm671, %v2931, 0
        %v2955 = vsel %vm671, %v2932, 0
        %v2958 = vsel %vm671, %v2933, 0
        %v2961 = vsel %vm671, %v2934, 0
        %v2964 = vsel %vm671, %v2935, 0
        %v2967 = vsel %vm671, %v2936, 0
        %v2970 = vsel %vm671, %v2937, 0
        %v2973 = vsel %vm671, %v2938, 0
        %v2976 = vsel %vm671, %v2939, 0
        %v2979 = vsel %vm671, %v2940, 0
        %v2982 = vsel %vm671, %v2941, 0
        %v2985 = vsel %vm671, %v2942, 0
        %v2988 = vsel %vm671, %v2943, 0
        %v2991 = vsel %vm671, %v2944, 0
        %v2994 = vsel %vm720, %v2896, 0
        %2996 = vmatprep.subr.bf16.mxu0 0
        %2997 = vmatpush1.bf16.msra.mxu0 %v2994
        %2998 = vmatprep.subr.bf16.mxu0 0
        %2999 = vmatpush1.bf16.msra.mxu0 0
        %3000 = vmatprep.subr.bf16.mxu0 0
        %3001 = vmatpush1.bf16.msra.mxu0 0
        %3002 = vmatprep.subr.bf16.mxu0 0
        %3003 = vmatpush1.bf16.msra.mxu0 0
        %3004 = vmatprep.subr.bf16.mxu0 0
        %3005 = vmatpush1.bf16.msra.mxu0 0
        %3006 = vmatprep.subr.bf16.mxu0 0
        %3007 = vmatpush1.bf16.msra.mxu0 0
        %3008 = vmatprep.subr.bf16.mxu0 0
        %3009 = vmatpush1.bf16.msra.mxu0 0
        %3010 = vmatprep.subr.bf16.mxu0 0
        %3011 = vmatpush1.bf16.msra.mxu0 0
        %3012 = vmatprep.subr.bf16.mxu0 0
        %3013 = vmatpush1.bf16.msra.mxu0 0
        %3014 = vmatprep.subr.bf16.mxu0 0
        %3015 = vmatpush1.bf16.msra.mxu0 0
        %3016 = vmatprep.subr.bf16.mxu0 0
        %3017 = vmatpush1.bf16.msra.mxu0 0
        %3018 = vmatprep.subr.bf16.mxu0 0
        %3019 = vmatpush1.bf16.msra.mxu0 0
        %3020 = vmatprep.subr.bf16.mxu0 0
        %3021 = vmatpush1.bf16.msra.mxu0 0
        %3022 = vmatprep.subr.bf16.mxu0 0
        %3023 = vmatpush1.bf16.msra.mxu0 0
        %3024 = vmatprep.subr.bf16.mxu0 0
        %3025 = vmatpush1.bf16.msra.mxu0 0
        %3026 = vmatprep.subr.bf16.mxu0 0
        %3027 = vmatpush1.bf16.msra.mxu0 0
        %3028 = vmatprep.mubr.bf16.mxu0 0
        %3029 = vmatmul.mubr.bf16.gmra.mrb[0].mxu0 %v2946
        %v3030 = vpop.f32.mrb[0].mxu0
        %v3031 = vadd.f32 0.0, %v3030
        %v3032 = vpop.f32.mrb[0].mxu0
        %v3033 = vpop.f32.mrb[0].mxu0
        %v3034 = vadd.f32 0.0, %v3033
        %v3035 = vpop.f32.mrb[0].mxu0
        %3036 = vmatprep.mubr.bf16.mxu0 0
        %3037 = vmatmul.mubr.bf16.gmra.mrb[0].mxu0 %v2949
        %v3038 = vpop.f32.mrb[0].mxu0
        %v3039 = vadd.f32 0.0, %v3038
        %v3040 = vpop.f32.mrb[0].mxu0
        %v3041 = vpop.f32.mrb[0].mxu0
        %v3042 = vadd.f32 0.0, %v3041
        %v3043 = vpop.f32.mrb[0].mxu0
        %3044 = vmatprep.mubr.bf16.mxu0 0
        %3045 = vmatmul.mubr.bf16.gmra.mrb[0].mxu0 %v2952
        %v3046 = vpop.f32.mrb[0].mxu0
        %v3047 = vadd.f32 0.0, %v3046
        %v3048 = vpop.f32.mrb[0].mxu0
        %v3049 = vpop.f32.mrb[0].mxu0
        %v3050 = vadd.f32 0.0, %v3049
        %v3051 = vpop.f32.mrb[0].mxu0
        %3052 = vmatprep.mubr.bf16.mxu0 0
        %3053 = vmatmul.mubr.bf16.gmra.mrb[0].mxu0 %v2955
        %v3054 = vpop.f32.mrb[0].mxu0
        %v3055 = vadd.f32 0.0, %v3054
        %v3056 = vpop.f32.mrb[0].mxu0
        %v3057 = vpop.f32.mrb[0].mxu0
        %v3058 = vadd.f32 0.0, %v3057
        %v3059 = vpop.f32.mrb[0].mxu0
        %3060 = vmatprep.mubr.bf16.mxu0 0
        %3061 = vmatmul.mubr.bf16.gmra.mrb[0].mxu0 %v2958
        %v3062 = vpop.f32.mrb[0].mxu0
        %v3063 = vadd.f32 0.0, %v3062
        %v3064 = vpop.f32.mrb[0].mxu0
        %v3065 = vpop.f32.mrb[0].mxu0
        %v3066 = vadd.f32 0.0, %v3065
        %v3067 = vpop.f32.mrb[0].mxu0
        %3068 = vmatprep.mubr.bf16.mxu0 0
        %3069 = vmatmul.mubr.bf16.gmra.mrb[0].mxu0 %v2961
        %v3070 = vpop.f32.mrb[0].mxu0
        %v3071 = vadd.f32 0.0, %v3070
        %v3072 = vpop.f32.mrb[0].mxu0
        %v3073 = vpop.f32.mrb[0].mxu0
        %v3074 = vadd.f32 0.0, %v3073
        %v3075 = vpop.f32.mrb[0].mxu0
        %3076 = vmatprep.mubr.bf16.mxu0 0
        %3077 = vmatmul.mubr.bf16.gmra.mrb[0].mxu0 %v2964
        %v3078 = vpop.f32.mrb[0].mxu0
        %v3079 = vadd.f32 0.0, %v3078
        %v3080 = vpop.f32.mrb[0].mxu0
        %v3081 = vpop.f32.mrb[0].mxu0
        %v3082 = vadd.f32 0.0, %v3081
        %v3083 = vpop.f32.mrb[0].mxu0
        %3084 = vmatprep.mubr.bf16.mxu0 0
        %3085 = vmatmul.mubr.bf16.gmra.mrb[0].mxu0 %v2967
        %v3086 = vpop.f32.mrb[0].mxu0
        %v3087 = vadd.f32 0.0, %v3086
        %v3088 = vpop.f32.mrb[0].mxu0
        %v3089 = vpop.f32.mrb[0].mxu0
        %v3090 = vadd.f32 0.0, %v3089
        %v3091 = vpop.f32.mrb[0].mxu0
        %3092 = vmatprep.mubr.bf16.mxu0 0
        %3093 = vmatmul.mubr.bf16.gmra.mrb[0].mxu0 %v2970
        %v3094 = vpop.f32.mrb[0].mxu0
        %v3095 = vadd.f32 0.0, %v3094
        %v3096 = vpop.f32.mrb[0].mxu0
        %v3097 = vpop.f32.mrb[0].mxu0
        %v3098 = vadd.f32 0.0, %v3097
        %v3099 = vpop.f32.mrb[0].mxu0
        %3100 = vmatprep.mubr.bf16.mxu0 0
        %3101 = vmatmul.mubr.bf16.gmra.mrb[0].mxu0 %v2973
        %v3102 = vpop.f32.mrb[0].mxu0
        %v3103 = vadd.f32 0.0, %v3102
        %v3104 = vpop.f32.mrb[0].mxu0
        %v3105 = vpop.f32.mrb[0].mxu0
        %v3106 = vadd.f32 0.0, %v3105
        %v3107 = vpop.f32.mrb[0].mxu0
        %3108 = vmatprep.mubr.bf16.mxu0 0
        %3109 = vmatmul.mubr.bf16.gmra.mrb[0].mxu0 %v2976
        %v3110 = vpop.f32.mrb[0].mxu0
        %v3111 = vadd.f32 0.0, %v3110
        %v3112 = vpop.f32.mrb[0].mxu0
        %v3113 = vpop.f32.mrb[0].mxu0
        %v3114 = vadd.f32 0.0, %v3113
        %v3115 = vpop.f32.mrb[0].mxu0
        %3116 = vmatprep.mubr.bf16.mxu0 0
        %3117 = vmatmul.mubr.bf16.gmra.mrb[0].mxu0 %v2979
        %v3118 = vpop.f32.mrb[0].mxu0
        %v3119 = vadd.f32 0.0, %v3118
        %v3120 = vpop.f32.mrb[0].mxu0
        %v3121 = vpop.f32.mrb[0].mxu0
        %v3122 = vadd.f32 0.0, %v3121
        %v3123 = vpop.f32.mrb[0].mxu0
        %3124 = vmatprep.mubr.bf16.mxu0 0
        %3125 = vmatmul.mubr.bf16.gmra.mrb[0].mxu0 %v2982
        %v3126 = vpop.f32.mrb[0].mxu0
        %v3127 = vadd.f32 0.0, %v3126
        %v3128 = vpop.f32.mrb[0].mxu0
        %v3129 = vpop.f32.mrb[0].mxu0
        %v3130 = vadd.f32 0.0, %v3129
        %v3131 = vpop.f32.mrb[0].mxu0
        %3132 = vmatprep.mubr.bf16.mxu0 0
        %3133 = vmatmul.mubr.bf16.gmra.mrb[0].mxu0 %v2985
        %v3134 = vpop.f32.mrb[0].mxu0
        %v3135 = vadd.f32 0.0, %v3134
        %v3136 = vpop.f32.mrb[0].mxu0
        %v3137 = vpop.f32.mrb[0].mxu0
        %v3138 = vadd.f32 0.0, %v3137
        %v3139 = vpop.f32.mrb[0].mxu0
        %3140 = vmatprep.mubr.bf16.mxu0 0
        %3141 = vmatmul.mubr.bf16.gmra.mrb[0].mxu0 %v2988
        %v3142 = vpop.f32.mrb[0].mxu0
        %v3143 = vadd.f32 0.0, %v3142
        %v3144 = vpop.f32.mrb[0].mxu0
        %v3145 = vpop.f32.mrb[0].mxu0
        %v3146 = vadd.f32 0.0, %v3145
        %v3147 = vpop.f32.mrb[0].mxu0
        %3148 = vmatprep.mubr.bf16.mxu0 0
        %3149 = vmatmul.mubr.bf16.gmra.mrb[0].mxu0 %v2991
        %v3150 = vpop.f32.mrb[0].mxu0
        %v3151 = vadd.f32 0.0, %v3150
        %v3152 = vpop.f32.mrb[0].mxu0
        %v3153 = vpop.f32.mrb[0].mxu0
        %v3154 = vadd.f32 0.0, %v3153
        %v3155 = vpop.f32.mrb[0].mxu0
        %3156 = vdwg.mxu0
        %v3157 = vadd.f32 %v2687, %v3031
        %v3158 = vadd.f32 %v2688, %v3034
        %v3159 = vadd.f32 %v2689, %v3039
        %v3160 = vadd.f32 %v2690, %v3042
        %v3161 = vadd.f32 %v2691, %v3047
        %v3162 = vadd.f32 %v2692, %v3050
        %v3163 = vadd.f32 %v2693, %v3055
        %v3164 = vadd.f32 %v2694, %v3058
        %v3165 = vadd.f32 %v2695, %v3063
        %v3166 = vadd.f32 %v2696, %v3066
        %v3167 = vadd.f32 %v2697, %v3071
        %v3168 = vadd.f32 %v2698, %v3074
        %v3169 = vadd.f32 %v2699, %v3079
        %v3170 = vadd.f32 %v2700, %v3082
        %v3171 = vadd.f32 %v2701, %v3087
        %v3172 = vadd.f32 %v2702, %v3090
        %v3173 = vadd.f32 %v2703, %v3095
        %v3174 = vadd.f32 %v2704, %v3098
        %v3175 = vadd.f32 %v2705, %v3103
        %v3176 = vadd.f32 %v2706, %v3106
        %v3177 = vadd.f32 %v2707, %v3111
        %v3178 = vadd.f32 %v2708, %v3114
        %v3179 = vadd.f32 %v2709, %v3119
        %v3180 = vadd.f32 %v2710, %v3122
        %v3181 = vadd.f32 %v2711, %v3127
        %v3182 = vadd.f32 %v2712, %v3130
        %v3183 = vadd.f32 %v2713, %v3135
        %v3184 = vadd.f32 %v2714, %v3138
        %v3185 = vadd.f32 %v2715, %v3143
        %v3186 = vadd.f32 %v2716, %v3146
        %v3187 = vadd.f32 %v2717, %v3151
        %v3188 = vadd.f32 %v2718, %v3154
        %s3189 = scalar_lea.vmem %s182, 24
        %v3190 = vld [vmem:[%s3189] sm:$0xf]
        %v3191 = vld [vmem:[%s3189 + $0x4] sm:$0xf]
        %v3192 = vld [vmem:[%s3189 + $0xc] sm:$0xf]
        %v3193 = vld [vmem:[%s3189 + $0x10] sm:$0xf]
        %v3194 = vld [vmem:[%s3189 + $0x18] sm:$0xf]
        %v3195 = vld [vmem:[%s3189 + $0x1c] sm:$0xf]
        %v3196 = vld [vmem:[%s3189 + $0x24] sm:$0xf]
        %v3197 = vld [vmem:[%s3189 + $0x28] sm:$0xf]
        %v3198 = vld [vmem:[%s3189 + $0x30] sm:$0xf]
        %v3199 = vld [vmem:[%s3189 + $0x34] sm:$0xf]
        %v3200 = vld [vmem:[%s3189 + $0x3c] sm:$0xf]
        %v3201 = vld [vmem:[%s3189 + $0x40] sm:$0xf]
        %v3202 = vld [vmem:[%s3189 + $0x48] sm:$0xf]
        %v3203 = vld [vmem:[%s3189 + $0x4c] sm:$0xf]
        %v3204 = vld [vmem:[%s3189 + $0x54] sm:$0xf]
        %v3205 = vld [vmem:[%s3189 + $0x58] sm:$0xf]
        %v3206 = vld [vmem:[%s3189 + $0x60] sm:$0xf]
        %v3207 = vld [vmem:[%s3189 + $0x64] sm:$0xf]
        %v3208 = vld [vmem:[%s3189 + $0x6c] sm:$0xf]
        %v3209 = vld [vmem:[%s3189 + $0x70] sm:$0xf]
        %v3210 = vld [vmem:[%s3189 + $0x78] sm:$0xf]
        %v3211 = vld [vmem:[%s3189 + $0x7c] sm:$0xf]
        %v3212 = vld [vmem:[%s3189 + $0x84] sm:$0xf]
        %v3213 = vld [vmem:[%s3189 + $0x88] sm:$0xf]
        %v3214 = vld [vmem:[%s3189 + $0x90] sm:$0xf]
        %v3215 = vld [vmem:[%s3189 + $0x94] sm:$0xf]
        %v3216 = vld [vmem:[%s3189 + $0x9c] sm:$0xf]
        %v3217 = vld [vmem:[%s3189 + $0xa0] sm:$0xf]
        %v3218 = vld [vmem:[%s3189 + $0xa8] sm:$0xf]
        %v3219 = vld [vmem:[%s3189 + $0xac] sm:$0xf]
        %v3220 = vld [vmem:[%s3189 + $0xb4] sm:$0xf]
        %v3221 = vld [vmem:[%s3189 + $0xb8] sm:$0xf]
        %s3222 = scalar_lea.vmem %s1, 12
        %v3223 = vld [vmem:[%s3222] sm:$0x3]
        %v3256 = vunpack.c.l.b16 %v3190
        %v3257 = vunpack.c.l.b16 %v3191
        %v3258 = vunpack.c.l.b16 %v3192
        %v3259 = vunpack.c.l.b16 %v3193
        %v3260 = vunpack.c.l.b16 %v3194
        %v3261 = vunpack.c.l.b16 %v3195
        %v3262 = vunpack.c.l.b16 %v3196
        %v3263 = vunpack.c.l.b16 %v3197
        %v3264 = vunpack.c.l.b16 %v3198
        %v3265 = vunpack.c.l.b16 %v3199
        %v3266 = vunpack.c.l.b16 %v3200
        %v3267 = vunpack.c.l.b16 %v3201
        %v3268 = vunpack.c.l.b16 %v3202
        %v3269 = vunpack.c.l.b16 %v3203
        %v3270 = vunpack.c.l.b16 %v3204
        %v3271 = vunpack.c.l.b16 %v3205
        %v3272 = vunpack.c.l.b16 %v3206
        %v3273 = vunpack.c.l.b16 %v3207
        %v3274 = vunpack.c.l.b16 %v3208
        %v3275 = vunpack.c.l.b16 %v3209
        %v3276 = vunpack.c.l.b16 %v3210
        %v3277 = vunpack.c.l.b16 %v3211
        %v3278 = vunpack.c.l.b16 %v3212
        %v3279 = vunpack.c.l.b16 %v3213
        %v3280 = vunpack.c.l.b16 %v3214
        %v3281 = vunpack.c.l.b16 %v3215
        %v3282 = vunpack.c.l.b16 %v3216
        %v3283 = vunpack.c.l.b16 %v3217
        %v3284 = vunpack.c.l.b16 %v3218
        %v3285 = vunpack.c.l.b16 %v3219
        %v3286 = vunpack.c.l.b16 %v3220
        %v3287 = vunpack.c.l.b16 %v3221
        %v3288 = vpack.c.b16 %v3257, %v3256
        %v3289 = vpack.c.b16 %v3259, %v3258
        %v3290 = vpack.c.b16 %v3261, %v3260
        %v3291 = vpack.c.b16 %v3263, %v3262
        %v3292 = vpack.c.b16 %v3265, %v3264
        %v3293 = vpack.c.b16 %v3267, %v3266
        %v3294 = vpack.c.b16 %v3269, %v3268
        %v3295 = vpack.c.b16 %v3271, %v3270
        %v3296 = vpack.c.b16 %v3273, %v3272
        %v3297 = vpack.c.b16 %v3275, %v3274
        %v3298 = vpack.c.b16 %v3277, %v3276
        %v3299 = vpack.c.b16 %v3279, %v3278
        %v3300 = vpack.c.b16 %v3281, %v3280
        %v3301 = vpack.c.b16 %v3283, %v3282
        %v3302 = vpack.c.b16 %v3285, %v3284
        %v3303 = vpack.c.b16 %v3287, %v3286
        %v3305 = vsel %vm671, %v3288, 0
        %v3308 = vsel %vm671, %v3289, 0
        %v3311 = vsel %vm671, %v3290, 0
        %v3314 = vsel %vm671, %v3291, 0
        %v3317 = vsel %vm671, %v3292, 0
        %v3320 = vsel %vm671, %v3293, 0
        %v3323 = vsel %vm671, %v3294, 0
        %v3326 = vsel %vm671, %v3295, 0
        %v3329 = vsel %vm671, %v3296, 0
        %v3332 = vsel %vm671, %v3297, 0
        %v3335 = vsel %vm671, %v3298, 0
        %v3338 = vsel %vm671, %v3299, 0
        %v3341 = vsel %vm671, %v3300, 0
        %v3344 = vsel %vm671, %v3301, 0
        %v3347 = vsel %vm671, %v3302, 0
        %v3350 = vsel %vm671, %v3303, 0
        %v3353 = vsel %vm720, %v3223, 0
        %3355 = vmatprep.subr.bf16.mxu0 0
        %3356 = vmatpush1.bf16.msra.mxu0 %v3353
        %3357 = vmatprep.subr.bf16.mxu0 0
        %3358 = vmatpush1.bf16.msra.mxu0 0
        %3359 = vmatprep.subr.bf16.mxu0 0
        %3360 = vmatpush1.bf16.msra.mxu0 0
        %3361 = vmatprep.subr.bf16.mxu0 0
        %3362 = vmatpush1.bf16.msra.mxu0 0
        %3363 = vmatprep.subr.bf16.mxu0 0
        %3364 = vmatpush1.bf16.msra.mxu0 0
        %3365 = vmatprep.subr.bf16.mxu0 0
        %3366 = vmatpush1.bf16.msra.mxu0 0
        %3367 = vmatprep.subr.bf16.mxu0 0
        %3368 = vmatpush1.bf16.msra.mxu0 0
        %3369 = vmatprep.subr.bf16.mxu0 0
        %3370 = vmatpush1.bf16.msra.mxu0 0
        %3371 = vmatprep.subr.bf16.mxu0 0
        %3372 = vmatpush1.bf16.msra.mxu0 0
        %3373 = vmatprep.subr.bf16.mxu0 0
        %3374 = vmatpush1.bf16.msra.mxu0 0
        %3375 = vmatprep.subr.bf16.mxu0 0
        %3376 = vmatpush1.bf16.msra.mxu0 0
        %3377 = vmatprep.subr.bf16.mxu0 0
        %3378 = vmatpush1.bf16.msra.mxu0 0
        %3379 = vmatprep.subr.bf16.mxu0 0
        %3380 = vmatpush1.bf16.msra.mxu0 0
        %3381 = vmatprep.subr.bf16.mxu0 0
        %3382 = vmatpush1.bf16.msra.mxu0 0
        %3383 = vmatprep.subr.bf16.mxu0 0
        %3384 = vmatpush1.bf16.msra.mxu0 0
        %3385 = vmatprep.subr.bf16.mxu0 0
        %3386 = vmatpush1.bf16.msra.mxu0 0
        %3387 = vmatprep.mubr.bf16.mxu0 0
        %3388 = vmatmul.mubr.bf16.gmra.mrb[0].mxu0 %v3305
        %v3389 = vpop.f32.mrb[0].mxu0
        %v3390 = vadd.f32 0.0, %v3389
        %v3391 = vpop.f32.mrb[0].mxu0
        %v3392 = vpop.f32.mrb[0].mxu0
        %v3393 = vadd.f32 0.0, %v3392
        %v3394 = vpop.f32.mrb[0].mxu0
        %3395 = vmatprep.mubr.bf16.mxu0 0
        %3396 = vmatmul.mubr.bf16.gmra.mrb[0].mxu0 %v3308
        %v3397 = vpop.f32.mrb[0].mxu0
        %v3398 = vadd.f32 0.0, %v3397
        %v3399 = vpop.f32.mrb[0].mxu0
        %v3400 = vpop.f32.mrb[0].mxu0
        %v3401 = vadd.f32 0.0, %v3400
        %v3402 = vpop.f32.mrb[0].mxu0
        %3403 = vmatprep.mubr.bf16.mxu0 0
        %3404 = vmatmul.mubr.bf16.gmra.mrb[0].mxu0 %v3311
        %v3405 = vpop.f32.mrb[0].mxu0
        %v3406 = vadd.f32 0.0, %v3405
        %v3407 = vpop.f32.mrb[0].mxu0
        %v3408 = vpop.f32.mrb[0].mxu0
        %v3409 = vadd.f32 0.0, %v3408
        %v3410 = vpop.f32.mrb[0].mxu0
        %3411 = vmatprep.mubr.bf16.mxu0 0
        %3412 = vmatmul.mubr.bf16.gmra.mrb[0].mxu0 %v3314
        %v3413 = vpop.f32.mrb[0].mxu0
        %v3414 = vadd.f32 0.0, %v3413
        %v3415 = vpop.f32.mrb[0].mxu0
        %v3416 = vpop.f32.mrb[0].mxu0
        %v3417 = vadd.f32 0.0, %v3416
        %v3418 = vpop.f32.mrb[0].mxu0
        %3419 = vmatprep.mubr.bf16.mxu0 0
        %3420 = vmatmul.mubr.bf16.gmra.mrb[0].mxu0 %v3317
        %v3421 = vpop.f32.mrb[0].mxu0
        %v3422 = vadd.f32 0.0, %v3421
        %v3423 = vpop.f32.mrb[0].mxu0
        %v3424 = vpop.f32.mrb[0].mxu0
        %v3425 = vadd.f32 0.0, %v3424
        %v3426 = vpop.f32.mrb[0].mxu0
        %3427 = vmatprep.mubr.bf16.mxu0 0
        %3428 = vmatmul.mubr.bf16.gmra.mrb[0].mxu0 %v3320
        %v3429 = vpop.f32.mrb[0].mxu0
        %v3430 = vadd.f32 0.0, %v3429
        %v3431 = vpop.f32.mrb[0].mxu0
        %v3432 = vpop.f32.mrb[0].mxu0
        %v3433 = vadd.f32 0.0, %v3432
        %v3434 = vpop.f32.mrb[0].mxu0
        %3435 = vmatprep.mubr.bf16.mxu0 0
        %3436 = vmatmul.mubr.bf16.gmra.mrb[0].mxu0 %v3323
        %v3437 = vpop.f32.mrb[0].mxu0
        %v3438 = vadd.f32 0.0, %v3437
        %v3439 = vpop.f32.mrb[0].mxu0
        %v3440 = vpop.f32.mrb[0].mxu0
        %v3441 = vadd.f32 0.0, %v3440
        %v3442 = vpop.f32.mrb[0].mxu0
        %3443 = vmatprep.mubr.bf16.mxu0 0
        %3444 = vmatmul.mubr.bf16.gmra.mrb[0].mxu0 %v3326
        %v3445 = vpop.f32.mrb[0].mxu0
        %v3446 = vadd.f32 0.0, %v3445
        %v3447 = vpop.f32.mrb[0].mxu0
        %v3448 = vpop.f32.mrb[0].mxu0
        %v3449 = vadd.f32 0.0, %v3448
        %v3450 = vpop.f32.mrb[0].mxu0
        %3451 = vmatprep.mubr.bf16.mxu0 0
        %3452 = vmatmul.mubr.bf16.gmra.mrb[0].mxu0 %v3329
        %v3453 = vpop.f32.mrb[0].mxu0
        %v3454 = vadd.f32 0.0, %v3453
        %v3455 = vpop.f32.mrb[0].mxu0
        %v3456 = vpop.f32.mrb[0].mxu0
        %v3457 = vadd.f32 0.0, %v3456
        %v3458 = vpop.f32.mrb[0].mxu0
        %3459 = vmatprep.mubr.bf16.mxu0 0
        %3460 = vmatmul.mubr.bf16.gmra.mrb[0].mxu0 %v3332
        %v3461 = vpop.f32.mrb[0].mxu0
        %v3462 = vadd.f32 0.0, %v3461
        %v3463 = vpop.f32.mrb[0].mxu0
        %v3464 = vpop.f32.mrb[0].mxu0
        %v3465 = vadd.f32 0.0, %v3464
        %v3466 = vpop.f32.mrb[0].mxu0
        %3467 = vmatprep.mubr.bf16.mxu0 0
        %3468 = vmatmul.mubr.bf16.gmra.mrb[0].mxu0 %v3335
        %v3469 = vpop.f32.mrb[0].mxu0
        %v3470 = vadd.f32 0.0, %v3469
        %v3471 = vpop.f32.mrb[0].mxu0
        %v3472 = vpop.f32.mrb[0].mxu0
        %v3473 = vadd.f32 0.0, %v3472
        %v3474 = vpop.f32.mrb[0].mxu0
        %3475 = vmatprep.mubr.bf16.mxu0 0
        %3476 = vmatmul.mubr.bf16.gmra.mrb[0].mxu0 %v3338
        %v3477 = vpop.f32.mrb[0].mxu0
        %v3478 = vadd.f32 0.0, %v3477
        %v3479 = vpop.f32.mrb[0].mxu0
        %v3480 = vpop.f32.mrb[0].mxu0
        %v3481 = vadd.f32 0.0, %v3480
        %v3482 = vpop.f32.mrb[0].mxu0
        %3483 = vmatprep.mubr.bf16.mxu0 0
        %3484 = vmatmul.mubr.bf16.gmra.mrb[0].mxu0 %v3341
        %v3485 = vpop.f32.mrb[0].mxu0
        %v3486 = vadd.f32 0.0, %v3485
        %v3487 = vpop.f32.mrb[0].mxu0
        %v3488 = vpop.f32.mrb[0].mxu0
        %v3489 = vadd.f32 0.0, %v3488
        %v3490 = vpop.f32.mrb[0].mxu0
        %3491 = vmatprep.mubr.bf16.mxu0 0
        %3492 = vmatmul.mubr.bf16.gmra.mrb[0].mxu0 %v3344
        %v3493 = vpop.f32.mrb[0].mxu0
        %v3494 = vadd.f32 0.0, %v3493
        %v3495 = vpop.f32.mrb[0].mxu0
        %v3496 = vpop.f32.mrb[0].mxu0
        %v3497 = vadd.f32 0.0, %v3496
        %v3498 = vpop.f32.mrb[0].mxu0
        %3499 = vmatprep.mubr.bf16.mxu0 0
        %3500 = vmatmul.mubr.bf16.gmra.mrb[0].mxu0 %v3347
        %v3501 = vpop.f32.mrb[0].mxu0
        %v3502 = vadd.f32 0.0, %v3501
        %v3503 = vpop.f32.mrb[0].mxu0
        %v3504 = vpop.f32.mrb[0].mxu0
        %v3505 = vadd.f32 0.0, %v3504
        %v3506 = vpop.f32.mrb[0].mxu0
        %3507 = vmatprep.mubr.bf16.mxu0 0
        %3508 = vmatmul.mubr.bf16.gmra.mrb[0].mxu0 %v3350
        %v3509 = vpop.f32.mrb[0].mxu0
        %v3510 = vadd.f32 0.0, %v3509
        %v3511 = vpop.f32.mrb[0].mxu0
        %v3512 = vpop.f32.mrb[0].mxu0
        %v3513 = vadd.f32 0.0, %v3512
        %v3514 = vpop.f32.mrb[0].mxu0
        %3515 = vdwg.mxu0
        %v3516 = vadd.f32 %v3157, %v3390
        %v3517 = vadd.f32 %v3158, %v3393
        %v3518 = vadd.f32 %v3159, %v3398
        %v3519 = vadd.f32 %v3160, %v3401
        %v3520 = vadd.f32 %v3161, %v3406
        %v3521 = vadd.f32 %v3162, %v3409
        %v3522 = vadd.f32 %v3163, %v3414
        %v3523 = vadd.f32 %v3164, %v3417
        %v3524 = vadd.f32 %v3165, %v3422
        %v3525 = vadd.f32 %v3166, %v3425
        %v3526 = vadd.f32 %v3167, %v3430
        %v3527 = vadd.f32 %v3168, %v3433
        %v3528 = vadd.f32 %v3169, %v3438
        %v3529 = vadd.f32 %v3170, %v3441
        %v3530 = vadd.f32 %v3171, %v3446
        %v3531 = vadd.f32 %v3172, %v3449
        %v3532 = vadd.f32 %v3173, %v3454
        %v3533 = vadd.f32 %v3174, %v3457
        %v3534 = vadd.f32 %v3175, %v3462
        %v3535 = vadd.f32 %v3176, %v3465
        %v3536 = vadd.f32 %v3177, %v3470
        %v3537 = vadd.f32 %v3178, %v3473
        %v3538 = vadd.f32 %v3179, %v3478
        %v3539 = vadd.f32 %v3180, %v3481
        %v3540 = vadd.f32 %v3181, %v3486
        %v3541 = vadd.f32 %v3182, %v3489
        %v3542 = vadd.f32 %v3183, %v3494
        %v3543 = vadd.f32 %v3184, %v3497
        %v3544 = vadd.f32 %v3185, %v3502
        %v3545 = vadd.f32 %v3186, %v3505
        %v3546 = vadd.f32 %v3187, %v3510
        %v3547 = vadd.f32 %v3188, %v3513
        %v3548 = vld [vmem:[%s3189] sm:$0xf]
        %v3549 = vld [vmem:[%s3189 + $0x4] sm:$0xf]
        %v3550 = vld [vmem:[%s3189 + $0x8] sm:$0x1]
        %v3551 = vld [vmem:[%s3189 + $0xc] sm:$0xf]
        %v3552 = vld [vmem:[%s3189 + $0x10] sm:$0xf]
        %v3553 = vld [vmem:[%s3189 + $0x14] sm:$0x1]
        %v3554 = vld [vmem:[%s3189 + $0x18] sm:$0xf]
        %v3555 = vld [vmem:[%s3189 + $0x1c] sm:$0xf]
        %v3556 = vld [vmem:[%s3189 + $0x20] sm:$0x1]
        %v3557 = vld [vmem:[%s3189 + $0x24] sm:$0xf]
        %v3558 = vld [vmem:[%s3189 + $0x28] sm:$0xf]
        %v3559 = vld [vmem:[%s3189 + $0x2c] sm:$0x1]
        %v3560 = vld [vmem:[%s3189 + $0x30] sm:$0xf]
        %v3561 = vld [vmem:[%s3189 + $0x34] sm:$0xf]
        %v3562 = vld [vmem:[%s3189 + $0x38] sm:$0x1]
        %v3563 = vld [vmem:[%s3189 + $0x3c] sm:$0xf]
        %v3564 = vld [vmem:[%s3189 + $0x40] sm:$0xf]
        %v3565 = vld [vmem:[%s3189 + $0x44] sm:$0x1]
        %v3566 = vld [vmem:[%s3189 + $0x48] sm:$0xf]
        %v3567 = vld [vmem:[%s3189 + $0x4c] sm:$0xf]
        %v3568 = vld [vmem:[%s3189 + $0x50] sm:$0x1]
        %v3569 = vld [vmem:[%s3189 + $0x54] sm:$0xf]
        %v3570 = vld [vmem:[%s3189 + $0x58] sm:$0xf]
        %v3571 = vld [vmem:[%s3189 + $0x5c] sm:$0x1]
        %v3572 = vld [vmem:[%s3189 + $0x60] sm:$0xf]
        %v3573 = vld [vmem:[%s3189 + $0x64] sm:$0xf]
        %v3574 = vld [vmem:[%s3189 + $0x68] sm:$0x1]
        %v3575 = vld [vmem:[%s3189 + $0x6c] sm:$0xf]
        %v3576 = vld [vmem:[%s3189 + $0x70] sm:$0xf]
        %v3577 = vld [vmem:[%s3189 + $0x74] sm:$0x1]
        %v3578 = vld [vmem:[%s3189 + $0x78] sm:$0xf]
        %v3579 = vld [vmem:[%s3189 + $0x7c] sm:$0xf]
        %v3580 = vld [vmem:[%s3189 + $0x80] sm:$0x1]
        %v3581 = vld [vmem:[%s3189 + $0x84] sm:$0xf]
        %v3582 = vld [vmem:[%s3189 + $0x88] sm:$0xf]
        %v3583 = vld [vmem:[%s3189 + $0x8c] sm:$0x1]
        %v3584 = vld [vmem:[%s3189 + $0x90] sm:$0xf]
        %v3585 = vld [vmem:[%s3189 + $0x94] sm:$0xf]
        %v3586 = vld [vmem:[%s3189 + $0x98] sm:$0x1]
        %v3587 = vld [vmem:[%s3189 + $0x9c] sm:$0xf]
        %v3588 = vld [vmem:[%s3189 + $0xa0] sm:$0xf]
        %v3589 = vld [vmem:[%s3189 + $0xa4] sm:$0x1]
        %v3590 = vld [vmem:[%s3189 + $0xa8] sm:$0xf]
        %v3591 = vld [vmem:[%s3189 + $0xac] sm:$0xf]
        %v3592 = vld [vmem:[%s3189 + $0xb0] sm:$0x1]
        %v3593 = vld [vmem:[%s3189 + $0xb4] sm:$0xf]
        %v3594 = vld [vmem:[%s3189 + $0xb8] sm:$0xf]
        %v3595 = vld [vmem:[%s3189 + $0xbc] sm:$0x1]
        %v3597 = vshrl.u32 %v3548, 16
        %v3599 = vrot.slane %v3597, 4
        %v3600 = vshll.u32 %v3548, 16
        %v3602 = vrot.slane %v3600, 5
        %v3603 = vor.u32 %v3599, %v3602
        %v3604 = vrot.slane %v3603, 4
        %v3606 = vshll.u32 %v3549, 16
        %v3608 = vrot.slane %v3606, 5
        %v3609 = vsel %vm236, %v3604, %v3608
        %v3610 = vshrl.u32 %v3549, 16
        %v3612 = vrot.slane %v3610, 4
        %v3613 = vor.u32 %v3612, %v3608
        %v3614 = vrot.slane %v3613, 4
        %v3616 = vshll.u32 %v3550, 16
        %v3618 = vrot.slane %v3616, 5
        %v3619 = vsel %vm236, %v3614, %v3618
        %v3621 = vshrl.u32 %v3551, 16
        %v3623 = vrot.slane %v3621, 4
        %v3624 = vshll.u32 %v3551, 16
        %v3626 = vrot.slane %v3624, 5
        %v3627 = vor.u32 %v3623, %v3626
        %v3628 = vrot.slane %v3627, 4
        %v3630 = vshll.u32 %v3552, 16
        %v3632 = vrot.slane %v3630, 5
        %v3633 = vsel %vm236, %v3628, %v3632
        %v3634 = vshrl.u32 %v3552, 16
        %v3636 = vrot.slane %v3634, 4
        %v3637 = vor.u32 %v3636, %v3632
        %v3638 = vrot.slane %v3637, 4
        %v3640 = vshll.u32 %v3553, 16
        %v3642 = vrot.slane %v3640, 5
        %v3643 = vsel %vm236, %v3638, %v3642
        %v3645 = vshrl.u32 %v3554, 16
        %v3647 = vrot.slane %v3645, 4
        %v3648 = vshll.u32 %v3554, 16
        %v3650 = vrot.slane %v3648, 5
        %v3651 = vor.u32 %v3647, %v3650
        %v3652 = vrot.slane %v3651, 4
        %v3654 = vshll.u32 %v3555, 16
        %v3656 = vrot.slane %v3654, 5
        %v3657 = vsel %vm236, %v3652, %v3656
        %v3658 = vshrl.u32 %v3555, 16
        %v3660 = vrot.slane %v3658, 4
        %v3661 = vor.u32 %v3660, %v3656
        %v3662 = vrot.slane %v3661, 4
        %v3664 = vshll.u32 %v3556, 16
        %v3666 = vrot.slane %v3664, 5
        %v3667 = vsel %vm236, %v3662, %v3666
        %v3669 = vshrl.u32 %v3557, 16
        %v3671 = vrot.slane %v3669, 4
        %v3672 = vshll.u32 %v3557, 16
        %v3674 = vrot.slane %v3672, 5
        %v3675 = vor.u32 %v3671, %v3674
        %v3676 = vrot.slane %v3675, 4
        %v3678 = vshll.u32 %v3558, 16
        %v3680 = vrot.slane %v3678, 5
        %v3681 = vsel %vm236, %v3676, %v3680
        %v3682 = vshrl.u32 %v3558, 16
        %v3684 = vrot.slane %v3682, 4
        %v3685 = vor.u32 %v3684, %v3680
        %v3686 = vrot.slane %v3685, 4
        %v3688 = vshll.u32 %v3559, 16
        %v3690 = vrot.slane %v3688, 5
        %v3691 = vsel %vm236, %v3686, %v3690
        %v3693 = vshrl.u32 %v3560, 16
        %v3695 = vrot.slane %v3693, 4
        %v3696 = vshll.u32 %v3560, 16
        %v3698 = vrot.slane %v3696, 5
        %v3699 = vor.u32 %v3695, %v3698
        %v3700 = vrot.slane %v3699, 4
        %v3702 = vshll.u32 %v3561, 16
        %v3704 = vrot.slane %v3702, 5
        %v3705 = vsel %vm236, %v3700, %v3704
        %v3706 = vshrl.u32 %v3561, 16
        %v3708 = vrot.slane %v3706, 4
        %v3709 = vor.u32 %v3708, %v3704
        %v3710 = vrot.slane %v3709, 4
        %v3712 = vshll.u32 %v3562, 16
        %v3714 = vrot.slane %v3712, 5
        %v3715 = vsel %vm236, %v3710, %v3714
        %v3717 = vshrl.u32 %v3563, 16
        %v3719 = vrot.slane %v3717, 4
        %v3720 = vshll.u32 %v3563, 16
        %v3722 = vrot.slane %v3720, 5
        %v3723 = vor.u32 %v3719, %v3722
        %v3724 = vrot.slane %v3723, 4
        %v3726 = vshll.u32 %v3564, 16
        %v3728 = vrot.slane %v3726, 5
        %v3729 = vsel %vm236, %v3724, %v3728
        %v3730 = vshrl.u32 %v3564, 16
        %v3732 = vrot.slane %v3730, 4
        %v3733 = vor.u32 %v3732, %v3728
        %v3734 = vrot.slane %v3733, 4
        %v3736 = vshll.u32 %v3565, 16
        %v3738 = vrot.slane %v3736, 5
        %v3739 = vsel %vm236, %v3734, %v3738
        %v3741 = vshrl.u32 %v3566, 16
        %v3743 = vrot.slane %v3741, 4
        %v3744 = vshll.u32 %v3566, 16
        %v3746 = vrot.slane %v3744, 5
        %v3747 = vor.u32 %v3743, %v3746
        %v3748 = vrot.slane %v3747, 4
        %v3750 = vshll.u32 %v3567, 16
        %v3752 = vrot.slane %v3750, 5
        %v3753 = vsel %vm236, %v3748, %v3752
        %v3754 = vshrl.u32 %v3567, 16
        %v3756 = vrot.slane %v3754, 4
        %v3757 = vor.u32 %v3756, %v3752
        %v3758 = vrot.slane %v3757, 4
        %v3760 = vshll.u32 %v3568, 16
        %v3762 = vrot.slane %v3760, 5
        %v3763 = vsel %vm236, %v3758, %v3762
        %v3765 = vshrl.u32 %v3569, 16
        %v3767 = vrot.slane %v3765, 4
        %v3768 = vshll.u32 %v3569, 16
        %v3770 = vrot.slane %v3768, 5
        %v3771 = vor.u32 %v3767, %v3770
        %v3772 = vrot.slane %v3771, 4
        %v3774 = vshll.u32 %v3570, 16
        %v3776 = vrot.slane %v3774, 5
        %v3777 = vsel %vm236, %v3772, %v3776
        %v3778 = vshrl.u32 %v3570, 16
        %v3780 = vrot.slane %v3778, 4
        %v3781 = vor.u32 %v3780, %v3776
        %v3782 = vrot.slane %v3781, 4
        %v3784 = vshll.u32 %v3571, 16
        %v3786 = vrot.slane %v3784, 5
        %v3787 = vsel %vm236, %v3782, %v3786
        %v3789 = vshrl.u32 %v3572, 16
        %v3791 = vrot.slane %v3789, 4
        %v3792 = vshll.u32 %v3572, 16
        %v3794 = vrot.slane %v3792, 5
        %v3795 = vor.u32 %v3791, %v3794
        %v3796 = vrot.slane %v3795, 4
        %v3798 = vshll.u32 %v3573, 16
        %v3800 = vrot.slane %v3798, 5
        %v3801 = vsel %vm236, %v3796, %v3800
        %v3802 = vshrl.u32 %v3573, 16
        %v3804 = vrot.slane %v3802, 4
        %v3805 = vor.u32 %v3804, %v3800
        %v3806 = vrot.slane %v3805, 4
        %v3808 = vshll.u32 %v3574, 16
        %v3810 = vrot.slane %v3808, 5
        %v3811 = vsel %vm236, %v3806, %v3810
        %v3813 = vshrl.u32 %v3575, 16
        %v3815 = vrot.slane %v3813, 4
        %v3816 = vshll.u32 %v3575, 16
        %v3818 = vrot.slane %v3816, 5
        %v3819 = vor.u32 %v3815, %v3818
        %v3820 = vrot.slane %v3819, 4
        %v3822 = vshll.u32 %v3576, 16
        %v3824 = vrot.slane %v3822, 5
        %v3825 = vsel %vm236, %v3820, %v3824
        %v3826 = vshrl.u32 %v3576, 16
        %v3828 = vrot.slane %v3826, 4
        %v3829 = vor.u32 %v3828, %v3824
        %v3830 = vrot.slane %v3829, 4
        %v3832 = vshll.u32 %v3577, 16
        %v3834 = vrot.slane %v3832, 5
        %v3835 = vsel %vm236, %v3830, %v3834
        %v3837 = vshrl.u32 %v3578, 16
        %v3839 = vrot.slane %v3837, 4
        %v3840 = vshll.u32 %v3578, 16
        %v3842 = vrot.slane %v3840, 5
        %v3843 = vor.u32 %v3839, %v3842
        %v3844 = vrot.slane %v3843, 4
        %v3846 = vshll.u32 %v3579, 16
        %v3848 = vrot.slane %v3846, 5
        %v3849 = vsel %vm236, %v3844, %v3848
        %v3850 = vshrl.u32 %v3579, 16
        %v3852 = vrot.slane %v3850, 4
        %v3853 = vor.u32 %v3852, %v3848
        %v3854 = vrot.slane %v3853, 4
        %v3856 = vshll.u32 %v3580, 16
        %v3858 = vrot.slane %v3856, 5
        %v3859 = vsel %vm236, %v3854, %v3858
        %v3861 = vshrl.u32 %v3581, 16
        %v3863 = vrot.slane %v3861, 4
        %v3864 = vshll.u32 %v3581, 16
        %v3866 = vrot.slane %v3864, 5
        %v3867 = vor.u32 %v3863, %v3866
        %v3868 = vrot.slane %v3867, 4
        %v3870 = vshll.u32 %v3582, 16
        %v3872 = vrot.slane %v3870, 5
        %v3873 = vsel %vm236, %v3868, %v3872
        %v3874 = vshrl.u32 %v3582, 16
        %v3876 = vrot.slane %v3874, 4
        %v3877 = vor.u32 %v3876, %v3872
        %v3878 = vrot.slane %v3877, 4
        %v3880 = vshll.u32 %v3583, 16
        %v3882 = vrot.slane %v3880, 5
        %v3883 = vsel %vm236, %v3878, %v3882
        %v3885 = vshrl.u32 %v3584, 16
        %v3887 = vrot.slane %v3885, 4
        %v3888 = vshll.u32 %v3584, 16
        %v3890 = vrot.slane %v3888, 5
        %v3891 = vor.u32 %v3887, %v3890
        %v3892 = vrot.slane %v3891, 4
        %v3894 = vshll.u32 %v3585, 16
        %v3896 = vrot.slane %v3894, 5
        %v3897 = vsel %vm236, %v3892, %v3896
        %v3898 = vshrl.u32 %v3585, 16
        %v3900 = vrot.slane %v3898, 4
        %v3901 = vor.u32 %v3900, %v3896
        %v3902 = vrot.slane %v3901, 4
        %v3904 = vshll.u32 %v3586, 16
        %v3906 = vrot.slane %v3904, 5
        %v3907 = vsel %vm236, %v3902, %v3906
        %v3909 = vshrl.u32 %v3587, 16
        %v3911 = vrot.slane %v3909, 4
        %v3912 = vshll.u32 %v3587, 16
        %v3914 = vrot.slane %v3912, 5
        %v3915 = vor.u32 %v3911, %v3914
        %v3916 = vrot.slane %v3915, 4
        %v3918 = vshll.u32 %v3588, 16
        %v3920 = vrot.slane %v3918, 5
        %v3921 = vsel %vm236, %v3916, %v3920
        %v3922 = vshrl.u32 %v3588, 16
        %v3924 = vrot.slane %v3922, 4
        %v3925 = vor.u32 %v3924, %v3920
        %v3926 = vrot.slane %v3925, 4
        %v3928 = vshll.u32 %v3589, 16
        %v3930 = vrot.slane %v3928, 5
        %v3931 = vsel %vm236, %v3926, %v3930
        %v3933 = vshrl.u32 %v3590, 16
        %v3935 = vrot.slane %v3933, 4
        %v3936 = vshll.u32 %v3590, 16
        %v3938 = vrot.slane %v3936, 5
        %v3939 = vor.u32 %v3935, %v3938
        %v3940 = vrot.slane %v3939, 4
        %v3942 = vshll.u32 %v3591, 16
        %v3944 = vrot.slane %v3942, 5
        %v3945 = vsel %vm236, %v3940, %v3944
        %v3946 = vshrl.u32 %v3591, 16
        %v3948 = vrot.slane %v3946, 4
        %v3949 = vor.u32 %v3948, %v3944
        %v3950 = vrot.slane %v3949, 4
        %v3952 = vshll.u32 %v3592, 16
        %v3954 = vrot.slane %v3952, 5
        %v3955 = vsel %vm236, %v3950, %v3954
        %v3957 = vshrl.u32 %v3593, 16
        %v3959 = vrot.slane %v3957, 4
        %v3960 = vshll.u32 %v3593, 16
        %v3962 = vrot.slane %v3960, 5
        %v3963 = vor.u32 %v3959, %v3962
        %v3964 = vrot.slane %v3963, 4
        %v3966 = vshll.u32 %v3594, 16
        %v3968 = vrot.slane %v3966, 5
        %v3969 = vsel %vm236, %v3964, %v3968
        %v3970 = vshrl.u32 %v3594, 16
        %v3972 = vrot.slane %v3970, 4
        %v3973 = vor.u32 %v3972, %v3968
        %v3974 = vrot.slane %v3973, 4
        %v3976 = vshll.u32 %v3595, 16
        %v3978 = vrot.slane %v3976, 5
        %v3979 = vsel %vm236, %v3974, %v3978
        %s3980 = scalar_lea.vmem %s1, 14
        %v3981 = vld [vmem:[%s3980] sm:$0x3]
        %v3982 = vunpack.c.l.b16 %v3609
        %v3983 = vunpack.c.l.b16 %v3619
        %v3984 = vunpack.c.l.b16 %v3633
        %v3985 = vunpack.c.l.b16 %v3643
        %v3986 = vunpack.c.l.b16 %v3657
        %v3987 = vunpack.c.l.b16 %v3667
        %v3988 = vunpack.c.l.b16 %v3681
        %v3989 = vunpack.c.l.b16 %v3691
        %v3990 = vunpack.c.l.b16 %v3705
        %v3991 = vunpack.c.l.b16 %v3715
        %v3992 = vunpack.c.l.b16 %v3729
        %v3993 = vunpack.c.l.b16 %v3739
        %v3994 = vunpack.c.l.b16 %v3753
        %v3995 = vunpack.c.l.b16 %v3763
        %v3996 = vunpack.c.l.b16 %v3777
        %v3997 = vunpack.c.l.b16 %v3787
        %v3998 = vunpack.c.l.b16 %v3801
        %v3999 = vunpack.c.l.b16 %v3811
        %v4000 = vunpack.c.l.b16 %v3825
        %v4001 = vunpack.c.l.b16 %v3835
        %v4002 = vunpack.c.l.b16 %v3849
        %v4003 = vunpack.c.l.b16 %v3859
        %v4004 = vunpack.c.l.b16 %v3873
        %v4005 = vunpack.c.l.b16 %v3883
        %v4006 = vunpack.c.l.b16 %v3897
        %v4007 = vunpack.c.l.b16 %v3907
        %v4008 = vunpack.c.l.b16 %v3921
        %v4009 = vunpack.c.l.b16 %v3931
        %v4010 = vunpack.c.l.b16 %v3945
        %v4011 = vunpack.c.l.b16 %v3955
        %v4012 = vunpack.c.l.b16 %v3969
        %v4013 = vunpack.c.l.b16 %v3979
        %v4014 = vpack.c.b16 %v3983, %v3982
        %v4015 = vpack.c.b16 %v3985, %v3984
        %v4016 = vpack.c.b16 %v3987, %v3986
        %v4017 = vpack.c.b16 %v3989, %v3988
        %v4018 = vpack.c.b16 %v3991, %v3990
        %v4019 = vpack.c.b16 %v3993, %v3992
        %v4020 = vpack.c.b16 %v3995, %v3994
        %v4021 = vpack.c.b16 %v3997, %v3996
        %v4022 = vpack.c.b16 %v3999, %v3998
        %v4023 = vpack.c.b16 %v4001, %v4000
        %v4024 = vpack.c.b16 %v4003, %v4002
        %v4025 = vpack.c.b16 %v4005, %v4004
        %v4026 = vpack.c.b16 %v4007, %v4006
        %v4027 = vpack.c.b16 %v4009, %v4008
        %v4028 = vpack.c.b16 %v4011, %v4010
        %v4029 = vpack.c.b16 %v4013, %v4012
        %v4031 = vsel %vm671, %v4014, 0
        %v4034 = vsel %vm671, %v4015, 0
        %v4037 = vsel %vm671, %v4016, 0
        %v4040 = vsel %vm671, %v4017, 0
        %v4043 = vsel %vm671, %v4018, 0
        %v4046 = vsel %vm671, %v4019, 0
        %v4049 = vsel %vm671, %v4020, 0
        %v4052 = vsel %vm671, %v4021, 0
        %v4055 = vsel %vm671, %v4022, 0
        %v4058 = vsel %vm671, %v4023, 0
        %v4061 = vsel %vm671, %v4024, 0
        %v4064 = vsel %vm671, %v4025, 0
        %v4067 = vsel %vm671, %v4026, 0
        %v4070 = vsel %vm671, %v4027, 0
        %v4073 = vsel %vm671, %v4028, 0
        %v4076 = vsel %vm671, %v4029, 0
        %v4079 = vsel %vm720, %v3981, 0
        %4081 = vmatprep.subr.bf16.mxu0 0
        %4082 = vmatpush1.bf16.msra.mxu0 %v4079
        %4083 = vmatprep.subr.bf16.mxu0 0
        %4084 = vmatpush1.bf16.msra.mxu0 0
        %4085 = vmatprep.subr.bf16.mxu0 0
        %4086 = vmatpush1.bf16.msra.mxu0 0
        %4087 = vmatprep.subr.bf16.mxu0 0
        %4088 = vmatpush1.bf16.msra.mxu0 0
        %4089 = vmatprep.subr.bf16.mxu0 0
        %4090 = vmatpush1.bf16.msra.mxu0 0
        %4091 = vmatprep.subr.bf16.mxu0 0
        %4092 = vmatpush1.bf16.msra.mxu0 0
        %4093 = vmatprep.subr.bf16.mxu0 0
        %4094 = vmatpush1.bf16.msra.mxu0 0
        %4095 = vmatprep.subr.bf16.mxu0 0
        %4096 = vmatpush1.bf16.msra.mxu0 0
        %4097 = vmatprep.subr.bf16.mxu0 0
        %4098 = vmatpush1.bf16.msra.mxu0 0
        %4099 = vmatprep.subr.bf16.mxu0 0
        %4100 = vmatpush1.bf16.msra.mxu0 0
        %4101 = vmatprep.subr.bf16.mxu0 0
        %4102 = vmatpush1.bf16.msra.mxu0 0
        %4103 = vmatprep.subr.bf16.mxu0 0
        %4104 = vmatpush1.bf16.msra.mxu0 0
        %4105 = vmatprep.subr.bf16.mxu0 0
        %4106 = vmatpush1.bf16.msra.mxu0 0
        %4107 = vmatprep.subr.bf16.mxu0 0
        %4108 = vmatpush1.bf16.msra.mxu0 0
        %4109 = vmatprep.subr.bf16.mxu0 0
        %4110 = vmatpush1.bf16.msra.mxu0 0
        %4111 = vmatprep.subr.bf16.mxu0 0
        %4112 = vmatpush1.bf16.msra.mxu0 0
        %4113 = vmatprep.mubr.bf16.mxu0 0
        %4114 = vmatmul.mubr.bf16.gmra.mrb[0].mxu0 %v4031
        %v4115 = vpop.f32.mrb[0].mxu0
        %v4116 = vadd.f32 0.0, %v4115
        %v4117 = vpop.f32.mrb[0].mxu0
        %v4118 = vpop.f32.mrb[0].mxu0
        %v4119 = vadd.f32 0.0, %v4118
        %v4120 = vpop.f32.mrb[0].mxu0
        %4121 = vmatprep.mubr.bf16.mxu0 0
        %4122 = vmatmul.mubr.bf16.gmra.mrb[0].mxu0 %v4034
        %v4123 = vpop.f32.mrb[0].mxu0
        %v4124 = vadd.f32 0.0, %v4123
        %v4125 = vpop.f32.mrb[0].mxu0
        %v4126 = vpop.f32.mrb[0].mxu0
        %v4127 = vadd.f32 0.0, %v4126
        %v4128 = vpop.f32.mrb[0].mxu0
        %4129 = vmatprep.mubr.bf16.mxu0 0
        %4130 = vmatmul.mubr.bf16.gmra.mrb[0].mxu0 %v4037
        %v4131 = vpop.f32.mrb[0].mxu0
        %v4132 = vadd.f32 0.0, %v4131
        %v4133 = vpop.f32.mrb[0].mxu0
        %v4134 = vpop.f32.mrb[0].mxu0
        %v4135 = vadd.f32 0.0, %v4134
        %v4136 = vpop.f32.mrb[0].mxu0
        %4137 = vmatprep.mubr.bf16.mxu0 0
        %4138 = vmatmul.mubr.bf16.gmra.mrb[0].mxu0 %v4040
        %v4139 = vpop.f32.mrb[0].mxu0
        %v4140 = vadd.f32 0.0, %v4139
        %v4141 = vpop.f32.mrb[0].mxu0
        %v4142 = vpop.f32.mrb[0].mxu0
        %v4143 = vadd.f32 0.0, %v4142
        %v4144 = vpop.f32.mrb[0].mxu0
        %4145 = vmatprep.mubr.bf16.mxu0 0
        %4146 = vmatmul.mubr.bf16.gmra.mrb[0].mxu0 %v4043
        %v4147 = vpop.f32.mrb[0].mxu0
        %v4148 = vadd.f32 0.0, %v4147
        %v4149 = vpop.f32.mrb[0].mxu0
        %v4150 = vpop.f32.mrb[0].mxu0
        %v4151 = vadd.f32 0.0, %v4150
        %v4152 = vpop.f32.mrb[0].mxu0
        %4153 = vmatprep.mubr.bf16.mxu0 0
        %4154 = vmatmul.mubr.bf16.gmra.mrb[0].mxu0 %v4046
        %v4155 = vpop.f32.mrb[0].mxu0
        %v4156 = vadd.f32 0.0, %v4155
        %v4157 = vpop.f32.mrb[0].mxu0
        %v4158 = vpop.f32.mrb[0].mxu0
        %v4159 = vadd.f32 0.0, %v4158
        %v4160 = vpop.f32.mrb[0].mxu0
        %4161 = vmatprep.mubr.bf16.mxu0 0
        %4162 = vmatmul.mubr.bf16.gmra.mrb[0].mxu0 %v4049
        %v4163 = vpop.f32.mrb[0].mxu0
        %v4164 = vadd.f32 0.0, %v4163
        %v4165 = vpop.f32.mrb[0].mxu0
        %v4166 = vpop.f32.mrb[0].mxu0
        %v4167 = vadd.f32 0.0, %v4166
        %v4168 = vpop.f32.mrb[0].mxu0
        %4169 = vmatprep.mubr.bf16.mxu0 0
        %4170 = vmatmul.mubr.bf16.gmra.mrb[0].mxu0 %v4052
        %v4171 = vpop.f32.mrb[0].mxu0
        %v4172 = vadd.f32 0.0, %v4171
        %v4173 = vpop.f32.mrb[0].mxu0
        %v4174 = vpop.f32.mrb[0].mxu0
        %v4175 = vadd.f32 0.0, %v4174
        %v4176 = vpop.f32.mrb[0].mxu0
        %4177 = vmatprep.mubr.bf16.mxu0 0
        %4178 = vmatmul.mubr.bf16.gmra.mrb[0].mxu0 %v4055
        %v4179 = vpop.f32.mrb[0].mxu0
        %v4180 = vadd.f32 0.0, %v4179
        %v4181 = vpop.f32.mrb[0].mxu0
        %v4182 = vpop.f32.mrb[0].mxu0
        %v4183 = vadd.f32 0.0, %v4182
        %v4184 = vpop.f32.mrb[0].mxu0
        %4185 = vmatprep.mubr.bf16.mxu0 0
        %4186 = vmatmul.mubr.bf16.gmra.mrb[0].mxu0 %v4058
        %v4187 = vpop.f32.mrb[0].mxu0
        %v4188 = vadd.f32 0.0, %v4187
        %v4189 = vpop.f32.mrb[0].mxu0
        %v4190 = vpop.f32.mrb[0].mxu0
        %v4191 = vadd.f32 0.0, %v4190
        %v4192 = vpop.f32.mrb[0].mxu0
        %4193 = vmatprep.mubr.bf16.mxu0 0
        %4194 = vmatmul.mubr.bf16.gmra.mrb[0].mxu0 %v4061
        %v4195 = vpop.f32.mrb[0].mxu0
        %v4196 = vadd.f32 0.0, %v4195
        %v4197 = vpop.f32.mrb[0].mxu0
        %v4198 = vpop.f32.mrb[0].mxu0
        %v4199 = vadd.f32 0.0, %v4198
        %v4200 = vpop.f32.mrb[0].mxu0
        %4201 = vmatprep.mubr.bf16.mxu0 0
        %4202 = vmatmul.mubr.bf16.gmra.mrb[0].mxu0 %v4064
        %v4203 = vpop.f32.mrb[0].mxu0
        %v4204 = vadd.f32 0.0, %v4203
        %v4205 = vpop.f32.mrb[0].mxu0
        %v4206 = vpop.f32.mrb[0].mxu0
        %v4207 = vadd.f32 0.0, %v4206
        %v4208 = vpop.f32.mrb[0].mxu0
        %4209 = vmatprep.mubr.bf16.mxu0 0
        %4210 = vmatmul.mubr.bf16.gmra.mrb[0].mxu0 %v4067
        %v4211 = vpop.f32.mrb[0].mxu0
        %v4212 = vadd.f32 0.0, %v4211
        %v4213 = vpop.f32.mrb[0].mxu0
        %v4214 = vpop.f32.mrb[0].mxu0
        %v4215 = vadd.f32 0.0, %v4214
        %v4216 = vpop.f32.mrb[0].mxu0
        %4217 = vmatprep.mubr.bf16.mxu0 0
        %4218 = vmatmul.mubr.bf16.gmra.mrb[0].mxu0 %v4070
        %v4219 = vpop.f32.mrb[0].mxu0
        %v4220 = vadd.f32 0.0, %v4219
        %v4221 = vpop.f32.mrb[0].mxu0
        %v4222 = vpop.f32.mrb[0].mxu0
        %v4223 = vadd.f32 0.0, %v4222
        %v4224 = vpop.f32.mrb[0].mxu0
        %4225 = vmatprep.mubr.bf16.mxu0 0
        %4226 = vmatmul.mubr.bf16.gmra.mrb[0].mxu0 %v4073
        %v4227 = vpop.f32.mrb[0].mxu0
        %v4228 = vadd.f32 0.0, %v4227
        %v4229 = vpop.f32.mrb[0].mxu0
        %v4230 = vpop.f32.mrb[0].mxu0
        %v4231 = vadd.f32 0.0, %v4230
        %v4232 = vpop.f32.mrb[0].mxu0
        %4233 = vmatprep.mubr.bf16.mxu0 0
        %4234 = vmatmul.mubr.bf16.gmra.mrb[0].mxu0 %v4076
        %v4235 = vpop.f32.mrb[0].mxu0
        %v4236 = vadd.f32 0.0, %v4235
        %v4237 = vpop.f32.mrb[0].mxu0
        %v4238 = vpop.f32.mrb[0].mxu0
        %v4239 = vadd.f32 0.0, %v4238
        %v4240 = vpop.f32.mrb[0].mxu0
        %4241 = vdwg.mxu0
        %v4242 = vadd.f32 %v3516, %v4116
        %v4243 = vadd.f32 %v3517, %v4119
        %v4244 = vadd.f32 %v3518, %v4124
        %v4245 = vadd.f32 %v3519, %v4127
        %v4246 = vadd.f32 %v3520, %v4132
        %v4247 = vadd.f32 %v3521, %v4135
        %v4248 = vadd.f32 %v3522, %v4140
        %v4249 = vadd.f32 %v3523, %v4143
        %v4250 = vadd.f32 %v3524, %v4148
        %v4251 = vadd.f32 %v3525, %v4151
        %v4252 = vadd.f32 %v3526, %v4156
        %v4253 = vadd.f32 %v3527, %v4159
        %v4254 = vadd.f32 %v3528, %v4164
        %v4255 = vadd.f32 %v3529, %v4167
        %v4256 = vadd.f32 %v3530, %v4172
        %v4257 = vadd.f32 %v3531, %v4175
        %v4258 = vadd.f32 %v3532, %v4180
        %v4259 = vadd.f32 %v3533, %v4183
        %v4260 = vadd.f32 %v3534, %v4188
        %v4261 = vadd.f32 %v3535, %v4191
        %v4262 = vadd.f32 %v3536, %v4196
        %v4263 = vadd.f32 %v3537, %v4199
        %v4264 = vadd.f32 %v3538, %v4204
        %v4265 = vadd.f32 %v3539, %v4207
        %v4266 = vadd.f32 %v3540, %v4212
        %v4267 = vadd.f32 %v3541, %v4215
        %v4268 = vadd.f32 %v3542, %v4220
        %v4269 = vadd.f32 %v3543, %v4223
        %v4270 = vadd.f32 %v3544, %v4228
        %v4271 = vadd.f32 %v3545, %v4231
        %v4272 = vadd.f32 %v3546, %v4236
        %v4273 = vadd.f32 %v3547, %v4239
        %v4274 = vld [vmem:[%s3189] sm:$0xe]
        %v4275 = vld [vmem:[%s3189 + $0xc] sm:$0xe]
        %v4276 = vld [vmem:[%s3189 + $0x18] sm:$0xe]
        %v4277 = vld [vmem:[%s3189 + $0x24] sm:$0xe]
        %v4278 = vld [vmem:[%s3189 + $0x30] sm:$0xe]
        %v4279 = vld [vmem:[%s3189 + $0x3c] sm:$0xe]
        %v4280 = vld [vmem:[%s3189 + $0x48] sm:$0xe]
        %v4281 = vld [vmem:[%s3189 + $0x54] sm:$0xe]
        %v4282 = vld [vmem:[%s3189 + $0x60] sm:$0xe]
        %v4283 = vld [vmem:[%s3189 + $0x6c] sm:$0xe]
        %v4284 = vld [vmem:[%s3189 + $0x78] sm:$0xe]
        %v4285 = vld [vmem:[%s3189 + $0x84] sm:$0xe]
        %v4286 = vld [vmem:[%s3189 + $0x90] sm:$0xe]
        %v4287 = vld [vmem:[%s3189 + $0x9c] sm:$0xe]
        %v4288 = vld [vmem:[%s3189 + $0xa8] sm:$0xe]
        %v4289 = vld [vmem:[%s3189 + $0xb4] sm:$0xe]
        %v4338 = vrot.slane %v4274, 5
        %v4339 = vrot.slane %v4338, 4
        %v4340 = vrot.slane %v3549, 5
        %v4341 = vsel %vm1227, %v4339, %v4340
        %v4342 = vrot.slane %v4340, 4
        %v4343 = vrot.slane %v3550, 5
        %v4344 = vsel %vm1227, %v4342, %v4343
        %v4345 = vrot.slane %v4275, 5
        %v4346 = vrot.slane %v4345, 4
        %v4347 = vrot.slane %v3552, 5
        %v4348 = vsel %vm1227, %v4346, %v4347
        %v4349 = vrot.slane %v4347, 4
        %v4350 = vrot.slane %v3553, 5
        %v4351 = vsel %vm1227, %v4349, %v4350
        %v4352 = vrot.slane %v4276, 5
        %v4353 = vrot.slane %v4352, 4
        %v4354 = vrot.slane %v3555, 5
        %v4355 = vsel %vm1227, %v4353, %v4354
        %v4356 = vrot.slane %v4354, 4
        %v4357 = vrot.slane %v3556, 5
        %v4358 = vsel %vm1227, %v4356, %v4357
        %v4359 = vrot.slane %v4277, 5
        %v4360 = vrot.slane %v4359, 4
        %v4361 = vrot.slane %v3558, 5
        %v4362 = vsel %vm1227, %v4360, %v4361
        %v4363 = vrot.slane %v4361, 4
        %v4364 = vrot.slane %v3559, 5
        %v4365 = vsel %vm1227, %v4363, %v4364
        %v4366 = vrot.slane %v4278, 5
        %v4367 = vrot.slane %v4366, 4
        %v4368 = vrot.slane %v3561, 5
        %v4369 = vsel %vm1227, %v4367, %v4368
        %v4370 = vrot.slane %v4368, 4
        %v4371 = vrot.slane %v3562, 5
        %v4372 = vsel %vm1227, %v4370, %v4371
        %v4373 = vrot.slane %v4279, 5
        %v4374 = vrot.slane %v4373, 4
        %v4375 = vrot.slane %v3564, 5
        %v4376 = vsel %vm1227, %v4374, %v4375
        %v4377 = vrot.slane %v4375, 4
        %v4378 = vrot.slane %v3565, 5
        %v4379 = vsel %vm1227, %v4377, %v4378
        %v4380 = vrot.slane %v4280, 5
        %v4381 = vrot.slane %v4380, 4
        %v4382 = vrot.slane %v3567, 5
        %v4383 = vsel %vm1227, %v4381, %v4382
        %v4384 = vrot.slane %v4382, 4
        %v4385 = vrot.slane %v3568, 5
        %v4386 = vsel %vm1227, %v4384, %v4385
        %v4387 = vrot.slane %v4281, 5
        %v4388 = vrot.slane %v4387, 4
        %v4389 = vrot.slane %v3570, 5
        %v4390 = vsel %vm1227, %v4388, %v4389
        %v4391 = vrot.slane %v4389, 4
        %v4392 = vrot.slane %v3571, 5
        %v4393 = vsel %vm1227, %v4391, %v4392
        %v4394 = vrot.slane %v4282, 5
        %v4395 = vrot.slane %v4394, 4
        %v4396 = vrot.slane %v3573, 5
        %v4397 = vsel %vm1227, %v4395, %v4396
        %v4398 = vrot.slane %v4396, 4
        %v4399 = vrot.slane %v3574, 5
        %v4400 = vsel %vm1227, %v4398, %v4399
        %v4401 = vrot.slane %v4283, 5
        %v4402 = vrot.slane %v4401, 4
        %v4403 = vrot.slane %v3576, 5
        %v4404 = vsel %vm1227, %v4402, %v4403
        %v4405 = vrot.slane %v4403, 4
        %v4406 = vrot.slane %v3577, 5
        %v4407 = vsel %vm1227, %v4405, %v4406
        %v4408 = vrot.slane %v4284, 5
        %v4409 = vrot.slane %v4408, 4
        %v4410 = vrot.slane %v3579, 5
        %v4411 = vsel %vm1227, %v4409, %v4410
        %v4412 = vrot.slane %v4410, 4
        %v4413 = vrot.slane %v3580, 5
        %v4414 = vsel %vm1227, %v4412, %v4413
        %v4415 = vrot.slane %v4285, 5
        %v4416 = vrot.slane %v4415, 4
        %v4417 = vrot.slane %v3582, 5
        %v4418 = vsel %vm1227, %v4416, %v4417
        %v4419 = vrot.slane %v4417, 4
        %v4420 = vrot.slane %v3583, 5
        %v4421 = vsel %vm1227, %v4419, %v4420
        %v4422 = vrot.slane %v4286, 5
        %v4423 = vrot.slane %v4422, 4
        %v4424 = vrot.slane %v3585, 5
        %v4425 = vsel %vm1227, %v4423, %v4424
        %v4426 = vrot.slane %v4424, 4
        %v4427 = vrot.slane %v3586, 5
        %v4428 = vsel %vm1227, %v4426, %v4427
        %v4429 = vrot.slane %v4287, 5
        %v4430 = vrot.slane %v4429, 4
        %v4431 = vrot.slane %v3588, 5
        %v4432 = vsel %vm1227, %v4430, %v4431
        %v4433 = vrot.slane %v4431, 4
        %v4434 = vrot.slane %v3589, 5
        %v4435 = vsel %vm1227, %v4433, %v4434
        %v4436 = vrot.slane %v4288, 5
        %v4437 = vrot.slane %v4436, 4
        %v4438 = vrot.slane %v3591, 5
        %v4439 = vsel %vm1227, %v4437, %v4438
        %v4440 = vrot.slane %v4438, 4
        %v4441 = vrot.slane %v3592, 5
        %v4442 = vsel %vm1227, %v4440, %v4441
        %v4443 = vrot.slane %v4289, 5
        %v4444 = vrot.slane %v4443, 4
        %v4445 = vrot.slane %v3594, 5
        %v4446 = vsel %vm1227, %v4444, %v4445
        %v4447 = vrot.slane %v4445, 4
        %v4448 = vrot.slane %v3595, 5
        %v4449 = vsel %vm1227, %v4447, %v4448
        %s4450 = scalar_lea.vmem %s1, 16
        %v4451 = vld [vmem:[%s4450] sm:$0x3]
        %v4452 = vunpack.c.l.b16 %v4341
        %v4453 = vunpack.c.l.b16 %v4344
        %v4454 = vunpack.c.l.b16 %v4348
        %v4455 = vunpack.c.l.b16 %v4351
        %v4456 = vunpack.c.l.b16 %v4355
        %v4457 = vunpack.c.l.b16 %v4358
        %v4458 = vunpack.c.l.b16 %v4362
        %v4459 = vunpack.c.l.b16 %v4365
        %v4460 = vunpack.c.l.b16 %v4369
        %v4461 = vunpack.c.l.b16 %v4372
        %v4462 = vunpack.c.l.b16 %v4376
        %v4463 = vunpack.c.l.b16 %v4379
        %v4464 = vunpack.c.l.b16 %v4383
        %v4465 = vunpack.c.l.b16 %v4386
        %v4466 = vunpack.c.l.b16 %v4390
        %v4467 = vunpack.c.l.b16 %v4393
        %v4468 = vunpack.c.l.b16 %v4397
        %v4469 = vunpack.c.l.b16 %v4400
        %v4470 = vunpack.c.l.b16 %v4404
        %v4471 = vunpack.c.l.b16 %v4407
        %v4472 = vunpack.c.l.b16 %v4411
        %v4473 = vunpack.c.l.b16 %v4414
        %v4474 = vunpack.c.l.b16 %v4418
        %v4475 = vunpack.c.l.b16 %v4421
        %v4476 = vunpack.c.l.b16 %v4425
        %v4477 = vunpack.c.l.b16 %v4428
        %v4478 = vunpack.c.l.b16 %v4432
        %v4479 = vunpack.c.l.b16 %v4435
        %v4480 = vunpack.c.l.b16 %v4439
        %v4481 = vunpack.c.l.b16 %v4442
        %v4482 = vunpack.c.l.b16 %v4446
        %v4483 = vunpack.c.l.b16 %v4449
        %v4484 = vpack.c.b16 %v4453, %v4452
        %v4485 = vpack.c.b16 %v4455, %v4454
        %v4486 = vpack.c.b16 %v4457, %v4456
        %v4487 = vpack.c.b16 %v4459, %v4458
        %v4488 = vpack.c.b16 %v4461, %v4460
        %v4489 = vpack.c.b16 %v4463, %v4462
        %v4490 = vpack.c.b16 %v4465, %v4464
        %v4491 = vpack.c.b16 %v4467, %v4466
        %v4492 = vpack.c.b16 %v4469, %v4468
        %v4493 = vpack.c.b16 %v4471, %v4470
        %v4494 = vpack.c.b16 %v4473, %v4472
        %v4495 = vpack.c.b16 %v4475, %v4474
        %v4496 = vpack.c.b16 %v4477, %v4476
        %v4497 = vpack.c.b16 %v4479, %v4478
        %v4498 = vpack.c.b16 %v4481, %v4480
        %v4499 = vpack.c.b16 %v4483, %v4482
        %v4501 = vsel %vm671, %v4484, 0
        %v4504 = vsel %vm671, %v4485, 0
        %v4507 = vsel %vm671, %v4486, 0
        %v4510 = vsel %vm671, %v4487, 0
        %v4513 = vsel %vm671, %v4488, 0
        %v4516 = vsel %vm671, %v4489, 0
        %v4519 = vsel %vm671, %v4490, 0
        %v4522 = vsel %vm671, %v4491, 0
        %v4525 = vsel %vm671, %v4492, 0
        %v4528 = vsel %vm671, %v4493, 0
        %v4531 = vsel %vm671, %v4494, 0
        %v4534 = vsel %vm671, %v4495, 0
        %v4537 = vsel %vm671, %v4496, 0
        %v4540 = vsel %vm671, %v4497, 0
        %v4543 = vsel %vm671, %v4498, 0
        %v4546 = vsel %vm671, %v4499, 0
        %v4549 = vsel %vm720, %v4451, 0
        %4551 = vmatprep.subr.bf16.mxu0 0
        %4552 = vmatpush1.bf16.msra.mxu0 %v4549
        %4553 = vmatprep.subr.bf16.mxu0 0
        %4554 = vmatpush1.bf16.msra.mxu0 0
        %4555 = vmatprep.subr.bf16.mxu0 0
        %4556 = vmatpush1.bf16.msra.mxu0 0
        %4557 = vmatprep.subr.bf16.mxu0 0
        %4558 = vmatpush1.bf16.msra.mxu0 0
        %4559 = vmatprep.subr.bf16.mxu0 0
        %4560 = vmatpush1.bf16.msra.mxu0 0
        %4561 = vmatprep.subr.bf16.mxu0 0
        %4562 = vmatpush1.bf16.msra.mxu0 0
        %4563 = vmatprep.subr.bf16.mxu0 0
        %4564 = vmatpush1.bf16.msra.mxu0 0
        %4565 = vmatprep.subr.bf16.mxu0 0
        %4566 = vmatpush1.bf16.msra.mxu0 0
        %4567 = vmatprep.subr.bf16.mxu0 0
        %4568 = vmatpush1.bf16.msra.mxu0 0
        %4569 = vmatprep.subr.bf16.mxu0 0
        %4570 = vmatpush1.bf16.msra.mxu0 0
        %4571 = vmatprep.subr.bf16.mxu0 0
        %4572 = vmatpush1.bf16.msra.mxu0 0
        %4573 = vmatprep.subr.bf16.mxu0 0
        %4574 = vmatpush1.bf16.msra.mxu0 0
        %4575 = vmatprep.subr.bf16.mxu0 0
        %4576 = vmatpush1.bf16.msra.mxu0 0
        %4577 = vmatprep.subr.bf16.mxu0 0
        %4578 = vmatpush1.bf16.msra.mxu0 0
        %4579 = vmatprep.subr.bf16.mxu0 0
        %4580 = vmatpush1.bf16.msra.mxu0 0
        %4581 = vmatprep.subr.bf16.mxu0 0
        %4582 = vmatpush1.bf16.msra.mxu0 0
        %4583 = vmatprep.mubr.bf16.mxu0 0
        %4584 = vmatmul.mubr.bf16.gmra.mrb[0].mxu0 %v4501
        %v4585 = vpop.f32.mrb[0].mxu0
        %v4586 = vadd.f32 0.0, %v4585
        %v4587 = vpop.f32.mrb[0].mxu0
        %v4588 = vpop.f32.mrb[0].mxu0
        %v4589 = vadd.f32 0.0, %v4588
        %v4590 = vpop.f32.mrb[0].mxu0
        %4591 = vmatprep.mubr.bf16.mxu0 0
        %4592 = vmatmul.mubr.bf16.gmra.mrb[0].mxu0 %v4504
        %v4593 = vpop.f32.mrb[0].mxu0
        %v4594 = vadd.f32 0.0, %v4593
        %v4595 = vpop.f32.mrb[0].mxu0
        %v4596 = vpop.f32.mrb[0].mxu0
        %v4597 = vadd.f32 0.0, %v4596
        %v4598 = vpop.f32.mrb[0].mxu0
        %4599 = vmatprep.mubr.bf16.mxu0 0
        %4600 = vmatmul.mubr.bf16.gmra.mrb[0].mxu0 %v4507
        %v4601 = vpop.f32.mrb[0].mxu0
        %v4602 = vadd.f32 0.0, %v4601
        %v4603 = vpop.f32.mrb[0].mxu0
        %v4604 = vpop.f32.mrb[0].mxu0
        %v4605 = vadd.f32 0.0, %v4604
        %v4606 = vpop.f32.mrb[0].mxu0
        %4607 = vmatprep.mubr.bf16.mxu0 0
        %4608 = vmatmul.mubr.bf16.gmra.mrb[0].mxu0 %v4510
        %v4609 = vpop.f32.mrb[0].mxu0
        %v4610 = vadd.f32 0.0, %v4609
        %v4611 = vpop.f32.mrb[0].mxu0
        %v4612 = vpop.f32.mrb[0].mxu0
        %v4613 = vadd.f32 0.0, %v4612
        %v4614 = vpop.f32.mrb[0].mxu0
        %4615 = vmatprep.mubr.bf16.mxu0 0
        %4616 = vmatmul.mubr.bf16.gmra.mrb[0].mxu0 %v4513
        %v4617 = vpop.f32.mrb[0].mxu0
        %v4618 = vadd.f32 0.0, %v4617
        %v4619 = vpop.f32.mrb[0].mxu0
        %v4620 = vpop.f32.mrb[0].mxu0
        %v4621 = vadd.f32 0.0, %v4620
        %v4622 = vpop.f32.mrb[0].mxu0
        %4623 = vmatprep.mubr.bf16.mxu0 0
        %4624 = vmatmul.mubr.bf16.gmra.mrb[0].mxu0 %v4516
        %v4625 = vpop.f32.mrb[0].mxu0
        %v4626 = vadd.f32 0.0, %v4625
        %v4627 = vpop.f32.mrb[0].mxu0
        %v4628 = vpop.f32.mrb[0].mxu0
        %v4629 = vadd.f32 0.0, %v4628
        %v4630 = vpop.f32.mrb[0].mxu0
        %4631 = vmatprep.mubr.bf16.mxu0 0
        %4632 = vmatmul.mubr.bf16.gmra.mrb[0].mxu0 %v4519
        %v4633 = vpop.f32.mrb[0].mxu0
        %v4634 = vadd.f32 0.0, %v4633
        %v4635 = vpop.f32.mrb[0].mxu0
        %v4636 = vpop.f32.mrb[0].mxu0
        %v4637 = vadd.f32 0.0, %v4636
        %v4638 = vpop.f32.mrb[0].mxu0
        %4639 = vmatprep.mubr.bf16.mxu0 0
        %4640 = vmatmul.mubr.bf16.gmra.mrb[0].mxu0 %v4522
        %v4641 = vpop.f32.mrb[0].mxu0
        %v4642 = vadd.f32 0.0, %v4641
        %v4643 = vpop.f32.mrb[0].mxu0
        %v4644 = vpop.f32.mrb[0].mxu0
        %v4645 = vadd.f32 0.0, %v4644
        %v4646 = vpop.f32.mrb[0].mxu0
        %4647 = vmatprep.mubr.bf16.mxu0 0
        %4648 = vmatmul.mubr.bf16.gmra.mrb[0].mxu0 %v4525
        %v4649 = vpop.f32.mrb[0].mxu0
        %v4650 = vadd.f32 0.0, %v4649
        %v4651 = vpop.f32.mrb[0].mxu0
        %v4652 = vpop.f32.mrb[0].mxu0
        %v4653 = vadd.f32 0.0, %v4652
        %v4654 = vpop.f32.mrb[0].mxu0
        %4655 = vmatprep.mubr.bf16.mxu0 0
        %4656 = vmatmul.mubr.bf16.gmra.mrb[0].mxu0 %v4528
        %v4657 = vpop.f32.mrb[0].mxu0
        %v4658 = vadd.f32 0.0, %v4657
        %v4659 = vpop.f32.mrb[0].mxu0
        %v4660 = vpop.f32.mrb[0].mxu0
        %v4661 = vadd.f32 0.0, %v4660
        %v4662 = vpop.f32.mrb[0].mxu0
        %4663 = vmatprep.mubr.bf16.mxu0 0
        %4664 = vmatmul.mubr.bf16.gmra.mrb[0].mxu0 %v4531
        %v4665 = vpop.f32.mrb[0].mxu0
        %v4666 = vadd.f32 0.0, %v4665
        %v4667 = vpop.f32.mrb[0].mxu0
        %v4668 = vpop.f32.mrb[0].mxu0
        %v4669 = vadd.f32 0.0, %v4668
        %v4670 = vpop.f32.mrb[0].mxu0
        %4671 = vmatprep.mubr.bf16.mxu0 0
        %4672 = vmatmul.mubr.bf16.gmra.mrb[0].mxu0 %v4534
        %v4673 = vpop.f32.mrb[0].mxu0
        %v4674 = vadd.f32 0.0, %v4673
        %v4675 = vpop.f32.mrb[0].mxu0
        %v4676 = vpop.f32.mrb[0].mxu0
        %v4677 = vadd.f32 0.0, %v4676
        %v4678 = vpop.f32.mrb[0].mxu0
        %4679 = vmatprep.mubr.bf16.mxu0 0
        %4680 = vmatmul.mubr.bf16.gmra.mrb[0].mxu0 %v4537
        %v4681 = vpop.f32.mrb[0].mxu0
        %v4682 = vadd.f32 0.0, %v4681
        %v4683 = vpop.f32.mrb[0].mxu0
        %v4684 = vpop.f32.mrb[0].mxu0
        %v4685 = vadd.f32 0.0, %v4684
        %v4686 = vpop.f32.mrb[0].mxu0
        %4687 = vmatprep.mubr.bf16.mxu0 0
        %4688 = vmatmul.mubr.bf16.gmra.mrb[0].mxu0 %v4540
        %v4689 = vpop.f32.mrb[0].mxu0
        %v4690 = vadd.f32 0.0, %v4689
        %v4691 = vpop.f32.mrb[0].mxu0
        %v4692 = vpop.f32.mrb[0].mxu0
        %v4693 = vadd.f32 0.0, %v4692
        %v4694 = vpop.f32.mrb[0].mxu0
        %4695 = vmatprep.mubr.bf16.mxu0 0
        %4696 = vmatmul.mubr.bf16.gmra.mrb[0].mxu0 %v4543
        %v4697 = vpop.f32.mrb[0].mxu0
        %v4698 = vadd.f32 0.0, %v4697
        %v4699 = vpop.f32.mrb[0].mxu0
        %v4700 = vpop.f32.mrb[0].mxu0
        %v4701 = vadd.f32 0.0, %v4700
        %v4702 = vpop.f32.mrb[0].mxu0
        %4703 = vmatprep.mubr.bf16.mxu0 0
        %4704 = vmatmul.mubr.bf16.gmra.mrb[0].mxu0 %v4546
        %v4705 = vpop.f32.mrb[0].mxu0
        %v4706 = vadd.f32 0.0, %v4705
        %v4707 = vpop.f32.mrb[0].mxu0
        %v4708 = vpop.f32.mrb[0].mxu0
        %v4709 = vadd.f32 0.0, %v4708
        %v4710 = vpop.f32.mrb[0].mxu0
        %4711 = vdwg.mxu0
        %v4712 = vadd.f32 %v4242, %v4586
        %v4713 = vadd.f32 %v4243, %v4589
        %v4714 = vadd.f32 %v4244, %v4594
        %v4715 = vadd.f32 %v4245, %v4597
        %v4716 = vadd.f32 %v4246, %v4602
        %v4717 = vadd.f32 %v4247, %v4605
        %v4718 = vadd.f32 %v4248, %v4610
        %v4719 = vadd.f32 %v4249, %v4613
        %v4720 = vadd.f32 %v4250, %v4618
        %v4721 = vadd.f32 %v4251, %v4621
        %v4722 = vadd.f32 %v4252, %v4626
        %v4723 = vadd.f32 %v4253, %v4629
        %v4724 = vadd.f32 %v4254, %v4634
        %v4725 = vadd.f32 %v4255, %v4637
        %v4726 = vadd.f32 %v4256, %v4642
        %v4727 = vadd.f32 %v4257, %v4645
        %v4728 = vadd.f32 %v4258, %v4650
        %v4729 = vadd.f32 %v4259, %v4653
        %v4730 = vadd.f32 %v4260, %v4658
        %v4731 = vadd.f32 %v4261, %v4661
        %v4732 = vadd.f32 %v4262, %v4666
        %v4733 = vadd.f32 %v4263, %v4669
        %v4734 = vadd.f32 %v4264, %v4674
        %v4735 = vadd.f32 %v4265, %v4677
        %v4736 = vadd.f32 %v4266, %v4682
        %v4737 = vadd.f32 %v4267, %v4685
        %v4738 = vadd.f32 %v4268, %v4690
        %v4739 = vadd.f32 %v4269, %v4693
        %v4740 = vadd.f32 %v4270, %v4698
        %v4741 = vadd.f32 %v4271, %v4701
        %v4742 = vadd.f32 %v4272, %v4706
        %v4743 = vadd.f32 %v4273, %v4709
        %v4744 = vld [vmem:[%s2] sm:$0x1]
        %v4746 = vlaneseq
        %v4747 = vshrl.u32 %v4746, 7
        %v4748 = vsub.s32 0, %v4747
        %v4749 = vrot.slane %v4744, %v4748
        %v4751 = vadd.f32 %v4712, %v4749
        %v4752 = vadd.f32 %v4713, %v4749
        %v4753 = vadd.f32 %v4714, %v4749
        %v4754 = vadd.f32 %v4715, %v4749
        %v4755 = vadd.f32 %v4716, %v4749
        %v4756 = vadd.f32 %v4717, %v4749
        %v4757 = vadd.f32 %v4718, %v4749
        %v4758 = vadd.f32 %v4719, %v4749
        %v4759 = vadd.f32 %v4720, %v4749
        %v4760 = vadd.f32 %v4721, %v4749
        %v4761 = vadd.f32 %v4722, %v4749
        %v4762 = vadd.f32 %v4723, %v4749
        %v4763 = vadd.f32 %v4724, %v4749
        %v4764 = vadd.f32 %v4725, %v4749
        %v4765 = vadd.f32 %v4726, %v4749
        %v4766 = vadd.f32 %v4727, %v4749
        %v4767 = vadd.f32 %v4728, %v4749
        %v4768 = vadd.f32 %v4729, %v4749
        %v4769 = vadd.f32 %v4730, %v4749
        %v4770 = vadd.f32 %v4731, %v4749
        %v4771 = vadd.f32 %v4732, %v4749
        %v4772 = vadd.f32 %v4733, %v4749
        %v4773 = vadd.f32 %v4734, %v4749
        %v4774 = vadd.f32 %v4735, %v4749
        %v4775 = vadd.f32 %v4736, %v4749
        %v4776 = vadd.f32 %v4737, %v4749
        %v4777 = vadd.f32 %v4738, %v4749
        %v4778 = vadd.f32 %v4739, %v4749
        %v4779 = vadd.f32 %v4740, %v4749
        %v4780 = vadd.f32 %v4741, %v4749
        %v4781 = vadd.f32 %v4742, %v4749
        %v4782 = vadd.f32 %v4743, %v4749
        %v4783 = vmax.f32 %v4751, 0.0
        %v4784 = vmax.f32 %v4752, 0.0
        %v4785 = vmax.f32 %v4753, 0.0
        %v4786 = vmax.f32 %v4754, 0.0
        %v4787 = vmax.f32 %v4755, 0.0
        %v4788 = vmax.f32 %v4756, 0.0
        %v4789 = vmax.f32 %v4757, 0.0
        %v4790 = vmax.f32 %v4758, 0.0
        %v4791 = vmax.f32 %v4759, 0.0
        %v4792 = vmax.f32 %v4760, 0.0
        %v4793 = vmax.f32 %v4761, 0.0
        %v4794 = vmax.f32 %v4762, 0.0
        %v4795 = vmax.f32 %v4763, 0.0
        %v4796 = vmax.f32 %v4764, 0.0
        %v4797 = vmax.f32 %v4765, 0.0
        %v4798 = vmax.f32 %v4766, 0.0
        %v4799 = vmax.f32 %v4767, 0.0
        %v4800 = vmax.f32 %v4768, 0.0
        %v4801 = vmax.f32 %v4769, 0.0
        %v4802 = vmax.f32 %v4770, 0.0
        %v4803 = vmax.f32 %v4771, 0.0
        %v4804 = vmax.f32 %v4772, 0.0
        %v4805 = vmax.f32 %v4773, 0.0
        %v4806 = vmax.f32 %v4774, 0.0
        %v4807 = vmax.f32 %v4775, 0.0
        %v4808 = vmax.f32 %v4776, 0.0
        %v4809 = vmax.f32 %v4777, 0.0
        %v4810 = vmax.f32 %v4778, 0.0
        %v4811 = vmax.f32 %v4779, 0.0
        %v4812 = vmax.f32 %v4780, 0.0
        %v4813 = vmax.f32 %v4781, 0.0
        %v4814 = vmax.f32 %v4782, 0.0
        %4815 = vst [vmem:[%s177] sm:$0xff] %v4783
        %4816 = vst [vmem:[%s177 + $0x8] sm:$0xff] %v4784
        %4817 = vst [vmem:[%s177 + $0x10] sm:$0xff] %v4785
        %4818 = vst [vmem:[%s177 + $0x18] sm:$0xff] %v4786
        %4819 = vst [vmem:[%s177 + $0x20] sm:$0xff] %v4787
        %4820 = vst [vmem:[%s177 + $0x28] sm:$0xff] %v4788
        %4821 = vst [vmem:[%s177 + $0x30] sm:$0xff] %v4789
        %4822 = vst [vmem:[%s177 + $0x38] sm:$0xff] %v4790
        %4823 = vst [vmem:[%s177 + $0x40] sm:$0xff] %v4791
        %4824 = vst [vmem:[%s177 + $0x48] sm:$0xff] %v4792
        %4825 = vst [vmem:[%s177 + $0x50] sm:$0xff] %v4793
        %4826 = vst [vmem:[%s177 + $0x58] sm:$0xff] %v4794
        %4827 = vst [vmem:[%s177 + $0x60] sm:$0xff] %v4795
        %4828 = vst [vmem:[%s177 + $0x68] sm:$0xff] %v4796
        %4829 = vst [vmem:[%s177 + $0x70] sm:$0xff] %v4797
        %4830 = vst [vmem:[%s177 + $0x78] sm:$0xff] %v4798
        %4831 = vst [vmem:[%s177 + $0x80] sm:$0xff] %v4799
        %4832 = vst [vmem:[%s177 + $0x88] sm:$0xff] %v4800
        %4833 = vst [vmem:[%s177 + $0x90] sm:$0xff] %v4801
        %4834 = vst [vmem:[%s177 + $0x98] sm:$0xff] %v4802
        %4835 = vst [vmem:[%s177 + $0xa0] sm:$0xff] %v4803
        %4836 = vst [vmem:[%s177 + $0xa8] sm:$0xff] %v4804
        %4837 = vst [vmem:[%s177 + $0xb0] sm:$0xff] %v4805
        %4838 = vst [vmem:[%s177 + $0xb8] sm:$0xff] %v4806
        %4839 = vst [vmem:[%s177 + $0xc0] sm:$0xff] %v4807
        %4840 = vst [vmem:[%s177 + $0xc8] sm:$0xff] %v4808
        %4841 = vst [vmem:[%s177 + $0xd0] sm:$0xff] %v4809
        %4842 = vst [vmem:[%s177 + $0xd8] sm:$0xff] %v4810
        %4843 = vst [vmem:[%s177 + $0xe0] sm:$0xff] %v4811
        %4844 = vst [vmem:[%s177 + $0xe8] sm:$0xff] %v4812
        %4845 = vst [vmem:[%s177 + $0xf0] sm:$0xff] %v4813
        %4846 = vst [vmem:[%s177 + $0xf8] sm:$0xff] %v4814
        %s4847 = sand.u32 %s107, 1
        %s4848 = scalar_lea.sflag [#allocation3], %s4847
        %s4849 = sand.u32 %s107, 1
        %s4850 = smul.addr %s4849, 256
        %s4851 = scalar_lea.vmem [#allocation2], %s4850
        // Predicated region
        $region33: #{tpu_custom_call.1} parent=31 // pred_check
          %p4852 = pneg %p117
        $region34: #{tpu_custom_call.1} parent=31 // pred_check_branch
          %4854 = sbr.rel (%p4852) target = $region36
        $region35: #{tpu_custom_call.1} parent=31 // pred_region
          %s4855 = smul.u32 16, %s22
          %s4857 = ssub.s32 4096, 4096
          %4858 = vsyncadd %s4848, %s4857
          %s4859 = smul.addr %s4855, 2
          %s4860 = smul.addr %s21, 32
          %s4861 = sadd.s32 %s4859, %s4860
          %s4862 = smul.addr %s4861, 128
          %s4863 = scalar_lea.hbm %s3, %s4862
          %s4864 = sshll.u32 %s4851, 4
          %s4865 = int_to_ptr.vmem [resolvable:$true] %s4864
          %4870 = dma.vmem_to_hbm [thread:$0]  %s4865, 4096, %s4863, %s4848, 128, 128, 8
        $region36: #{tpu_custom_call.1} parent=31 // pred_fallthru
          _
      $region32: #{tpu_custom_call.1} parent=5 // pred_fallthru
        _
      %p4871 = scmp.le.s32.totalorder 2, %s12
      // Predicated region
      $region37: #{tpu_custom_call.1} parent=5 // pred_check
        %p4872 = pneg %p4871
      $region38: #{tpu_custom_call.1} parent=5 // pred_check_branch
        %4874 = sbr.rel (%p4872) target = $region40
      $region39: #{tpu_custom_call.1} parent=5 // pred_region
        %s4875 = ssub.s32 %s12, 2
        // Predicated region
        $region41: #{tpu_custom_call.1} parent=39 // pred_check
          %p4876 = pneg %p123
        $region42: #{tpu_custom_call.1} parent=39 // pred_check_branch
          %4878 = sbr.rel (%p4876) target = $region44
        $region43: #{tpu_custom_call.1} parent=39 // pred_region
          %s4879 = sand.u32 %s108, 1
          %s4880 = scalar_lea.sflag [#allocation3], %s4879
          %s4881 = sand.u32 %s108, 1
          %s4882 = smul.addr %s4881, 256
          %s4883 = scalar_lea.vmem [#allocation2], %s4882
          %4884 = dma.done %s4880, 4096
        $region44: #{tpu_custom_call.1} parent=39 // pred_fallthru
          _
      $region40: #{tpu_custom_call.1} parent=5 // pred_fallthru
        _
    $region6: #{tpu_custom_call.1} parent=1 // loop_footer
      %s16 = sadd.s32 1, %s12
    $region7: #{tpu_custom_call.1} parent=1 // loop_footer_branch
      %11 = sbr.rel target = $region3
    $region8: #{tpu_custom_call.1} parent=1 // loop_exit
      _
    %4885 = vsyncpa [#allocation3], 1
    %s4886 = scalar_lea.sflag [#allocation3], 1
    %4887 = vsyncpa %s4886, 1

</llo_original>
